<compile_context>
chip_gen: v6e
topology: v6e:2x2x1
jax: 0.10.0
libtpu: 0.0.40
codegen_flags: <defaults>
</compile_context>

<pallas_src>
import jax
import jax.numpy as jnp
from jax.experimental import pallas as pl
from jax.experimental.pallas import tpu as pltpu


def _conv1x1_kernel(w_ref, x_ref, o_ref):
    # w_ref: (TCO, Cin)  bf16 weight tile (output-channel slice)
    # x_ref: (Cin, HW)   one image, channels-major (native NCHW view)
    # o_ref: (TCO, HW)   output tile, already in NCHW layout
    x = x_ref[...].astype(jnp.bfloat16)
    o_ref[...] = jnp.dot(
        w_ref[...], x, preferred_element_type=jnp.float32
    ).astype(o_ref.dtype)


def _default_tco(cout):
    """2-way Cout split only on v7x (2 TensorCores/chip); single step elsewhere."""
    try:
        kind = jax.devices()[0].device_kind.lower()
    except Exception:
        kind = ""
    if "v7" in kind and cout % 2 == 0 and (cout // 2) % 8 == 0:
        return cout // 2
    return cout


def conv2d_1x1(x_nchw, weight_oi, *, tco=None):
    """1x1 conv, no bias. x_nchw: (N, Cin, H, W); weight_oi: (Cout, Cin) -> (N, Cout, H, W)."""
    N, Cin, H, W = x_nchw.shape
    Cout = weight_oi.shape[0]
    HW = H * W

    if tco is None:
        tco = _default_tco(Cout)
    if Cout % tco != 0 or tco % 8 != 0:
        tco = Cout
    n_co = Cout // tco

    # Free reshape (no transpose, no HBM round-trip): NCHW -> (N, Cin, H*W)
    x3 = x_nchw.reshape(N, Cin, HW)

    # Cast the weight once outside the kernel: halves the dominant HBM read.
    w_bf16 = weight_oi.astype(jnp.bfloat16)

    x_item = x_nchw.dtype.itemsize
    out_item = x_nchw.dtype.itemsize
    cost = pl.CostEstimate(
        flops=2 * N * HW * Cin * Cout,
        transcendentals=0,
        bytes_accessed=(
            N * Cin * HW * x_item          # activations (f32)
            + Cout * Cin * 2               # bf16 weight
            + N * Cout * HW * out_item     # output (f32)
        ),
    )

    out3 = pl.pallas_call(
        _conv1x1_kernel,
        out_shape=jax.ShapeDtypeStruct((N, Cout, HW), x_nchw.dtype),
        grid_spec=pltpu.PrefetchScalarGridSpec(
            num_scalar_prefetch=0,
            grid=(N, n_co),
            in_specs=[
                # weight tile: output-channel slice j
                pl.BlockSpec((tco, Cin), lambda n, j: (j, 0)),
                # image n, full (Cin, HW) slab; batch dim squeezed out of the kernel ref
                pl.BlockSpec((None, Cin, HW), lambda n, j: (n, 0, 0)),
            ],
            out_specs=pl.BlockSpec((None, tco, HW), lambda n, j: (n, j, 0)),
        ),
        compiler_params=pltpu.CompilerParams(
            dimension_semantics=("parallel", "parallel"),
            vmem_limit_bytes=32 << 20,
        ),
        cost_estimate=cost,
    )(w_bf16, x3)

    return out3.reshape(N, Cout, H, W)


if __name__ == "__main__":
    key = jax.random.PRNGKey(0)
    kx, kw = jax.random.split(key)

    # Shapes implied by the module: input (1, 896, 14, 14), weight (896, 896, 1, 1)
    N, Cin, H, W = 1, 896, 14, 14
    Cout = 896

    x = jax.random.normal(kx, (N, Cin, H, W), dtype=jnp.float32)
    bound = 1.0 / (Cin ** 0.5)
    weight = jax.random.uniform(
        kw, (Cout, Cin), minval=-bound, maxval=bound, dtype=jnp.float32
    )

    out = conv2d_1x1(x, weight)
    jax.block_until_ready(out)
    assert out.shape == (N, Cout, H, W)

    # Reference: same conv with inputs rounded to bf16 (kernel feeds bf16 to the
    # MXU with f32 accumulation), so a tight-ish tolerance still holds.
    x_r = x.astype(jnp.bfloat16).astype(jnp.float32)
    w_r = weight.astype(jnp.bfloat16).astype(jnp.float32)
    ref = jnp.einsum("nchw,oc->nohw", x_r, w_r, preferred_element_type=jnp.float32)
    assert jnp.allclose(out, ref, atol=2e-2, rtol=2e-2), float(
        jnp.max(jnp.abs(out - ref))
    )

    print("KERNEL_OK")
</pallas_src>

<mosaic_0001>
module attributes {stable_mosaic.version = 11 : i64} {
  func.func @_conv1x1_kernel(%arg0: i32, %arg1: i32, %arg2: memref<896x896xbf16, #tpu.memory_space<vmem>>, %arg3: memref<1x896x196xf32, #tpu.memory_space<vmem>>, %arg4: memref<1x896x196xf32, #tpu.memory_space<vmem>>) attributes {dimension_semantics = [#tpu.dimension_semantics<parallel>, #tpu.dimension_semantics<parallel>], iteration_bounds = array<i64: 1, 1>, scalar_prefetch = 0 : i64, scratch_operands = 0 : i64, tpu.core_type = #tpu.core_type<tc>, window_params = [{transform_indices = @transform_0, window_bounds = array<i64: 896, 896>}, {transform_indices = @transform_1, window_bounds = array<i64: 1, 896, 196>}, {transform_indices = @transform_2, window_bounds = array<i64: 1, 896, 196>}]} {
    %c0 = arith.constant 0 : index
    %c0_0 = arith.constant 0 : index
    %c0_1 = arith.constant 0 : index
    %0 = vector.load %arg3[%c0, %c0_0, %c0_1] : memref<1x896x196xf32, #tpu.memory_space<vmem>>, vector<1x896x196xf32>
    %1 = vector.shape_cast %0 : vector<1x896x196xf32> to vector<896x196xf32>
    %2 = arith.truncf %1 : vector<896x196xf32> to vector<896x196xbf16>
    %c0_2 = arith.constant 0 : index
    %c0_3 = arith.constant 0 : index
    %3 = vector.load %arg2[%c0_2, %c0_3] : memref<896x896xbf16, #tpu.memory_space<vmem>>, vector<896x896xbf16>
    %cst = arith.constant dense<0.000000e+00> : vector<896x196xf32>
    %4 = tpu.matmul %3, %2, %cst {dimension_numbers = #tpu.dot_dimension_numbers<[1], [0], [0], [1], [0, 0, 1, 1], [], []>} : vector<896x896xbf16>, vector<896x196xbf16>, vector<896x196xf32> -> vector<896x196xf32>
    %c0_4 = arith.constant 0 : index
    %c0_5 = arith.constant 0 : index
    %c0_6 = arith.constant 0 : index
    %5 = vector.load %arg4[%c0_4, %c0_5, %c0_6] : memref<1x896x196xf32, #tpu.memory_space<vmem>>, vector<1x896x196xf32>
    %6 = vector.shape_cast %5 : vector<1x896x196xf32> to vector<896x196xf32>
    %7 = vector.shape_cast %4 : vector<896x196xf32> to vector<1x896x196xf32>
    tpu.vector_store %arg4[%c0_4, %c0_5, %c0_6], %7 {strides = array<i32>} : memref<1x896x196xf32, #tpu.memory_space<vmem>>, vector<1x896x196xf32>,
    return
  }
  func.func @transform_0(%arg0: i32, %arg1: i32) -> (i32, i32) {
    %c0_i32 = arith.constant 0 : i32
    %c0_i32_0 = arith.constant 0 : i32
    return %arg1, %c0_i32 : i32, i32
  }
  func.func @transform_1(%arg0: i32, %arg1: i32) -> (i32, i32, i32) {
    %c0_i32 = arith.constant 0 : i32
    %c0_i32_0 = arith.constant 0 : i32
    %c0_i32_1 = arith.constant 0 : i32
    return %arg0, %c0_i32, %c0_i32_0 : i32, i32, i32
  }
  func.func @transform_2(%arg0: i32, %arg1: i32) -> (i32, i32, i32) {
    %c0_i32 = arith.constant 0 : i32
    %c0_i32_0 = arith.constant 0 : i32
    return %arg0, %arg1, %c0_i32 : i32, i32, i32
  }
}

</mosaic_0001>

<llo_original>
// kernel: tpu_custom_call.1
$region0: #{tpu_custom_call.1}
  #allocation0 [shape = 'u32[]', space=smem, size = 0x4, offset = 0x4, fixed_abs, tag = 'smem constant byte address 0x4 - core index']
  #allocation1 [shape = 'u32[144,128]{1,0:T(1,128)}', space=vmem, size = 0x12000, scoped, tag = 'internal scratch']
  %s0 = inlined_call_operand.vmem [shape: bf16[896,896], index: 0, kind: input, shape index: {}]
  %s1 = inlined_call_operand.vmem [shape: f32[1,896,196], index: 1, kind: input, shape index: {}]
  %s2 = inlined_call_operand.vmem [shape: f32[1,896,196], index: 2, kind: output, shape index: {}]
  %s3 = sld [smem:[#allocation0]]
  $region18: #{tpu_custom_call.1} parent=0
    _
  %s5 = ssub.s32 1, %s3
  %s6 = scalar_select 0, %s5, %s3
  // Predicated region
  $region2: #{tpu_custom_call.1} parent=0 // pred_check
    _
  $region3: #{tpu_custom_call.1} parent=0 // pred_check_branch
    %8 = sbr.rel (0) target = $region5
  $region4: #{tpu_custom_call.1} parent=0 // pred_region
    _
  $region5: #{tpu_custom_call.1} parent=0 // pred_fallthru
    _
  // Predicated region
  $region6: #{tpu_custom_call.1} parent=0 // pred_check
    _
  $region7: #{tpu_custom_call.1} parent=0 // pred_check_branch
    %10 = sbr.rel (0) target = $region9
  $region8: #{tpu_custom_call.1} parent=0 // pred_region
    _
  $region9: #{tpu_custom_call.1} parent=0 // pred_fallthru
    _
  %v12 = vld [vmem:[%s1] sm:$0xff]
  %v13 = vld [vmem:[%s1 + $0x8] sm:$0xff]
  %v14 = vld [vmem:[%s1 + $0x10] sm:$0xff]
  %v15 = vld [vmem:[%s1 + $0x18] sm:$0xff]
  %v16 = vld [vmem:[%s1 + $0x20] sm:$0xff]
  %v17 = vld [vmem:[%s1 + $0x28] sm:$0xff]
  %v18 = vld [vmem:[%s1 + $0x30] sm:$0xff]
  %v19 = vld [vmem:[%s1 + $0x38] sm:$0xff]
  %v20 = vld [vmem:[%s1 + $0x40] sm:$0xff]
  %v21 = vld [vmem:[%s1 + $0x48] sm:$0xff]
  %v22 = vld [vmem:[%s1 + $0x50] sm:$0xff]
  %v23 = vld [vmem:[%s1 + $0x58] sm:$0xff]
  %v24 = vld [vmem:[%s1 + $0x60] sm:$0xff]
  %v25 = vld [vmem:[%s1 + $0x68] sm:$0xff]
  %v26 = vld [vmem:[%s1 + $0x70] sm:$0xff]
  %v27 = vld [vmem:[%s1 + $0x78] sm:$0xff]
  %v28 = vld [vmem:[%s1 + $0x80] sm:$0xff]
  %v29 = vld [vmem:[%s1 + $0x88] sm:$0xff]
  %v30 = vld [vmem:[%s1 + $0x90] sm:$0xff]
  %v31 = vld [vmem:[%s1 + $0x98] sm:$0xff]
  %v32 = vld [vmem:[%s1 + $0xa0] sm:$0xff]
  %v33 = vld [vmem:[%s1 + $0xa8] sm:$0xff]
  %v34 = vld [vmem:[%s1 + $0xb0] sm:$0xff]
  %v35 = vld [vmem:[%s1 + $0xb8] sm:$0xff]
  %v36 = vld [vmem:[%s1 + $0xc0] sm:$0xff]
  %v37 = vld [vmem:[%s1 + $0xc8] sm:$0xff]
  %v38 = vld [vmem:[%s1 + $0xd0] sm:$0xff]
  %v39 = vld [vmem:[%s1 + $0xd8] sm:$0xff]
  %v40 = vld [vmem:[%s1 + $0xe0] sm:$0xff]
  %v41 = vld [vmem:[%s1 + $0xe8] sm:$0xff]
  %v42 = vld [vmem:[%s1 + $0xf0] sm:$0xff]
  %v43 = vld [vmem:[%s1 + $0xf8] sm:$0xff]
  %v44 = vld [vmem:[%s1 + $0x100] sm:$0xff]
  %v45 = vld [vmem:[%s1 + $0x108] sm:$0xff]
  %v46 = vld [vmem:[%s1 + $0x110] sm:$0xff]
  %v47 = vld [vmem:[%s1 + $0x118] sm:$0xff]
  %v48 = vld [vmem:[%s1 + $0x120] sm:$0xff]
  %v49 = vld [vmem:[%s1 + $0x128] sm:$0xff]
  %v50 = vld [vmem:[%s1 + $0x130] sm:$0xff]
  %v51 = vld [vmem:[%s1 + $0x138] sm:$0xff]
  %v52 = vld [vmem:[%s1 + $0x140] sm:$0xff]
  %v53 = vld [vmem:[%s1 + $0x148] sm:$0xff]
  %v54 = vld [vmem:[%s1 + $0x150] sm:$0xff]
  %v55 = vld [vmem:[%s1 + $0x158] sm:$0xff]
  %v56 = vld [vmem:[%s1 + $0x160] sm:$0xff]
  %v57 = vld [vmem:[%s1 + $0x168] sm:$0xff]
  %v58 = vld [vmem:[%s1 + $0x170] sm:$0xff]
  %v59 = vld [vmem:[%s1 + $0x178] sm:$0xff]
  %v60 = vld [vmem:[%s1 + $0x180] sm:$0xff]
  %v61 = vld [vmem:[%s1 + $0x188] sm:$0xff]
  %v62 = vld [vmem:[%s1 + $0x190] sm:$0xff]
  %v63 = vld [vmem:[%s1 + $0x198] sm:$0xff]
  %v64 = vld [vmem:[%s1 + $0x1a0] sm:$0xff]
  %v65 = vld [vmem:[%s1 + $0x1a8] sm:$0xff]
  %v66 = vld [vmem:[%s1 + $0x1b0] sm:$0xff]
  %v67 = vld [vmem:[%s1 + $0x1b8] sm:$0xff]
  %v68 = vld [vmem:[%s1 + $0x1c0] sm:$0xff]
  %v69 = vld [vmem:[%s1 + $0x1c8] sm:$0xff]
  %v70 = vld [vmem:[%s1 + $0x1d0] sm:$0xff]
  %v71 = vld [vmem:[%s1 + $0x1d8] sm:$0xff]
  %v72 = vld [vmem:[%s1 + $0x1e0] sm:$0xff]
  %v73 = vld [vmem:[%s1 + $0x1e8] sm:$0xff]
  %v74 = vld [vmem:[%s1 + $0x1f0] sm:$0xff]
  %v75 = vld [vmem:[%s1 + $0x1f8] sm:$0xff]
  %v76 = vld [vmem:[%s1 + $0x200] sm:$0xff]
  %v77 = vld [vmem:[%s1 + $0x208] sm:$0xff]
  %v78 = vld [vmem:[%s1 + $0x210] sm:$0xff]
  %v79 = vld [vmem:[%s1 + $0x218] sm:$0xff]
  %v80 = vld [vmem:[%s1 + $0x220] sm:$0xff]
  %v81 = vld [vmem:[%s1 + $0x228] sm:$0xff]
  %v82 = vld [vmem:[%s1 + $0x230] sm:$0xff]
  %v83 = vld [vmem:[%s1 + $0x238] sm:$0xff]
  %v84 = vld [vmem:[%s1 + $0x240] sm:$0xff]
  %v85 = vld [vmem:[%s1 + $0x248] sm:$0xff]
  %v86 = vld [vmem:[%s1 + $0x250] sm:$0xff]
  %v87 = vld [vmem:[%s1 + $0x258] sm:$0xff]
  %v88 = vld [vmem:[%s1 + $0x260] sm:$0xff]
  %v89 = vld [vmem:[%s1 + $0x268] sm:$0xff]
  %v90 = vld [vmem:[%s1 + $0x270] sm:$0xff]
  %v91 = vld [vmem:[%s1 + $0x278] sm:$0xff]
  %v92 = vld [vmem:[%s1 + $0x280] sm:$0xff]
  %v93 = vld [vmem:[%s1 + $0x288] sm:$0xff]
  %v94 = vld [vmem:[%s1 + $0x290] sm:$0xff]
  %v95 = vld [vmem:[%s1 + $0x298] sm:$0xff]
  %v96 = vld [vmem:[%s1 + $0x2a0] sm:$0xff]
  %v97 = vld [vmem:[%s1 + $0x2a8] sm:$0xff]
  %v98 = vld [vmem:[%s1 + $0x2b0] sm:$0xff]
  %v99 = vld [vmem:[%s1 + $0x2b8] sm:$0xff]
  %v100 = vld [vmem:[%s1 + $0x2c0] sm:$0xff]
  %v101 = vld [vmem:[%s1 + $0x2c8] sm:$0xff]
  %v102 = vld [vmem:[%s1 + $0x2d0] sm:$0xff]
  %v103 = vld [vmem:[%s1 + $0x2d8] sm:$0xff]
  %v104 = vld [vmem:[%s1 + $0x2e0] sm:$0xff]
  %v105 = vld [vmem:[%s1 + $0x2e8] sm:$0xff]
  %v106 = vld [vmem:[%s1 + $0x2f0] sm:$0xff]
  %v107 = vld [vmem:[%s1 + $0x2f8] sm:$0xff]
  %v108 = vld [vmem:[%s1 + $0x300] sm:$0xff]
  %v109 = vld [vmem:[%s1 + $0x308] sm:$0xff]
  %v110 = vld [vmem:[%s1 + $0x310] sm:$0xff]
  %v111 = vld [vmem:[%s1 + $0x318] sm:$0xff]
  %v112 = vld [vmem:[%s1 + $0x320] sm:$0xff]
  %v113 = vld [vmem:[%s1 + $0x328] sm:$0xff]
  %v114 = vld [vmem:[%s1 + $0x330] sm:$0xff]
  %v115 = vld [vmem:[%s1 + $0x338] sm:$0xff]
  %v116 = vld [vmem:[%s1 + $0x340] sm:$0xff]
  %v117 = vld [vmem:[%s1 + $0x348] sm:$0xff]
  %v118 = vld [vmem:[%s1 + $0x350] sm:$0xff]
  %v119 = vld [vmem:[%s1 + $0x358] sm:$0xff]
  %v120 = vld [vmem:[%s1 + $0x360] sm:$0xff]
  %v121 = vld [vmem:[%s1 + $0x368] sm:$0xff]
  %v122 = vld [vmem:[%s1 + $0x370] sm:$0xff]
  %v123 = vld [vmem:[%s1 + $0x378] sm:$0xff]
  %v124 = vld [vmem:[%s1 + $0x380] sm:$0xff]
  %v125 = vld [vmem:[%s1 + $0x388] sm:$0xff]
  %v126 = vld [vmem:[%s1 + $0x390] sm:$0xff]
  %v127 = vld [vmem:[%s1 + $0x398] sm:$0xff]
  %v128 = vld [vmem:[%s1 + $0x3a0] sm:$0xff]
  %v129 = vld [vmem:[%s1 + $0x3a8] sm:$0xff]
  %v130 = vld [vmem:[%s1 + $0x3b0] sm:$0xff]
  %v131 = vld [vmem:[%s1 + $0x3b8] sm:$0xff]
  %v132 = vld [vmem:[%s1 + $0x3c0] sm:$0xff]
  %v133 = vld [vmem:[%s1 + $0x3c8] sm:$0xff]
  %v134 = vld [vmem:[%s1 + $0x3d0] sm:$0xff]
  %v135 = vld [vmem:[%s1 + $0x3d8] sm:$0xff]
  %v136 = vld [vmem:[%s1 + $0x3e0] sm:$0xff]
  %v137 = vld [vmem:[%s1 + $0x3e8] sm:$0xff]
  %v138 = vld [vmem:[%s1 + $0x3f0] sm:$0xff]
  %v139 = vld [vmem:[%s1 + $0x3f8] sm:$0xff]
  %v140 = vld [vmem:[%s1 + $0x400] sm:$0xff]
  %v141 = vld [vmem:[%s1 + $0x408] sm:$0xff]
  %v142 = vld [vmem:[%s1 + $0x410] sm:$0xff]
  %v143 = vld [vmem:[%s1 + $0x418] sm:$0xff]
  %v144 = vld [vmem:[%s1 + $0x420] sm:$0xff]
  %v145 = vld [vmem:[%s1 + $0x428] sm:$0xff]
  %v146 = vld [vmem:[%s1 + $0x430] sm:$0xff]
  %v147 = vld [vmem:[%s1 + $0x438] sm:$0xff]
  %v148 = vld [vmem:[%s1 + $0x440] sm:$0xff]
  %v149 = vld [vmem:[%s1 + $0x448] sm:$0xff]
  %v150 = vld [vmem:[%s1 + $0x450] sm:$0xff]
  %v151 = vld [vmem:[%s1 + $0x458] sm:$0xff]
  %v152 = vld [vmem:[%s1 + $0x460] sm:$0xff]
  %v153 = vld [vmem:[%s1 + $0x468] sm:$0xff]
  %v154 = vld [vmem:[%s1 + $0x470] sm:$0xff]
  %v155 = vld [vmem:[%s1 + $0x478] sm:$0xff]
  %v156 = vld [vmem:[%s1 + $0x480] sm:$0xff]
  %v157 = vld [vmem:[%s1 + $0x488] sm:$0xff]
  %v158 = vld [vmem:[%s1 + $0x490] sm:$0xff]
  %v159 = vld [vmem:[%s1 + $0x498] sm:$0xff]
  %v160 = vld [vmem:[%s1 + $0x4a0] sm:$0xff]
  %v161 = vld [vmem:[%s1 + $0x4a8] sm:$0xff]
  %v162 = vld [vmem:[%s1 + $0x4b0] sm:$0xff]
  %v163 = vld [vmem:[%s1 + $0x4b8] sm:$0xff]
  %v164 = vld [vmem:[%s1 + $0x4c0] sm:$0xff]
  %v165 = vld [vmem:[%s1 + $0x4c8] sm:$0xff]
  %v166 = vld [vmem:[%s1 + $0x4d0] sm:$0xff]
  %v167 = vld [vmem:[%s1 + $0x4d8] sm:$0xff]
  %v168 = vld [vmem:[%s1 + $0x4e0] sm:$0xff]
  %v169 = vld [vmem:[%s1 + $0x4e8] sm:$0xff]
  %v170 = vld [vmem:[%s1 + $0x4f0] sm:$0xff]
  %v171 = vld [vmem:[%s1 + $0x4f8] sm:$0xff]
  %v172 = vld [vmem:[%s1 + $0x500] sm:$0xff]
  %v173 = vld [vmem:[%s1 + $0x508] sm:$0xff]
  %v174 = vld [vmem:[%s1 + $0x510] sm:$0xff]
  %v175 = vld [vmem:[%s1 + $0x518] sm:$0xff]
  %v176 = vld [vmem:[%s1 + $0x520] sm:$0xff]
  %v177 = vld [vmem:[%s1 + $0x528] sm:$0xff]
  %v178 = vld [vmem:[%s1 + $0x530] sm:$0xff]
  %v179 = vld [vmem:[%s1 + $0x538] sm:$0xff]
  %v180 = vld [vmem:[%s1 + $0x540] sm:$0xff]
  %v181 = vld [vmem:[%s1 + $0x548] sm:$0xff]
  %v182 = vld [vmem:[%s1 + $0x550] sm:$0xff]
  %v183 = vld [vmem:[%s1 + $0x558] sm:$0xff]
  %v184 = vld [vmem:[%s1 + $0x560] sm:$0xff]
  %v185 = vld [vmem:[%s1 + $0x568] sm:$0xff]
  %v186 = vld [vmem:[%s1 + $0x570] sm:$0xff]
  %v187 = vld [vmem:[%s1 + $0x578] sm:$0xff]
  %v188 = vld [vmem:[%s1 + $0x580] sm:$0xff]
  %v189 = vld [vmem:[%s1 + $0x588] sm:$0xff]
  %v190 = vld [vmem:[%s1 + $0x590] sm:$0xff]
  %v191 = vld [vmem:[%s1 + $0x598] sm:$0xff]
  %v192 = vld [vmem:[%s1 + $0x5a0] sm:$0xff]
  %v193 = vld [vmem:[%s1 + $0x5a8] sm:$0xff]
  %v194 = vld [vmem:[%s1 + $0x5b0] sm:$0xff]
  %v195 = vld [vmem:[%s1 + $0x5b8] sm:$0xff]
  %v196 = vld [vmem:[%s1 + $0x5c0] sm:$0xff]
  %v197 = vld [vmem:[%s1 + $0x5c8] sm:$0xff]
  %v198 = vld [vmem:[%s1 + $0x5d0] sm:$0xff]
  %v199 = vld [vmem:[%s1 + $0x5d8] sm:$0xff]
  %v200 = vld [vmem:[%s1 + $0x5e0] sm:$0xff]
  %v201 = vld [vmem:[%s1 + $0x5e8] sm:$0xff]
  %v202 = vld [vmem:[%s1 + $0x5f0] sm:$0xff]
  %v203 = vld [vmem:[%s1 + $0x5f8] sm:$0xff]
  %v204 = vld [vmem:[%s1 + $0x600] sm:$0xff]
  %v205 = vld [vmem:[%s1 + $0x608] sm:$0xff]
  %v206 = vld [vmem:[%s1 + $0x610] sm:$0xff]
  %v207 = vld [vmem:[%s1 + $0x618] sm:$0xff]
  %v208 = vld [vmem:[%s1 + $0x620] sm:$0xff]
  %v209 = vld [vmem:[%s1 + $0x628] sm:$0xff]
  %v210 = vld [vmem:[%s1 + $0x630] sm:$0xff]
  %v211 = vld [vmem:[%s1 + $0x638] sm:$0xff]
  %v212 = vld [vmem:[%s1 + $0x640] sm:$0xff]
  %v213 = vld [vmem:[%s1 + $0x648] sm:$0xff]
  %v214 = vld [vmem:[%s1 + $0x650] sm:$0xff]
  %v215 = vld [vmem:[%s1 + $0x658] sm:$0xff]
  %v216 = vld [vmem:[%s1 + $0x660] sm:$0xff]
  %v217 = vld [vmem:[%s1 + $0x668] sm:$0xff]
  %v218 = vld [vmem:[%s1 + $0x670] sm:$0xff]
  %v219 = vld [vmem:[%s1 + $0x678] sm:$0xff]
  %v220 = vld [vmem:[%s1 + $0x680] sm:$0xff]
  %v221 = vld [vmem:[%s1 + $0x688] sm:$0xff]
  %v222 = vld [vmem:[%s1 + $0x690] sm:$0xff]
  %v223 = vld [vmem:[%s1 + $0x698] sm:$0xff]
  %v224 = vld [vmem:[%s1 + $0x6a0] sm:$0xff]
  %v225 = vld [vmem:[%s1 + $0x6a8] sm:$0xff]
  %v226 = vld [vmem:[%s1 + $0x6b0] sm:$0xff]
  %v227 = vld [vmem:[%s1 + $0x6b8] sm:$0xff]
  %v228 = vld [vmem:[%s1 + $0x6c0] sm:$0xff]
  %v229 = vld [vmem:[%s1 + $0x6c8] sm:$0xff]
  %v230 = vld [vmem:[%s1 + $0x6d0] sm:$0xff]
  %v231 = vld [vmem:[%s1 + $0x6d8] sm:$0xff]
  %v232 = vld [vmem:[%s1 + $0x6e0] sm:$0xff]
  %v233 = vld [vmem:[%s1 + $0x6e8] sm:$0xff]
  %v234 = vld [vmem:[%s1 + $0x6f0] sm:$0xff]
  %v235 = vld [vmem:[%s1 + $0x6f8] sm:$0xff]
  %v236 = vpack.c.bf16 %v14, %v12
  %v237 = vpack.c.bf16 %v15, %v13
  %v238 = vpack.c.bf16 %v18, %v16
  %v239 = vpack.c.bf16 %v19, %v17
  %v240 = vpack.c.bf16 %v22, %v20
  %v241 = vpack.c.bf16 %v23, %v21
  %v242 = vpack.c.bf16 %v26, %v24
  %v243 = vpack.c.bf16 %v27, %v25
  %v244 = vpack.c.bf16 %v30, %v28
  %v245 = vpack.c.bf16 %v31, %v29
  %v246 = vpack.c.bf16 %v34, %v32
  %v247 = vpack.c.bf16 %v35, %v33
  %v248 = vpack.c.bf16 %v38, %v36
  %v249 = vpack.c.bf16 %v39, %v37
  %v250 = vpack.c.bf16 %v42, %v40
  %v251 = vpack.c.bf16 %v43, %v41
  %v252 = vpack.c.bf16 %v46, %v44
  %v253 = vpack.c.bf16 %v47, %v45
  %v254 = vpack.c.bf16 %v50, %v48
  %v255 = vpack.c.bf16 %v51, %v49
  %v256 = vpack.c.bf16 %v54, %v52
  %v257 = vpack.c.bf16 %v55, %v53
  %v258 = vpack.c.bf16 %v58, %v56
  %v259 = vpack.c.bf16 %v59, %v57
  %v260 = vpack.c.bf16 %v62, %v60
  %v261 = vpack.c.bf16 %v63, %v61
  %v262 = vpack.c.bf16 %v66, %v64
  %v263 = vpack.c.bf16 %v67, %v65
  %v264 = vpack.c.bf16 %v70, %v68
  %v265 = vpack.c.bf16 %v71, %v69
  %v266 = vpack.c.bf16 %v74, %v72
  %v267 = vpack.c.bf16 %v75, %v73
  %v268 = vpack.c.bf16 %v78, %v76
  %v269 = vpack.c.bf16 %v79, %v77
  %v270 = vpack.c.bf16 %v82, %v80
  %v271 = vpack.c.bf16 %v83, %v81
  %v272 = vpack.c.bf16 %v86, %v84
  %v273 = vpack.c.bf16 %v87, %v85
  %v274 = vpack.c.bf16 %v90, %v88
  %v275 = vpack.c.bf16 %v91, %v89
  %v276 = vpack.c.bf16 %v94, %v92
  %v277 = vpack.c.bf16 %v95, %v93
  %v278 = vpack.c.bf16 %v98, %v96
  %v279 = vpack.c.bf16 %v99, %v97
  %v280 = vpack.c.bf16 %v102, %v100
  %v281 = vpack.c.bf16 %v103, %v101
  %v282 = vpack.c.bf16 %v106, %v104
  %v283 = vpack.c.bf16 %v107, %v105
  %v284 = vpack.c.bf16 %v110, %v108
  %v285 = vpack.c.bf16 %v111, %v109
  %v286 = vpack.c.bf16 %v114, %v112
  %v287 = vpack.c.bf16 %v115, %v113
  %v288 = vpack.c.bf16 %v118, %v116
  %v289 = vpack.c.bf16 %v119, %v117
  %v290 = vpack.c.bf16 %v122, %v120
  %v291 = vpack.c.bf16 %v123, %v121
  %v292 = vpack.c.bf16 %v126, %v124
  %v293 = vpack.c.bf16 %v127, %v125
  %v294 = vpack.c.bf16 %v130, %v128
  %v295 = vpack.c.bf16 %v131, %v129
  %v296 = vpack.c.bf16 %v134, %v132
  %v297 = vpack.c.bf16 %v135, %v133
  %v298 = vpack.c.bf16 %v138, %v136
  %v299 = vpack.c.bf16 %v139, %v137
  %v300 = vpack.c.bf16 %v142, %v140
  %v301 = vpack.c.bf16 %v143, %v141
  %v302 = vpack.c.bf16 %v146, %v144
  %v303 = vpack.c.bf16 %v147, %v145
  %v304 = vpack.c.bf16 %v150, %v148
  %v305 = vpack.c.bf16 %v151, %v149
  %v306 = vpack.c.bf16 %v154, %v152
  %v307 = vpack.c.bf16 %v155, %v153
  %v308 = vpack.c.bf16 %v158, %v156
  %v309 = vpack.c.bf16 %v159, %v157
  %v310 = vpack.c.bf16 %v162, %v160
  %v311 = vpack.c.bf16 %v163, %v161
  %v312 = vpack.c.bf16 %v166, %v164
  %v313 = vpack.c.bf16 %v167, %v165
  %v314 = vpack.c.bf16 %v170, %v168
  %v315 = vpack.c.bf16 %v171, %v169
  %v316 = vpack.c.bf16 %v174, %v172
  %v317 = vpack.c.bf16 %v175, %v173
  %v318 = vpack.c.bf16 %v178, %v176
  %v319 = vpack.c.bf16 %v179, %v177
  %v320 = vpack.c.bf16 %v182, %v180
  %v321 = vpack.c.bf16 %v183, %v181
  %v322 = vpack.c.bf16 %v186, %v184
  %v323 = vpack.c.bf16 %v187, %v185
  %v324 = vpack.c.bf16 %v190, %v188
  %v325 = vpack.c.bf16 %v191, %v189
  %v326 = vpack.c.bf16 %v194, %v192
  %v327 = vpack.c.bf16 %v195, %v193
  %v328 = vpack.c.bf16 %v198, %v196
  %v329 = vpack.c.bf16 %v199, %v197
  %v330 = vpack.c.bf16 %v202, %v200
  %v331 = vpack.c.bf16 %v203, %v201
  %v332 = vpack.c.bf16 %v206, %v204
  %v333 = vpack.c.bf16 %v207, %v205
  %v334 = vpack.c.bf16 %v210, %v208
  %v335 = vpack.c.bf16 %v211, %v209
  %v336 = vpack.c.bf16 %v214, %v212
  %v337 = vpack.c.bf16 %v215, %v213
  %v338 = vpack.c.bf16 %v218, %v216
  %v339 = vpack.c.bf16 %v219, %v217
  %v340 = vpack.c.bf16 %v222, %v220
  %v341 = vpack.c.bf16 %v223, %v221
  %v342 = vpack.c.bf16 %v226, %v224
  %v343 = vpack.c.bf16 %v227, %v225
  %v344 = vpack.c.bf16 %v230, %v228
  %v345 = vpack.c.bf16 %v231, %v229
  %v346 = vpack.c.bf16 %v234, %v232
  %v347 = vpack.c.bf16 %v235, %v233
  %v348 = vld [vmem:[%s0] sm:$0xff]
  %v349 = vld [vmem:[%s0 + $0x8] sm:$0xff]
  %v350 = vld [vmem:[%s0 + $0x10] sm:$0xff]
  %v351 = vld [vmem:[%s0 + $0x18] sm:$0xf]
  %v352 = vld [vmem:[%s0 + $0x1c] sm:$0xff]
  %v353 = vld [vmem:[%s0 + $0x24] sm:$0xff]
  %v354 = vld [vmem:[%s0 + $0x2c] sm:$0xff]
  %v355 = vld [vmem:[%s0 + $0x34] sm:$0xf]
  %v356 = vld [vmem:[%s0 + $0x38] sm:$0xff]
  %v357 = vld [vmem:[%s0 + $0x40] sm:$0xff]
  %v358 = vld [vmem:[%s0 + $0x48] sm:$0xff]
  %v359 = vld [vmem:[%s0 + $0x50] sm:$0xf]
  %v360 = vld [vmem:[%s0 + $0x54] sm:$0xff]
  %v361 = vld [vmem:[%s0 + $0x5c] sm:$0xff]
  %v362 = vld [vmem:[%s0 + $0x64] sm:$0xff]
  %v363 = vld [vmem:[%s0 + $0x6c] sm:$0xf]
  %v364 = vld [vmem:[%s0 + $0x70] sm:$0xff]
  %v365 = vld [vmem:[%s0 + $0x78] sm:$0xff]
  %v366 = vld [vmem:[%s0 + $0x80] sm:$0xff]
  %v367 = vld [vmem:[%s0 + $0x88] sm:$0xf]
  %v368 = vld [vmem:[%s0 + $0x8c] sm:$0xff]
  %v369 = vld [vmem:[%s0 + $0x94] sm:$0xff]
  %v370 = vld [vmem:[%s0 + $0x9c] sm:$0xff]
  %v371 = vld [vmem:[%s0 + $0xa4] sm:$0xf]
  %v372 = vld [vmem:[%s0 + $0xa8] sm:$0xff]
  %v373 = vld [vmem:[%s0 + $0xb0] sm:$0xff]
  %v374 = vld [vmem:[%s0 + $0xb8] sm:$0xff]
  %v375 = vld [vmem:[%s0 + $0xc0] sm:$0xf]
  %v376 = vld [vmem:[%s0 + $0xc4] sm:$0xff]
  %v377 = vld [vmem:[%s0 + $0xcc] sm:$0xff]
  %v378 = vld [vmem:[%s0 + $0xd4] sm:$0xff]
  %v379 = vld [vmem:[%s0 + $0xdc] sm:$0xf]
  %v380 = vld [vmem:[%s0 + $0xe0] sm:$0xff]
  %v381 = vld [vmem:[%s0 + $0xe8] sm:$0xff]
  %v382 = vld [vmem:[%s0 + $0xf0] sm:$0xff]
  %v383 = vld [vmem:[%s0 + $0xf8] sm:$0xf]
  %v384 = vld [vmem:[%s0 + $0xfc] sm:$0xff]
  %v385 = vld [vmem:[%s0 + $0x104] sm:$0xff]
  %v386 = vld [vmem:[%s0 + $0x10c] sm:$0xff]
  %v387 = vld [vmem:[%s0 + $0x114] sm:$0xf]
  %v388 = vld [vmem:[%s0 + $0x118] sm:$0xff]
  %v389 = vld [vmem:[%s0 + $0x120] sm:$0xff]
  %v390 = vld [vmem:[%s0 + $0x128] sm:$0xff]
  %v391 = vld [vmem:[%s0 + $0x130] sm:$0xf]
  %v392 = vld [vmem:[%s0 + $0x134] sm:$0xff]
  %v393 = vld [vmem:[%s0 + $0x13c] sm:$0xff]
  %v394 = vld [vmem:[%s0 + $0x144] sm:$0xff]
  %v395 = vld [vmem:[%s0 + $0x14c] sm:$0xf]
  %v396 = vld [vmem:[%s0 + $0x150] sm:$0xff]
  %v397 = vld [vmem:[%s0 + $0x158] sm:$0xff]
  %v398 = vld [vmem:[%s0 + $0x160] sm:$0xff]
  %v399 = vld [vmem:[%s0 + $0x168] sm:$0xf]
  %v400 = vld [vmem:[%s0 + $0x16c] sm:$0xff]
  %v401 = vld [vmem:[%s0 + $0x174] sm:$0xff]
  %v402 = vld [vmem:[%s0 + $0x17c] sm:$0xff]
  %v403 = vld [vmem:[%s0 + $0x184] sm:$0xf]
  %v404 = vld [vmem:[%s0 + $0x188] sm:$0xff]
  %v405 = vld [vmem:[%s0 + $0x190] sm:$0xff]
  %v406 = vld [vmem:[%s0 + $0x198] sm:$0xff]
  %v407 = vld [vmem:[%s0 + $0x1a0] sm:$0xf]
  %v408 = vld [vmem:[%s0 + $0x1a4] sm:$0xff]
  %v409 = vld [vmem:[%s0 + $0x1ac] sm:$0xff]
  %v410 = vld [vmem:[%s0 + $0x1b4] sm:$0xff]
  %v411 = vld [vmem:[%s0 + $0x1bc] sm:$0xf]
  %v412 = vld [vmem:[%s0 + $0x1c0] sm:$0xff]
  %v413 = vld [vmem:[%s0 + $0x1c8] sm:$0xff]
  %v414 = vld [vmem:[%s0 + $0x1d0] sm:$0xff]
  %v415 = vld [vmem:[%s0 + $0x1d8] sm:$0xf]
  %v416 = vld [vmem:[%s0 + $0x1dc] sm:$0xff]
  %v417 = vld [vmem:[%s0 + $0x1e4] sm:$0xff]
  %v418 = vld [vmem:[%s0 + $0x1ec] sm:$0xff]
  %v419 = vld [vmem:[%s0 + $0x1f4] sm:$0xf]
  %v420 = vld [vmem:[%s0 + $0x1f8] sm:$0xff]
  %v421 = vld [vmem:[%s0 + $0x200] sm:$0xff]
  %v422 = vld [vmem:[%s0 + $0x208] sm:$0xff]
  %v423 = vld [vmem:[%s0 + $0x210] sm:$0xf]
  %v424 = vld [vmem:[%s0 + $0x214] sm:$0xff]
  %v425 = vld [vmem:[%s0 + $0x21c] sm:$0xff]
  %v426 = vld [vmem:[%s0 + $0x224] sm:$0xff]
  %v427 = vld [vmem:[%s0 + $0x22c] sm:$0xf]
  %v428 = vld [vmem:[%s0 + $0x230] sm:$0xff]
  %v429 = vld [vmem:[%s0 + $0x238] sm:$0xff]
  %v430 = vld [vmem:[%s0 + $0x240] sm:$0xff]
  %v431 = vld [vmem:[%s0 + $0x248] sm:$0xf]
  %v432 = vld [vmem:[%s0 + $0x24c] sm:$0xff]
  %v433 = vld [vmem:[%s0 + $0x254] sm:$0xff]
  %v434 = vld [vmem:[%s0 + $0x25c] sm:$0xff]
  %v435 = vld [vmem:[%s0 + $0x264] sm:$0xf]
  %v436 = vld [vmem:[%s0 + $0x268] sm:$0xff]
  %v437 = vld [vmem:[%s0 + $0x270] sm:$0xff]
  %v438 = vld [vmem:[%s0 + $0x278] sm:$0xff]
  %v439 = vld [vmem:[%s0 + $0x280] sm:$0xf]
  %v440 = vld [vmem:[%s0 + $0x284] sm:$0xff]
  %v441 = vld [vmem:[%s0 + $0x28c] sm:$0xff]
  %v442 = vld [vmem:[%s0 + $0x294] sm:$0xff]
  %v443 = vld [vmem:[%s0 + $0x29c] sm:$0xf]
  %v444 = vld [vmem:[%s0 + $0x2a0] sm:$0xff]
  %v445 = vld [vmem:[%s0 + $0x2a8] sm:$0xff]
  %v446 = vld [vmem:[%s0 + $0x2b0] sm:$0xff]
  %v447 = vld [vmem:[%s0 + $0x2b8] sm:$0xf]
  %v448 = vld [vmem:[%s0 + $0x2bc] sm:$0xff]
  %v449 = vld [vmem:[%s0 + $0x2c4] sm:$0xff]
  %v450 = vld [vmem:[%s0 + $0x2cc] sm:$0xff]
  %v451 = vld [vmem:[%s0 + $0x2d4] sm:$0xf]
  %v452 = vld [vmem:[%s0 + $0x2d8] sm:$0xff]
  %v453 = vld [vmem:[%s0 + $0x2e0] sm:$0xff]
  %v454 = vld [vmem:[%s0 + $0x2e8] sm:$0xff]
  %v455 = vld [vmem:[%s0 + $0x2f0] sm:$0xf]
  %v456 = vld [vmem:[%s0 + $0x2f4] sm:$0xff]
  %v457 = vld [vmem:[%s0 + $0x2fc] sm:$0xff]
  %v458 = vld [vmem:[%s0 + $0x304] sm:$0xff]
  %v459 = vld [vmem:[%s0 + $0x30c] sm:$0xf]
  %v460 = vld [vmem:[%s0 + $0x310] sm:$0xff]
  %v461 = vld [vmem:[%s0 + $0x318] sm:$0xff]
  %v462 = vld [vmem:[%s0 + $0x320] sm:$0xff]
  %v463 = vld [vmem:[%s0 + $0x328] sm:$0xf]
  %v464 = vld [vmem:[%s0 + $0x32c] sm:$0xff]
  %v465 = vld [vmem:[%s0 + $0x334] sm:$0xff]
  %v466 = vld [vmem:[%s0 + $0x33c] sm:$0xff]
  %v467 = vld [vmem:[%s0 + $0x344] sm:$0xf]
  %v468 = vld [vmem:[%s0 + $0x348] sm:$0xff]
  %v469 = vld [vmem:[%s0 + $0x350] sm:$0xff]
  %v470 = vld [vmem:[%s0 + $0x358] sm:$0xff]
  %v471 = vld [vmem:[%s0 + $0x360] sm:$0xf]
  %v472 = vld [vmem:[%s0 + $0x364] sm:$0xff]
  %v473 = vld [vmem:[%s0 + $0x36c] sm:$0xff]
  %v474 = vld [vmem:[%s0 + $0x374] sm:$0xff]
  %v475 = vld [vmem:[%s0 + $0x37c] sm:$0xf]
  %v476 = vld [vmem:[%s0 + $0x380] sm:$0xff]
  %v477 = vld [vmem:[%s0 + $0x388] sm:$0xff]
  %v478 = vld [vmem:[%s0 + $0x390] sm:$0xff]
  %v479 = vld [vmem:[%s0 + $0x398] sm:$0xf]
  %v480 = vld [vmem:[%s0 + $0x39c] sm:$0xff]
  %v481 = vld [vmem:[%s0 + $0x3a4] sm:$0xff]
  %v482 = vld [vmem:[%s0 + $0x3ac] sm:$0xff]
  %v483 = vld [vmem:[%s0 + $0x3b4] sm:$0xf]
  %v484 = vld [vmem:[%s0 + $0x3b8] sm:$0xff]
  %v485 = vld [vmem:[%s0 + $0x3c0] sm:$0xff]
  %v486 = vld [vmem:[%s0 + $0x3c8] sm:$0xff]
  %v487 = vld [vmem:[%s0 + $0x3d0] sm:$0xf]
  %v488 = vld [vmem:[%s0 + $0x3d4] sm:$0xff]
  %v489 = vld [vmem:[%s0 + $0x3dc] sm:$0xff]
  %v490 = vld [vmem:[%s0 + $0x3e4] sm:$0xff]
  %v491 = vld [vmem:[%s0 + $0x3ec] sm:$0xf]
  %v492 = vld [vmem:[%s0 + $0x3f0] sm:$0xff]
  %v493 = vld [vmem:[%s0 + $0x3f8] sm:$0xff]
  %v494 = vld [vmem:[%s0 + $0x400] sm:$0xff]
  %v495 = vld [vmem:[%s0 + $0x408] sm:$0xf]
  %v496 = vld [vmem:[%s0 + $0x40c] sm:$0xff]
  %v497 = vld [vmem:[%s0 + $0x414] sm:$0xff]
  %v498 = vld [vmem:[%s0 + $0x41c] sm:$0xff]
  %v499 = vld [vmem:[%s0 + $0x424] sm:$0xf]
  %v500 = vld [vmem:[%s0 + $0x428] sm:$0xff]
  %v501 = vld [vmem:[%s0 + $0x430] sm:$0xff]
  %v502 = vld [vmem:[%s0 + $0x438] sm:$0xff]
  %v503 = vld [vmem:[%s0 + $0x440] sm:$0xf]
  %v504 = vld [vmem:[%s0 + $0x444] sm:$0xff]
  %v505 = vld [vmem:[%s0 + $0x44c] sm:$0xff]
  %v506 = vld [vmem:[%s0 + $0x454] sm:$0xff]
  %v507 = vld [vmem:[%s0 + $0x45c] sm:$0xf]
  %v508 = vld [vmem:[%s0 + $0x460] sm:$0xff]
  %v509 = vld [vmem:[%s0 + $0x468] sm:$0xff]
  %v510 = vld [vmem:[%s0 + $0x470] sm:$0xff]
  %v511 = vld [vmem:[%s0 + $0x478] sm:$0xf]
  %v512 = vld [vmem:[%s0 + $0x47c] sm:$0xff]
  %v513 = vld [vmem:[%s0 + $0x484] sm:$0xff]
  %v514 = vld [vmem:[%s0 + $0x48c] sm:$0xff]
  %v515 = vld [vmem:[%s0 + $0x494] sm:$0xf]
  %v516 = vld [vmem:[%s0 + $0x498] sm:$0xff]
  %v517 = vld [vmem:[%s0 + $0x4a0] sm:$0xff]
  %v518 = vld [vmem:[%s0 + $0x4a8] sm:$0xff]
  %v519 = vld [vmem:[%s0 + $0x4b0] sm:$0xf]
  %v520 = vld [vmem:[%s0 + $0x4b4] sm:$0xff]
  %v521 = vld [vmem:[%s0 + $0x4bc] sm:$0xff]
  %v522 = vld [vmem:[%s0 + $0x4c4] sm:$0xff]
  %v523 = vld [vmem:[%s0 + $0x4cc] sm:$0xf]
  %v524 = vld [vmem:[%s0 + $0x4d0] sm:$0xff]
  %v525 = vld [vmem:[%s0 + $0x4d8] sm:$0xff]
  %v526 = vld [vmem:[%s0 + $0x4e0] sm:$0xff]
  %v527 = vld [vmem:[%s0 + $0x4e8] sm:$0xf]
  %v528 = vld [vmem:[%s0 + $0x4ec] sm:$0xff]
  %v529 = vld [vmem:[%s0 + $0x4f4] sm:$0xff]
  %v530 = vld [vmem:[%s0 + $0x4fc] sm:$0xff]
  %v531 = vld [vmem:[%s0 + $0x504] sm:$0xf]
  %v532 = vld [vmem:[%s0 + $0x508] sm:$0xff]
  %v533 = vld [vmem:[%s0 + $0x510] sm:$0xff]
  %v534 = vld [vmem:[%s0 + $0x518] sm:$0xff]
  %v535 = vld [vmem:[%s0 + $0x520] sm:$0xf]
  %v536 = vld [vmem:[%s0 + $0x524] sm:$0xff]
  %v537 = vld [vmem:[%s0 + $0x52c] sm:$0xff]
  %v538 = vld [vmem:[%s0 + $0x534] sm:$0xff]
  %v539 = vld [vmem:[%s0 + $0x53c] sm:$0xf]
  %v540 = vld [vmem:[%s0 + $0x540] sm:$0xff]
  %v541 = vld [vmem:[%s0 + $0x548] sm:$0xff]
  %v542 = vld [vmem:[%s0 + $0x550] sm:$0xff]
  %v543 = vld [vmem:[%s0 + $0x558] sm:$0xf]
  %v544 = vld [vmem:[%s0 + $0x55c] sm:$0xff]
  %v545 = vld [vmem:[%s0 + $0x564] sm:$0xff]
  %v546 = vld [vmem:[%s0 + $0x56c] sm:$0xff]
  %v547 = vld [vmem:[%s0 + $0x574] sm:$0xf]
  %v548 = vld [vmem:[%s0 + $0x578] sm:$0xff]
  %v549 = vld [vmem:[%s0 + $0x580] sm:$0xff]
  %v550 = vld [vmem:[%s0 + $0x588] sm:$0xff]
  %v551 = vld [vmem:[%s0 + $0x590] sm:$0xf]
  %v552 = vld [vmem:[%s0 + $0x594] sm:$0xff]
  %v553 = vld [vmem:[%s0 + $0x59c] sm:$0xff]
  %v554 = vld [vmem:[%s0 + $0x5a4] sm:$0xff]
  %v555 = vld [vmem:[%s0 + $0x5ac] sm:$0xf]
  %v556 = vld [vmem:[%s0 + $0x5b0] sm:$0xff]
  %v557 = vld [vmem:[%s0 + $0x5b8] sm:$0xff]
  %v558 = vld [vmem:[%s0 + $0x5c0] sm:$0xff]
  %v559 = vld [vmem:[%s0 + $0x5c8] sm:$0xf]
  %v560 = vld [vmem:[%s0 + $0x5cc] sm:$0xff]
  %v561 = vld [vmem:[%s0 + $0x5d4] sm:$0xff]
  %v562 = vld [vmem:[%s0 + $0x5dc] sm:$0xff]
  %v563 = vld [vmem:[%s0 + $0x5e4] sm:$0xf]
  %v564 = vld [vmem:[%s0 + $0x5e8] sm:$0xff]
  %v565 = vld [vmem:[%s0 + $0x5f0] sm:$0xff]
  %v566 = vld [vmem:[%s0 + $0x5f8] sm:$0xff]
  %v567 = vld [vmem:[%s0 + $0x600] sm:$0xf]
  %v568 = vld [vmem:[%s0 + $0x604] sm:$0xff]
  %v569 = vld [vmem:[%s0 + $0x60c] sm:$0xff]
  %v570 = vld [vmem:[%s0 + $0x614] sm:$0xff]
  %v571 = vld [vmem:[%s0 + $0x61c] sm:$0xf]
  %v572 = vld [vmem:[%s0 + $0x620] sm:$0xff]
  %v573 = vld [vmem:[%s0 + $0x628] sm:$0xff]
  %v574 = vld [vmem:[%s0 + $0x630] sm:$0xff]
  %v575 = vld [vmem:[%s0 + $0x638] sm:$0xf]
  %v576 = vld [vmem:[%s0 + $0x63c] sm:$0xff]
  %v577 = vld [vmem:[%s0 + $0x644] sm:$0xff]
  %v578 = vld [vmem:[%s0 + $0x64c] sm:$0xff]
  %v579 = vld [vmem:[%s0 + $0x654] sm:$0xf]
  %v580 = vld [vmem:[%s0 + $0x658] sm:$0xff]
  %v581 = vld [vmem:[%s0 + $0x660] sm:$0xff]
  %v582 = vld [vmem:[%s0 + $0x668] sm:$0xff]
  %v583 = vld [vmem:[%s0 + $0x670] sm:$0xf]
  %v584 = vld [vmem:[%s0 + $0x674] sm:$0xff]
  %v585 = vld [vmem:[%s0 + $0x67c] sm:$0xff]
  %v586 = vld [vmem:[%s0 + $0x684] sm:$0xff]
  %v587 = vld [vmem:[%s0 + $0x68c] sm:$0xf]
  %v588 = vld [vmem:[%s0 + $0x690] sm:$0xff]
  %v589 = vld [vmem:[%s0 + $0x698] sm:$0xff]
  %v590 = vld [vmem:[%s0 + $0x6a0] sm:$0xff]
  %v591 = vld [vmem:[%s0 + $0x6a8] sm:$0xf]
  %v592 = vld [vmem:[%s0 + $0x6ac] sm:$0xff]
  %v593 = vld [vmem:[%s0 + $0x6b4] sm:$0xff]
  %v594 = vld [vmem:[%s0 + $0x6bc] sm:$0xff]
  %v595 = vld [vmem:[%s0 + $0x6c4] sm:$0xf]
  %v596 = vld [vmem:[%s0 + $0x6c8] sm:$0xff]
  %v597 = vld [vmem:[%s0 + $0x6d0] sm:$0xff]
  %v598 = vld [vmem:[%s0 + $0x6d8] sm:$0xff]
  %v599 = vld [vmem:[%s0 + $0x6e0] sm:$0xf]
  %v600 = vld [vmem:[%s0 + $0x6e4] sm:$0xff]
  %v601 = vld [vmem:[%s0 + $0x6ec] sm:$0xff]
  %v602 = vld [vmem:[%s0 + $0x6f4] sm:$0xff]
  %v603 = vld [vmem:[%s0 + $0x6fc] sm:$0xf]
  %v604 = vld [vmem:[%s0 + $0x700] sm:$0xff]
  %v605 = vld [vmem:[%s0 + $0x708] sm:$0xff]
  %v606 = vld [vmem:[%s0 + $0x710] sm:$0xff]
  %v607 = vld [vmem:[%s0 + $0x718] sm:$0xf]
  %v608 = vld [vmem:[%s0 + $0x71c] sm:$0xff]
  %v609 = vld [vmem:[%s0 + $0x724] sm:$0xff]
  %v610 = vld [vmem:[%s0 + $0x72c] sm:$0xff]
  %v611 = vld [vmem:[%s0 + $0x734] sm:$0xf]
  %v612 = vld [vmem:[%s0 + $0x738] sm:$0xff]
  %v613 = vld [vmem:[%s0 + $0x740] sm:$0xff]
  %v614 = vld [vmem:[%s0 + $0x748] sm:$0xff]
  %v615 = vld [vmem:[%s0 + $0x750] sm:$0xf]
  %v616 = vld [vmem:[%s0 + $0x754] sm:$0xff]
  %v617 = vld [vmem:[%s0 + $0x75c] sm:$0xff]
  %v618 = vld [vmem:[%s0 + $0x764] sm:$0xff]
  %v619 = vld [vmem:[%s0 + $0x76c] sm:$0xf]
  %v620 = vld [vmem:[%s0 + $0x770] sm:$0xff]
  %v621 = vld [vmem:[%s0 + $0x778] sm:$0xff]
  %v622 = vld [vmem:[%s0 + $0x780] sm:$0xff]
  %v623 = vld [vmem:[%s0 + $0x788] sm:$0xf]
  %v624 = vld [vmem:[%s0 + $0x78c] sm:$0xff]
  %v625 = vld [vmem:[%s0 + $0x794] sm:$0xff]
  %v626 = vld [vmem:[%s0 + $0x79c] sm:$0xff]
  %v627 = vld [vmem:[%s0 + $0x7a4] sm:$0xf]
  %v628 = vld [vmem:[%s0 + $0x7a8] sm:$0xff]
  %v629 = vld [vmem:[%s0 + $0x7b0] sm:$0xff]
  %v630 = vld [vmem:[%s0 + $0x7b8] sm:$0xff]
  %v631 = vld [vmem:[%s0 + $0x7c0] sm:$0xf]
  %v632 = vld [vmem:[%s0 + $0x7c4] sm:$0xff]
  %v633 = vld [vmem:[%s0 + $0x7cc] sm:$0xff]
  %v634 = vld [vmem:[%s0 + $0x7d4] sm:$0xff]
  %v635 = vld [vmem:[%s0 + $0x7dc] sm:$0xf]
  %v636 = vld [vmem:[%s0 + $0x7e0] sm:$0xff]
  %v637 = vld [vmem:[%s0 + $0x7e8] sm:$0xff]
  %v638 = vld [vmem:[%s0 + $0x7f0] sm:$0xff]
  %v639 = vld [vmem:[%s0 + $0x7f8] sm:$0xf]
  %v640 = vld [vmem:[%s0 + $0x7fc] sm:$0xff]
  %v641 = vld [vmem:[%s0 + $0x804] sm:$0xff]
  %v642 = vld [vmem:[%s0 + $0x80c] sm:$0xff]
  %v643 = vld [vmem:[%s0 + $0x814] sm:$0xf]
  %v644 = vld [vmem:[%s0 + $0x818] sm:$0xff]
  %v645 = vld [vmem:[%s0 + $0x820] sm:$0xff]
  %v646 = vld [vmem:[%s0 + $0x828] sm:$0xff]
  %v647 = vld [vmem:[%s0 + $0x830] sm:$0xf]
  %v648 = vld [vmem:[%s0 + $0x834] sm:$0xff]
  %v649 = vld [vmem:[%s0 + $0x83c] sm:$0xff]
  %v650 = vld [vmem:[%s0 + $0x844] sm:$0xff]
  %v651 = vld [vmem:[%s0 + $0x84c] sm:$0xf]
  %v652 = vld [vmem:[%s0 + $0x850] sm:$0xff]
  %v653 = vld [vmem:[%s0 + $0x858] sm:$0xff]
  %v654 = vld [vmem:[%s0 + $0x860] sm:$0xff]
  %v655 = vld [vmem:[%s0 + $0x868] sm:$0xf]
  %v656 = vld [vmem:[%s0 + $0x86c] sm:$0xff]
  %v657 = vld [vmem:[%s0 + $0x874] sm:$0xff]
  %v658 = vld [vmem:[%s0 + $0x87c] sm:$0xff]
  %v659 = vld [vmem:[%s0 + $0x884] sm:$0xf]
  %v660 = vld [vmem:[%s0 + $0x888] sm:$0xff]
  %v661 = vld [vmem:[%s0 + $0x890] sm:$0xff]
  %v662 = vld [vmem:[%s0 + $0x898] sm:$0xff]
  %v663 = vld [vmem:[%s0 + $0x8a0] sm:$0xf]
  %v664 = vld [vmem:[%s0 + $0x8a4] sm:$0xff]
  %v665 = vld [vmem:[%s0 + $0x8ac] sm:$0xff]
  %v666 = vld [vmem:[%s0 + $0x8b4] sm:$0xff]
  %v667 = vld [vmem:[%s0 + $0x8bc] sm:$0xf]
  %v668 = vld [vmem:[%s0 + $0x8c0] sm:$0xff]
  %v669 = vld [vmem:[%s0 + $0x8c8] sm:$0xff]
  %v670 = vld [vmem:[%s0 + $0x8d0] sm:$0xff]
  %v671 = vld [vmem:[%s0 + $0x8d8] sm:$0xf]
  %v672 = vld [vmem:[%s0 + $0x8dc] sm:$0xff]
  %v673 = vld [vmem:[%s0 + $0x8e4] sm:$0xff]
  %v674 = vld [vmem:[%s0 + $0x8ec] sm:$0xff]
  %v675 = vld [vmem:[%s0 + $0x8f4] sm:$0xf]
  %v676 = vld [vmem:[%s0 + $0x8f8] sm:$0xff]
  %v677 = vld [vmem:[%s0 + $0x900] sm:$0xff]
  %v678 = vld [vmem:[%s0 + $0x908] sm:$0xff]
  %v679 = vld [vmem:[%s0 + $0x910] sm:$0xf]
  %v680 = vld [vmem:[%s0 + $0x914] sm:$0xff]
  %v681 = vld [vmem:[%s0 + $0x91c] sm:$0xff]
  %v682 = vld [vmem:[%s0 + $0x924] sm:$0xff]
  %v683 = vld [vmem:[%s0 + $0x92c] sm:$0xf]
  %v684 = vld [vmem:[%s0 + $0x930] sm:$0xff]
  %v685 = vld [vmem:[%s0 + $0x938] sm:$0xff]
  %v686 = vld [vmem:[%s0 + $0x940] sm:$0xff]
  %v687 = vld [vmem:[%s0 + $0x948] sm:$0xf]
  %v688 = vld [vmem:[%s0 + $0x94c] sm:$0xff]
  %v689 = vld [vmem:[%s0 + $0x954] sm:$0xff]
  %v690 = vld [vmem:[%s0 + $0x95c] sm:$0xff]
  %v691 = vld [vmem:[%s0 + $0x964] sm:$0xf]
  %v692 = vld [vmem:[%s0 + $0x968] sm:$0xff]
  %v693 = vld [vmem:[%s0 + $0x970] sm:$0xff]
  %v694 = vld [vmem:[%s0 + $0x978] sm:$0xff]
  %v695 = vld [vmem:[%s0 + $0x980] sm:$0xf]
  %v696 = vld [vmem:[%s0 + $0x984] sm:$0xff]
  %v697 = vld [vmem:[%s0 + $0x98c] sm:$0xff]
  %v698 = vld [vmem:[%s0 + $0x994] sm:$0xff]
  %v699 = vld [vmem:[%s0 + $0x99c] sm:$0xf]
  %v700 = vld [vmem:[%s0 + $0x9a0] sm:$0xff]
  %v701 = vld [vmem:[%s0 + $0x9a8] sm:$0xff]
  %v702 = vld [vmem:[%s0 + $0x9b0] sm:$0xff]
  %v703 = vld [vmem:[%s0 + $0x9b8] sm:$0xf]
  %v704 = vld [vmem:[%s0 + $0x9bc] sm:$0xff]
  %v705 = vld [vmem:[%s0 + $0x9c4] sm:$0xff]
  %v706 = vld [vmem:[%s0 + $0x9cc] sm:$0xff]
  %v707 = vld [vmem:[%s0 + $0x9d4] sm:$0xf]
  %v708 = vld [vmem:[%s0 + $0x9d8] sm:$0xff]
  %v709 = vld [vmem:[%s0 + $0x9e0] sm:$0xff]
  %v710 = vld [vmem:[%s0 + $0x9e8] sm:$0xff]
  %v711 = vld [vmem:[%s0 + $0x9f0] sm:$0xf]
  %v712 = vld [vmem:[%s0 + $0x9f4] sm:$0xff]
  %v713 = vld [vmem:[%s0 + $0x9fc] sm:$0xff]
  %v714 = vld [vmem:[%s0 + $0xa04] sm:$0xff]
  %v715 = vld [vmem:[%s0 + $0xa0c] sm:$0xf]
  %v716 = vld [vmem:[%s0 + $0xa10] sm:$0xff]
  %v717 = vld [vmem:[%s0 + $0xa18] sm:$0xff]
  %v718 = vld [vmem:[%s0 + $0xa20] sm:$0xff]
  %v719 = vld [vmem:[%s0 + $0xa28] sm:$0xf]
  %v720 = vld [vmem:[%s0 + $0xa2c] sm:$0xff]
  %v721 = vld [vmem:[%s0 + $0xa34] sm:$0xff]
  %v722 = vld [vmem:[%s0 + $0xa3c] sm:$0xff]
  %v723 = vld [vmem:[%s0 + $0xa44] sm:$0xf]
  %v724 = vld [vmem:[%s0 + $0xa48] sm:$0xff]
  %v725 = vld [vmem:[%s0 + $0xa50] sm:$0xff]
  %v726 = vld [vmem:[%s0 + $0xa58] sm:$0xff]
  %v727 = vld [vmem:[%s0 + $0xa60] sm:$0xf]
  %v728 = vld [vmem:[%s0 + $0xa64] sm:$0xff]
  %v729 = vld [vmem:[%s0 + $0xa6c] sm:$0xff]
  %v730 = vld [vmem:[%s0 + $0xa74] sm:$0xff]
  %v731 = vld [vmem:[%s0 + $0xa7c] sm:$0xf]
  %v732 = vld [vmem:[%s0 + $0xa80] sm:$0xff]
  %v733 = vld [vmem:[%s0 + $0xa88] sm:$0xff]
  %v734 = vld [vmem:[%s0 + $0xa90] sm:$0xff]
  %v735 = vld [vmem:[%s0 + $0xa98] sm:$0xf]
  %v736 = vld [vmem:[%s0 + $0xa9c] sm:$0xff]
  %v737 = vld [vmem:[%s0 + $0xaa4] sm:$0xff]
  %v738 = vld [vmem:[%s0 + $0xaac] sm:$0xff]
  %v739 = vld [vmem:[%s0 + $0xab4] sm:$0xf]
  %v740 = vld [vmem:[%s0 + $0xab8] sm:$0xff]
  %v741 = vld [vmem:[%s0 + $0xac0] sm:$0xff]
  %v742 = vld [vmem:[%s0 + $0xac8] sm:$0xff]
  %v743 = vld [vmem:[%s0 + $0xad0] sm:$0xf]
  %v744 = vld [vmem:[%s0 + $0xad4] sm:$0xff]
  %v745 = vld [vmem:[%s0 + $0xadc] sm:$0xff]
  %v746 = vld [vmem:[%s0 + $0xae4] sm:$0xff]
  %v747 = vld [vmem:[%s0 + $0xaec] sm:$0xf]
  %v748 = vld [vmem:[%s0 + $0xaf0] sm:$0xff]
  %v749 = vld [vmem:[%s0 + $0xaf8] sm:$0xff]
  %v750 = vld [vmem:[%s0 + $0xb00] sm:$0xff]
  %v751 = vld [vmem:[%s0 + $0xb08] sm:$0xf]
  %v752 = vld [vmem:[%s0 + $0xb0c] sm:$0xff]
  %v753 = vld [vmem:[%s0 + $0xb14] sm:$0xff]
  %v754 = vld [vmem:[%s0 + $0xb1c] sm:$0xff]
  %v755 = vld [vmem:[%s0 + $0xb24] sm:$0xf]
  %v756 = vld [vmem:[%s0 + $0xb28] sm:$0xff]
  %v757 = vld [vmem:[%s0 + $0xb30] sm:$0xff]
  %v758 = vld [vmem:[%s0 + $0xb38] sm:$0xff]
  %v759 = vld [vmem:[%s0 + $0xb40] sm:$0xf]
  %v760 = vld [vmem:[%s0 + $0xb44] sm:$0xff]
  %v761 = vld [vmem:[%s0 + $0xb4c] sm:$0xff]
  %v762 = vld [vmem:[%s0 + $0xb54] sm:$0xff]
  %v763 = vld [vmem:[%s0 + $0xb5c] sm:$0xf]
  %v764 = vld [vmem:[%s0 + $0xb60] sm:$0xff]
  %v765 = vld [vmem:[%s0 + $0xb68] sm:$0xff]
  %v766 = vld [vmem:[%s0 + $0xb70] sm:$0xff]
  %v767 = vld [vmem:[%s0 + $0xb78] sm:$0xf]
  %v768 = vld [vmem:[%s0 + $0xb7c] sm:$0xff]
  %v769 = vld [vmem:[%s0 + $0xb84] sm:$0xff]
  %v770 = vld [vmem:[%s0 + $0xb8c] sm:$0xff]
  %v771 = vld [vmem:[%s0 + $0xb94] sm:$0xf]
  %v772 = vld [vmem:[%s0 + $0xb98] sm:$0xff]
  %v773 = vld [vmem:[%s0 + $0xba0] sm:$0xff]
  %v774 = vld [vmem:[%s0 + $0xba8] sm:$0xff]
  %v775 = vld [vmem:[%s0 + $0xbb0] sm:$0xf]
  %v776 = vld [vmem:[%s0 + $0xbb4] sm:$0xff]
  %v777 = vld [vmem:[%s0 + $0xbbc] sm:$0xff]
  %v778 = vld [vmem:[%s0 + $0xbc4] sm:$0xff]
  %v779 = vld [vmem:[%s0 + $0xbcc] sm:$0xf]
  %v780 = vld [vmem:[%s0 + $0xbd0] sm:$0xff]
  %v781 = vld [vmem:[%s0 + $0xbd8] sm:$0xff]
  %v782 = vld [vmem:[%s0 + $0xbe0] sm:$0xff]
  %v783 = vld [vmem:[%s0 + $0xbe8] sm:$0xf]
  %v784 = vld [vmem:[%s0 + $0xbec] sm:$0xff]
  %v785 = vld [vmem:[%s0 + $0xbf4] sm:$0xff]
  %v786 = vld [vmem:[%s0 + $0xbfc] sm:$0xff]
  %v787 = vld [vmem:[%s0 + $0xc04] sm:$0xf]
  %v788 = vld [vmem:[%s0 + $0xc08] sm:$0xff]
  %v789 = vld [vmem:[%s0 + $0xc10] sm:$0xff]
  %v790 = vld [vmem:[%s0 + $0xc18] sm:$0xff]
  %v791 = vld [vmem:[%s0 + $0xc20] sm:$0xf]
  %v792 = vld [vmem:[%s0 + $0xc24] sm:$0xff]
  %v793 = vld [vmem:[%s0 + $0xc2c] sm:$0xff]
  %v794 = vld [vmem:[%s0 + $0xc34] sm:$0xff]
  %v795 = vld [vmem:[%s0 + $0xc3c] sm:$0xf]
  %v1244 = vunpack.c.l.b16 %v348
  %v1245 = vunpack.c.h.b16 %v348
  %v1246 = vunpack.c.l.b16 %v349
  %v1247 = vunpack.c.h.b16 %v349
  %v1248 = vunpack.c.l.b16 %v350
  %v1249 = vunpack.c.h.b16 %v350
  %v1250 = vunpack.c.l.b16 %v351
  %v1251 = vunpack.c.l.b16 %v352
  %v1252 = vunpack.c.h.b16 %v352
  %v1253 = vunpack.c.l.b16 %v353
  %v1254 = vunpack.c.h.b16 %v353
  %v1255 = vunpack.c.l.b16 %v354
  %v1256 = vunpack.c.h.b16 %v354
  %v1257 = vunpack.c.l.b16 %v355
  %v1258 = vunpack.c.l.b16 %v356
  %v1259 = vunpack.c.h.b16 %v356
  %v1260 = vunpack.c.l.b16 %v357
  %v1261 = vunpack.c.h.b16 %v357
  %v1262 = vunpack.c.l.b16 %v358
  %v1263 = vunpack.c.h.b16 %v358
  %v1264 = vunpack.c.l.b16 %v359
  %v1265 = vunpack.c.l.b16 %v360
  %v1266 = vunpack.c.h.b16 %v360
  %v1267 = vunpack.c.l.b16 %v361
  %v1268 = vunpack.c.h.b16 %v361
  %v1269 = vunpack.c.l.b16 %v362
  %v1270 = vunpack.c.h.b16 %v362
  %v1271 = vunpack.c.l.b16 %v363
  %v1272 = vunpack.c.l.b16 %v364
  %v1273 = vunpack.c.h.b16 %v364
  %v1274 = vunpack.c.l.b16 %v365
  %v1275 = vunpack.c.h.b16 %v365
  %v1276 = vunpack.c.l.b16 %v366
  %v1277 = vunpack.c.h.b16 %v366
  %v1278 = vunpack.c.l.b16 %v367
  %v1279 = vunpack.c.l.b16 %v368
  %v1280 = vunpack.c.h.b16 %v368
  %v1281 = vunpack.c.l.b16 %v369
  %v1282 = vunpack.c.h.b16 %v369
  %v1283 = vunpack.c.l.b16 %v370
  %v1284 = vunpack.c.h.b16 %v370
  %v1285 = vunpack.c.l.b16 %v371
  %v1286 = vunpack.c.l.b16 %v372
  %v1287 = vunpack.c.h.b16 %v372
  %v1288 = vunpack.c.l.b16 %v373
  %v1289 = vunpack.c.h.b16 %v373
  %v1290 = vunpack.c.l.b16 %v374
  %v1291 = vunpack.c.h.b16 %v374
  %v1292 = vunpack.c.l.b16 %v375
  %v1293 = vunpack.c.l.b16 %v376
  %v1294 = vunpack.c.h.b16 %v376
  %v1295 = vunpack.c.l.b16 %v377
  %v1296 = vunpack.c.h.b16 %v377
  %v1297 = vunpack.c.l.b16 %v378
  %v1298 = vunpack.c.h.b16 %v378
  %v1299 = vunpack.c.l.b16 %v379
  %v1300 = vunpack.c.l.b16 %v380
  %v1301 = vunpack.c.h.b16 %v380
  %v1302 = vunpack.c.l.b16 %v381
  %v1303 = vunpack.c.h.b16 %v381
  %v1304 = vunpack.c.l.b16 %v382
  %v1305 = vunpack.c.h.b16 %v382
  %v1306 = vunpack.c.l.b16 %v383
  %v1307 = vunpack.c.l.b16 %v384
  %v1308 = vunpack.c.h.b16 %v384
  %v1309 = vunpack.c.l.b16 %v385
  %v1310 = vunpack.c.h.b16 %v385
  %v1311 = vunpack.c.l.b16 %v386
  %v1312 = vunpack.c.h.b16 %v386
  %v1313 = vunpack.c.l.b16 %v387
  %v1314 = vunpack.c.l.b16 %v388
  %v1315 = vunpack.c.h.b16 %v388
  %v1316 = vunpack.c.l.b16 %v389
  %v1317 = vunpack.c.h.b16 %v389
  %v1318 = vunpack.c.l.b16 %v390
  %v1319 = vunpack.c.h.b16 %v390
  %v1320 = vunpack.c.l.b16 %v391
  %v1321 = vunpack.c.l.b16 %v392
  %v1322 = vunpack.c.h.b16 %v392
  %v1323 = vunpack.c.l.b16 %v393
  %v1324 = vunpack.c.h.b16 %v393
  %v1325 = vunpack.c.l.b16 %v394
  %v1326 = vunpack.c.h.b16 %v394
  %v1327 = vunpack.c.l.b16 %v395
  %v1328 = vunpack.c.l.b16 %v396
  %v1329 = vunpack.c.h.b16 %v396
  %v1330 = vunpack.c.l.b16 %v397
  %v1331 = vunpack.c.h.b16 %v397
  %v1332 = vunpack.c.l.b16 %v398
  %v1333 = vunpack.c.h.b16 %v398
  %v1334 = vunpack.c.l.b16 %v399
  %v1335 = vunpack.c.l.b16 %v400
  %v1336 = vunpack.c.h.b16 %v400
  %v1337 = vunpack.c.l.b16 %v401
  %v1338 = vunpack.c.h.b16 %v401
  %v1339 = vunpack.c.l.b16 %v402
  %v1340 = vunpack.c.h.b16 %v402
  %v1341 = vunpack.c.l.b16 %v403
  %v1342 = vunpack.c.l.b16 %v404
  %v1343 = vunpack.c.h.b16 %v404
  %v1344 = vunpack.c.l.b16 %v405
  %v1345 = vunpack.c.h.b16 %v405
  %v1346 = vunpack.c.l.b16 %v406
  %v1347 = vunpack.c.h.b16 %v406
  %v1348 = vunpack.c.l.b16 %v407
  %v1349 = vunpack.c.l.b16 %v408
  %v1350 = vunpack.c.h.b16 %v408
  %v1351 = vunpack.c.l.b16 %v409
  %v1352 = vunpack.c.h.b16 %v409
  %v1353 = vunpack.c.l.b16 %v410
  %v1354 = vunpack.c.h.b16 %v410
  %v1355 = vunpack.c.l.b16 %v411
  %v1356 = vunpack.c.l.b16 %v412
  %v1357 = vunpack.c.h.b16 %v412
  %v1358 = vunpack.c.l.b16 %v413
  %v1359 = vunpack.c.h.b16 %v413
  %v1360 = vunpack.c.l.b16 %v414
  %v1361 = vunpack.c.h.b16 %v414
  %v1362 = vunpack.c.l.b16 %v415
  %v1363 = vunpack.c.l.b16 %v416
  %v1364 = vunpack.c.h.b16 %v416
  %v1365 = vunpack.c.l.b16 %v417
  %v1366 = vunpack.c.h.b16 %v417
  %v1367 = vunpack.c.l.b16 %v418
  %v1368 = vunpack.c.h.b16 %v418
  %v1369 = vunpack.c.l.b16 %v419
  %v1370 = vunpack.c.l.b16 %v420
  %v1371 = vunpack.c.h.b16 %v420
  %v1372 = vunpack.c.l.b16 %v421
  %v1373 = vunpack.c.h.b16 %v421
  %v1374 = vunpack.c.l.b16 %v422
  %v1375 = vunpack.c.h.b16 %v422
  %v1376 = vunpack.c.l.b16 %v423
  %v1377 = vunpack.c.l.b16 %v424
  %v1378 = vunpack.c.h.b16 %v424
  %v1379 = vunpack.c.l.b16 %v425
  %v1380 = vunpack.c.h.b16 %v425
  %v1381 = vunpack.c.l.b16 %v426
  %v1382 = vunpack.c.h.b16 %v426
  %v1383 = vunpack.c.l.b16 %v427
  %v1384 = vunpack.c.l.b16 %v428
  %v1385 = vunpack.c.h.b16 %v428
  %v1386 = vunpack.c.l.b16 %v429
  %v1387 = vunpack.c.h.b16 %v429
  %v1388 = vunpack.c.l.b16 %v430
  %v1389 = vunpack.c.h.b16 %v430
  %v1390 = vunpack.c.l.b16 %v431
  %v1391 = vunpack.c.l.b16 %v432
  %v1392 = vunpack.c.h.b16 %v432
  %v1393 = vunpack.c.l.b16 %v433
  %v1394 = vunpack.c.h.b16 %v433
  %v1395 = vunpack.c.l.b16 %v434
  %v1396 = vunpack.c.h.b16 %v434
  %v1397 = vunpack.c.l.b16 %v435
  %v1398 = vunpack.c.l.b16 %v436
  %v1399 = vunpack.c.h.b16 %v436
  %v1400 = vunpack.c.l.b16 %v437
  %v1401 = vunpack.c.h.b16 %v437
  %v1402 = vunpack.c.l.b16 %v438
  %v1403 = vunpack.c.h.b16 %v438
  %v1404 = vunpack.c.l.b16 %v439
  %v1405 = vunpack.c.l.b16 %v440
  %v1406 = vunpack.c.h.b16 %v440
  %v1407 = vunpack.c.l.b16 %v441
  %v1408 = vunpack.c.h.b16 %v441
  %v1409 = vunpack.c.l.b16 %v442
  %v1410 = vunpack.c.h.b16 %v442
  %v1411 = vunpack.c.l.b16 %v443
  %v1412 = vunpack.c.l.b16 %v444
  %v1413 = vunpack.c.h.b16 %v444
  %v1414 = vunpack.c.l.b16 %v445
  %v1415 = vunpack.c.h.b16 %v445
  %v1416 = vunpack.c.l.b16 %v446
  %v1417 = vunpack.c.h.b16 %v446
  %v1418 = vunpack.c.l.b16 %v447
  %v1419 = vunpack.c.l.b16 %v448
  %v1420 = vunpack.c.h.b16 %v448
  %v1421 = vunpack.c.l.b16 %v449
  %v1422 = vunpack.c.h.b16 %v449
  %v1423 = vunpack.c.l.b16 %v450
  %v1424 = vunpack.c.h.b16 %v450
  %v1425 = vunpack.c.l.b16 %v451
  %v1426 = vunpack.c.l.b16 %v452
  %v1427 = vunpack.c.h.b16 %v452
  %v1428 = vunpack.c.l.b16 %v453
  %v1429 = vunpack.c.h.b16 %v453
  %v1430 = vunpack.c.l.b16 %v454
  %v1431 = vunpack.c.h.b16 %v454
  %v1432 = vunpack.c.l.b16 %v455
  %v1433 = vunpack.c.l.b16 %v456
  %v1434 = vunpack.c.h.b16 %v456
  %v1435 = vunpack.c.l.b16 %v457
  %v1436 = vunpack.c.h.b16 %v457
  %v1437 = vunpack.c.l.b16 %v458
  %v1438 = vunpack.c.h.b16 %v458
  %v1439 = vunpack.c.l.b16 %v459
  %v1440 = vunpack.c.l.b16 %v460
  %v1441 = vunpack.c.h.b16 %v460
  %v1442 = vunpack.c.l.b16 %v461
  %v1443 = vunpack.c.h.b16 %v461
  %v1444 = vunpack.c.l.b16 %v462
  %v1445 = vunpack.c.h.b16 %v462
  %v1446 = vunpack.c.l.b16 %v463
  %v1447 = vunpack.c.l.b16 %v464
  %v1448 = vunpack.c.h.b16 %v464
  %v1449 = vunpack.c.l.b16 %v465
  %v1450 = vunpack.c.h.b16 %v465
  %v1451 = vunpack.c.l.b16 %v466
  %v1452 = vunpack.c.h.b16 %v466
  %v1453 = vunpack.c.l.b16 %v467
  %v1454 = vunpack.c.l.b16 %v468
  %v1455 = vunpack.c.h.b16 %v468
  %v1456 = vunpack.c.l.b16 %v469
  %v1457 = vunpack.c.h.b16 %v469
  %v1458 = vunpack.c.l.b16 %v470
  %v1459 = vunpack.c.h.b16 %v470
  %v1460 = vunpack.c.l.b16 %v471
  %v1461 = vunpack.c.l.b16 %v472
  %v1462 = vunpack.c.h.b16 %v472
  %v1463 = vunpack.c.l.b16 %v473
  %v1464 = vunpack.c.h.b16 %v473
  %v1465 = vunpack.c.l.b16 %v474
  %v1466 = vunpack.c.h.b16 %v474
  %v1467 = vunpack.c.l.b16 %v475
  %v1468 = vunpack.c.l.b16 %v476
  %v1469 = vunpack.c.h.b16 %v476
  %v1470 = vunpack.c.l.b16 %v477
  %v1471 = vunpack.c.h.b16 %v477
  %v1472 = vunpack.c.l.b16 %v478
  %v1473 = vunpack.c.h.b16 %v478
  %v1474 = vunpack.c.l.b16 %v479
  %v1475 = vunpack.c.l.b16 %v480
  %v1476 = vunpack.c.h.b16 %v480
  %v1477 = vunpack.c.l.b16 %v481
  %v1478 = vunpack.c.h.b16 %v481
  %v1479 = vunpack.c.l.b16 %v482
  %v1480 = vunpack.c.h.b16 %v482
  %v1481 = vunpack.c.l.b16 %v483
  %v1482 = vunpack.c.l.b16 %v484
  %v1483 = vunpack.c.h.b16 %v484
  %v1484 = vunpack.c.l.b16 %v485
  %v1485 = vunpack.c.h.b16 %v485
  %v1486 = vunpack.c.l.b16 %v486
  %v1487 = vunpack.c.h.b16 %v486
  %v1488 = vunpack.c.l.b16 %v487
  %v1489 = vunpack.c.l.b16 %v488
  %v1490 = vunpack.c.h.b16 %v488
  %v1491 = vunpack.c.l.b16 %v489
  %v1492 = vunpack.c.h.b16 %v489
  %v1493 = vunpack.c.l.b16 %v490
  %v1494 = vunpack.c.h.b16 %v490
  %v1495 = vunpack.c.l.b16 %v491
  %v1496 = vunpack.c.l.b16 %v492
  %v1497 = vunpack.c.h.b16 %v492
  %v1498 = vunpack.c.l.b16 %v493
  %v1499 = vunpack.c.h.b16 %v493
  %v1500 = vunpack.c.l.b16 %v494
  %v1501 = vunpack.c.h.b16 %v494
  %v1502 = vunpack.c.l.b16 %v495
  %v1503 = vunpack.c.l.b16 %v496
  %v1504 = vunpack.c.h.b16 %v496
  %v1505 = vunpack.c.l.b16 %v497
  %v1506 = vunpack.c.h.b16 %v497
  %v1507 = vunpack.c.l.b16 %v498
  %v1508 = vunpack.c.h.b16 %v498
  %v1509 = vunpack.c.l.b16 %v499
  %v1510 = vunpack.c.l.b16 %v500
  %v1511 = vunpack.c.h.b16 %v500
  %v1512 = vunpack.c.l.b16 %v501
  %v1513 = vunpack.c.h.b16 %v501
  %v1514 = vunpack.c.l.b16 %v502
  %v1515 = vunpack.c.h.b16 %v502
  %v1516 = vunpack.c.l.b16 %v503
  %v1517 = vunpack.c.l.b16 %v504
  %v1518 = vunpack.c.h.b16 %v504
  %v1519 = vunpack.c.l.b16 %v505
  %v1520 = vunpack.c.h.b16 %v505
  %v1521 = vunpack.c.l.b16 %v506
  %v1522 = vunpack.c.h.b16 %v506
  %v1523 = vunpack.c.l.b16 %v507
  %v1524 = vunpack.c.l.b16 %v508
  %v1525 = vunpack.c.h.b16 %v508
  %v1526 = vunpack.c.l.b16 %v509
  %v1527 = vunpack.c.h.b16 %v509
  %v1528 = vunpack.c.l.b16 %v510
  %v1529 = vunpack.c.h.b16 %v510
  %v1530 = vunpack.c.l.b16 %v511
  %v1531 = vunpack.c.l.b16 %v512
  %v1532 = vunpack.c.h.b16 %v512
  %v1533 = vunpack.c.l.b16 %v513
  %v1534 = vunpack.c.h.b16 %v513
  %v1535 = vunpack.c.l.b16 %v514
  %v1536 = vunpack.c.h.b16 %v514
  %v1537 = vunpack.c.l.b16 %v515
  %v1538 = vunpack.c.l.b16 %v516
  %v1539 = vunpack.c.h.b16 %v516
  %v1540 = vunpack.c.l.b16 %v517
  %v1541 = vunpack.c.h.b16 %v517
  %v1542 = vunpack.c.l.b16 %v518
  %v1543 = vunpack.c.h.b16 %v518
  %v1544 = vunpack.c.l.b16 %v519
  %v1545 = vunpack.c.l.b16 %v520
  %v1546 = vunpack.c.h.b16 %v520
  %v1547 = vunpack.c.l.b16 %v521
  %v1548 = vunpack.c.h.b16 %v521
  %v1549 = vunpack.c.l.b16 %v522
  %v1550 = vunpack.c.h.b16 %v522
  %v1551 = vunpack.c.l.b16 %v523
  %v1552 = vunpack.c.l.b16 %v524
  %v1553 = vunpack.c.h.b16 %v524
  %v1554 = vunpack.c.l.b16 %v525
  %v1555 = vunpack.c.h.b16 %v525
  %v1556 = vunpack.c.l.b16 %v526
  %v1557 = vunpack.c.h.b16 %v526
  %v1558 = vunpack.c.l.b16 %v527
  %v1559 = vunpack.c.l.b16 %v528
  %v1560 = vunpack.c.h.b16 %v528
  %v1561 = vunpack.c.l.b16 %v529
  %v1562 = vunpack.c.h.b16 %v529
  %v1563 = vunpack.c.l.b16 %v530
  %v1564 = vunpack.c.h.b16 %v530
  %v1565 = vunpack.c.l.b16 %v531
  %v1566 = vunpack.c.l.b16 %v532
  %v1567 = vunpack.c.h.b16 %v532
  %v1568 = vunpack.c.l.b16 %v533
  %v1569 = vunpack.c.h.b16 %v533
  %v1570 = vunpack.c.l.b16 %v534
  %v1571 = vunpack.c.h.b16 %v534
  %v1572 = vunpack.c.l.b16 %v535
  %v1573 = vunpack.c.l.b16 %v536
  %v1574 = vunpack.c.h.b16 %v536
  %v1575 = vunpack.c.l.b16 %v537
  %v1576 = vunpack.c.h.b16 %v537
  %v1577 = vunpack.c.l.b16 %v538
  %v1578 = vunpack.c.h.b16 %v538
  %v1579 = vunpack.c.l.b16 %v539
  %v1580 = vunpack.c.l.b16 %v540
  %v1581 = vunpack.c.h.b16 %v540
  %v1582 = vunpack.c.l.b16 %v541
  %v1583 = vunpack.c.h.b16 %v541
  %v1584 = vunpack.c.l.b16 %v542
  %v1585 = vunpack.c.h.b16 %v542
  %v1586 = vunpack.c.l.b16 %v543
  %v1587 = vunpack.c.l.b16 %v544
  %v1588 = vunpack.c.h.b16 %v544
  %v1589 = vunpack.c.l.b16 %v545
  %v1590 = vunpack.c.h.b16 %v545
  %v1591 = vunpack.c.l.b16 %v546
  %v1592 = vunpack.c.h.b16 %v546
  %v1593 = vunpack.c.l.b16 %v547
  %v1594 = vunpack.c.l.b16 %v548
  %v1595 = vunpack.c.h.b16 %v548
  %v1596 = vunpack.c.l.b16 %v549
  %v1597 = vunpack.c.h.b16 %v549
  %v1598 = vunpack.c.l.b16 %v550
  %v1599 = vunpack.c.h.b16 %v550
  %v1600 = vunpack.c.l.b16 %v551
  %v1601 = vunpack.c.l.b16 %v552
  %v1602 = vunpack.c.h.b16 %v552
  %v1603 = vunpack.c.l.b16 %v553
  %v1604 = vunpack.c.h.b16 %v553
  %v1605 = vunpack.c.l.b16 %v554
  %v1606 = vunpack.c.h.b16 %v554
  %v1607 = vunpack.c.l.b16 %v555
  %v1608 = vunpack.c.l.b16 %v556
  %v1609 = vunpack.c.h.b16 %v556
  %v1610 = vunpack.c.l.b16 %v557
  %v1611 = vunpack.c.h.b16 %v557
  %v1612 = vunpack.c.l.b16 %v558
  %v1613 = vunpack.c.h.b16 %v558
  %v1614 = vunpack.c.l.b16 %v559
  %v1615 = vunpack.c.l.b16 %v560
  %v1616 = vunpack.c.h.b16 %v560
  %v1617 = vunpack.c.l.b16 %v561
  %v1618 = vunpack.c.h.b16 %v561
  %v1619 = vunpack.c.l.b16 %v562
  %v1620 = vunpack.c.h.b16 %v562
  %v1621 = vunpack.c.l.b16 %v563
  %v1622 = vunpack.c.l.b16 %v564
  %v1623 = vunpack.c.h.b16 %v564
  %v1624 = vunpack.c.l.b16 %v565
  %v1625 = vunpack.c.h.b16 %v565
  %v1626 = vunpack.c.l.b16 %v566
  %v1627 = vunpack.c.h.b16 %v566
  %v1628 = vunpack.c.l.b16 %v567
  %v1629 = vunpack.c.l.b16 %v568
  %v1630 = vunpack.c.h.b16 %v568
  %v1631 = vunpack.c.l.b16 %v569
  %v1632 = vunpack.c.h.b16 %v569
  %v1633 = vunpack.c.l.b16 %v570
  %v1634 = vunpack.c.h.b16 %v570
  %v1635 = vunpack.c.l.b16 %v571
  %v1636 = vunpack.c.l.b16 %v572
  %v1637 = vunpack.c.h.b16 %v572
  %v1638 = vunpack.c.l.b16 %v573
  %v1639 = vunpack.c.h.b16 %v573
  %v1640 = vunpack.c.l.b16 %v574
  %v1641 = vunpack.c.h.b16 %v574
  %v1642 = vunpack.c.l.b16 %v575
  %v1643 = vunpack.c.l.b16 %v576
  %v1644 = vunpack.c.h.b16 %v576
  %v1645 = vunpack.c.l.b16 %v577
  %v1646 = vunpack.c.h.b16 %v577
  %v1647 = vunpack.c.l.b16 %v578
  %v1648 = vunpack.c.h.b16 %v578
  %v1649 = vunpack.c.l.b16 %v579
  %v1650 = vunpack.c.l.b16 %v580
  %v1651 = vunpack.c.h.b16 %v580
  %v1652 = vunpack.c.l.b16 %v581
  %v1653 = vunpack.c.h.b16 %v581
  %v1654 = vunpack.c.l.b16 %v582
  %v1655 = vunpack.c.h.b16 %v582
  %v1656 = vunpack.c.l.b16 %v583
  %v1657 = vunpack.c.l.b16 %v584
  %v1658 = vunpack.c.h.b16 %v584
  %v1659 = vunpack.c.l.b16 %v585
  %v1660 = vunpack.c.h.b16 %v585
  %v1661 = vunpack.c.l.b16 %v586
  %v1662 = vunpack.c.h.b16 %v586
  %v1663 = vunpack.c.l.b16 %v587
  %v1664 = vunpack.c.l.b16 %v588
  %v1665 = vunpack.c.h.b16 %v588
  %v1666 = vunpack.c.l.b16 %v589
  %v1667 = vunpack.c.h.b16 %v589
  %v1668 = vunpack.c.l.b16 %v590
  %v1669 = vunpack.c.h.b16 %v590
  %v1670 = vunpack.c.l.b16 %v591
  %v1671 = vunpack.c.l.b16 %v592
  %v1672 = vunpack.c.h.b16 %v592
  %v1673 = vunpack.c.l.b16 %v593
  %v1674 = vunpack.c.h.b16 %v593
  %v1675 = vunpack.c.l.b16 %v594
  %v1676 = vunpack.c.h.b16 %v594
  %v1677 = vunpack.c.l.b16 %v595
  %v1678 = vunpack.c.l.b16 %v596
  %v1679 = vunpack.c.h.b16 %v596
  %v1680 = vunpack.c.l.b16 %v597
  %v1681 = vunpack.c.h.b16 %v597
  %v1682 = vunpack.c.l.b16 %v598
  %v1683 = vunpack.c.h.b16 %v598
  %v1684 = vunpack.c.l.b16 %v599
  %v1685 = vunpack.c.l.b16 %v600
  %v1686 = vunpack.c.h.b16 %v600
  %v1687 = vunpack.c.l.b16 %v601
  %v1688 = vunpack.c.h.b16 %v601
  %v1689 = vunpack.c.l.b16 %v602
  %v1690 = vunpack.c.h.b16 %v602
  %v1691 = vunpack.c.l.b16 %v603
  %v1692 = vunpack.c.l.b16 %v604
  %v1693 = vunpack.c.h.b16 %v604
  %v1694 = vunpack.c.l.b16 %v605
  %v1695 = vunpack.c.h.b16 %v605
  %v1696 = vunpack.c.l.b16 %v606
  %v1697 = vunpack.c.h.b16 %v606
  %v1698 = vunpack.c.l.b16 %v607
  %v1699 = vunpack.c.l.b16 %v608
  %v1700 = vunpack.c.h.b16 %v608
  %v1701 = vunpack.c.l.b16 %v609
  %v1702 = vunpack.c.h.b16 %v609
  %v1703 = vunpack.c.l.b16 %v610
  %v1704 = vunpack.c.h.b16 %v610
  %v1705 = vunpack.c.l.b16 %v611
  %v1706 = vunpack.c.l.b16 %v612
  %v1707 = vunpack.c.h.b16 %v612
  %v1708 = vunpack.c.l.b16 %v613
  %v1709 = vunpack.c.h.b16 %v613
  %v1710 = vunpack.c.l.b16 %v614
  %v1711 = vunpack.c.h.b16 %v614
  %v1712 = vunpack.c.l.b16 %v615
  %v1713 = vunpack.c.l.b16 %v616
  %v1714 = vunpack.c.h.b16 %v616
  %v1715 = vunpack.c.l.b16 %v617
  %v1716 = vunpack.c.h.b16 %v617
  %v1717 = vunpack.c.l.b16 %v618
  %v1718 = vunpack.c.h.b16 %v618
  %v1719 = vunpack.c.l.b16 %v619
  %v1720 = vunpack.c.l.b16 %v620
  %v1721 = vunpack.c.h.b16 %v620
  %v1722 = vunpack.c.l.b16 %v621
  %v1723 = vunpack.c.h.b16 %v621
  %v1724 = vunpack.c.l.b16 %v622
  %v1725 = vunpack.c.h.b16 %v622
  %v1726 = vunpack.c.l.b16 %v623
  %v1727 = vunpack.c.l.b16 %v624
  %v1728 = vunpack.c.h.b16 %v624
  %v1729 = vunpack.c.l.b16 %v625
  %v1730 = vunpack.c.h.b16 %v625
  %v1731 = vunpack.c.l.b16 %v626
  %v1732 = vunpack.c.h.b16 %v626
  %v1733 = vunpack.c.l.b16 %v627
  %v1734 = vunpack.c.l.b16 %v628
  %v1735 = vunpack.c.h.b16 %v628
  %v1736 = vunpack.c.l.b16 %v629
  %v1737 = vunpack.c.h.b16 %v629
  %v1738 = vunpack.c.l.b16 %v630
  %v1739 = vunpack.c.h.b16 %v630
  %v1740 = vunpack.c.l.b16 %v631
  %v1741 = vunpack.c.l.b16 %v632
  %v1742 = vunpack.c.h.b16 %v632
  %v1743 = vunpack.c.l.b16 %v633
  %v1744 = vunpack.c.h.b16 %v633
  %v1745 = vunpack.c.l.b16 %v634
  %v1746 = vunpack.c.h.b16 %v634
  %v1747 = vunpack.c.l.b16 %v635
  %v1748 = vunpack.c.l.b16 %v636
  %v1749 = vunpack.c.h.b16 %v636
  %v1750 = vunpack.c.l.b16 %v637
  %v1751 = vunpack.c.h.b16 %v637
  %v1752 = vunpack.c.l.b16 %v638
  %v1753 = vunpack.c.h.b16 %v638
  %v1754 = vunpack.c.l.b16 %v639
  %v1755 = vunpack.c.l.b16 %v640
  %v1756 = vunpack.c.h.b16 %v640
  %v1757 = vunpack.c.l.b16 %v641
  %v1758 = vunpack.c.h.b16 %v641
  %v1759 = vunpack.c.l.b16 %v642
  %v1760 = vunpack.c.h.b16 %v642
  %v1761 = vunpack.c.l.b16 %v643
  %v1762 = vunpack.c.l.b16 %v644
  %v1763 = vunpack.c.h.b16 %v644
  %v1764 = vunpack.c.l.b16 %v645
  %v1765 = vunpack.c.h.b16 %v645
  %v1766 = vunpack.c.l.b16 %v646
  %v1767 = vunpack.c.h.b16 %v646
  %v1768 = vunpack.c.l.b16 %v647
  %v1769 = vunpack.c.l.b16 %v648
  %v1770 = vunpack.c.h.b16 %v648
  %v1771 = vunpack.c.l.b16 %v649
  %v1772 = vunpack.c.h.b16 %v649
  %v1773 = vunpack.c.l.b16 %v650
  %v1774 = vunpack.c.h.b16 %v650
  %v1775 = vunpack.c.l.b16 %v651
  %v1776 = vunpack.c.l.b16 %v652
  %v1777 = vunpack.c.h.b16 %v652
  %v1778 = vunpack.c.l.b16 %v653
  %v1779 = vunpack.c.h.b16 %v653
  %v1780 = vunpack.c.l.b16 %v654
  %v1781 = vunpack.c.h.b16 %v654
  %v1782 = vunpack.c.l.b16 %v655
  %v1783 = vunpack.c.l.b16 %v656
  %v1784 = vunpack.c.h.b16 %v656
  %v1785 = vunpack.c.l.b16 %v657
  %v1786 = vunpack.c.h.b16 %v657
  %v1787 = vunpack.c.l.b16 %v658
  %v1788 = vunpack.c.h.b16 %v658
  %v1789 = vunpack.c.l.b16 %v659
  %v1790 = vunpack.c.l.b16 %v660
  %v1791 = vunpack.c.h.b16 %v660
  %v1792 = vunpack.c.l.b16 %v661
  %v1793 = vunpack.c.h.b16 %v661
  %v1794 = vunpack.c.l.b16 %v662
  %v1795 = vunpack.c.h.b16 %v662
  %v1796 = vunpack.c.l.b16 %v663
  %v1797 = vunpack.c.l.b16 %v664
  %v1798 = vunpack.c.h.b16 %v664
  %v1799 = vunpack.c.l.b16 %v665
  %v1800 = vunpack.c.h.b16 %v665
  %v1801 = vunpack.c.l.b16 %v666
  %v1802 = vunpack.c.h.b16 %v666
  %v1803 = vunpack.c.l.b16 %v667
  %v1804 = vunpack.c.l.b16 %v668
  %v1805 = vunpack.c.h.b16 %v668
  %v1806 = vunpack.c.l.b16 %v669
  %v1807 = vunpack.c.h.b16 %v669
  %v1808 = vunpack.c.l.b16 %v670
  %v1809 = vunpack.c.h.b16 %v670
  %v1810 = vunpack.c.l.b16 %v671
  %v1811 = vunpack.c.l.b16 %v672
  %v1812 = vunpack.c.h.b16 %v672
  %v1813 = vunpack.c.l.b16 %v673
  %v1814 = vunpack.c.h.b16 %v673
  %v1815 = vunpack.c.l.b16 %v674
  %v1816 = vunpack.c.h.b16 %v674
  %v1817 = vunpack.c.l.b16 %v675
  %v1818 = vunpack.c.l.b16 %v676
  %v1819 = vunpack.c.h.b16 %v676
  %v1820 = vunpack.c.l.b16 %v677
  %v1821 = vunpack.c.h.b16 %v677
  %v1822 = vunpack.c.l.b16 %v678
  %v1823 = vunpack.c.h.b16 %v678
  %v1824 = vunpack.c.l.b16 %v679
  %v1825 = vunpack.c.l.b16 %v680
  %v1826 = vunpack.c.h.b16 %v680
  %v1827 = vunpack.c.l.b16 %v681
  %v1828 = vunpack.c.h.b16 %v681
  %v1829 = vunpack.c.l.b16 %v682
  %v1830 = vunpack.c.h.b16 %v682
  %v1831 = vunpack.c.l.b16 %v683
  %v1832 = vunpack.c.l.b16 %v684
  %v1833 = vunpack.c.h.b16 %v684
  %v1834 = vunpack.c.l.b16 %v685
  %v1835 = vunpack.c.h.b16 %v685
  %v1836 = vunpack.c.l.b16 %v686
  %v1837 = vunpack.c.h.b16 %v686
  %v1838 = vunpack.c.l.b16 %v687
  %v1839 = vunpack.c.l.b16 %v688
  %v1840 = vunpack.c.h.b16 %v688
  %v1841 = vunpack.c.l.b16 %v689
  %v1842 = vunpack.c.h.b16 %v689
  %v1843 = vunpack.c.l.b16 %v690
  %v1844 = vunpack.c.h.b16 %v690
  %v1845 = vunpack.c.l.b16 %v691
  %v1846 = vunpack.c.l.b16 %v692
  %v1847 = vunpack.c.h.b16 %v692
  %v1848 = vunpack.c.l.b16 %v693
  %v1849 = vunpack.c.h.b16 %v693
  %v1850 = vunpack.c.l.b16 %v694
  %v1851 = vunpack.c.h.b16 %v694
  %v1852 = vunpack.c.l.b16 %v695
  %v1853 = vunpack.c.l.b16 %v696
  %v1854 = vunpack.c.h.b16 %v696
  %v1855 = vunpack.c.l.b16 %v697
  %v1856 = vunpack.c.h.b16 %v697
  %v1857 = vunpack.c.l.b16 %v698
  %v1858 = vunpack.c.h.b16 %v698
  %v1859 = vunpack.c.l.b16 %v699
  %v1860 = vunpack.c.l.b16 %v700
  %v1861 = vunpack.c.h.b16 %v700
  %v1862 = vunpack.c.l.b16 %v701
  %v1863 = vunpack.c.h.b16 %v701
  %v1864 = vunpack.c.l.b16 %v702
  %v1865 = vunpack.c.h.b16 %v702
  %v1866 = vunpack.c.l.b16 %v703
  %v1867 = vunpack.c.l.b16 %v704
  %v1868 = vunpack.c.h.b16 %v704
  %v1869 = vunpack.c.l.b16 %v705
  %v1870 = vunpack.c.h.b16 %v705
  %v1871 = vunpack.c.l.b16 %v706
  %v1872 = vunpack.c.h.b16 %v706
  %v1873 = vunpack.c.l.b16 %v707
  %v1874 = vunpack.c.l.b16 %v708
  %v1875 = vunpack.c.h.b16 %v708
  %v1876 = vunpack.c.l.b16 %v709
  %v1877 = vunpack.c.h.b16 %v709
  %v1878 = vunpack.c.l.b16 %v710
  %v1879 = vunpack.c.h.b16 %v710
  %v1880 = vunpack.c.l.b16 %v711
  %v1881 = vunpack.c.l.b16 %v712
  %v1882 = vunpack.c.h.b16 %v712
  %v1883 = vunpack.c.l.b16 %v713
  %v1884 = vunpack.c.h.b16 %v713
  %v1885 = vunpack.c.l.b16 %v714
  %v1886 = vunpack.c.h.b16 %v714
  %v1887 = vunpack.c.l.b16 %v715
  %v1888 = vunpack.c.l.b16 %v716
  %v1889 = vunpack.c.h.b16 %v716
  %v1890 = vunpack.c.l.b16 %v717
  %v1891 = vunpack.c.h.b16 %v717
  %v1892 = vunpack.c.l.b16 %v718
  %v1893 = vunpack.c.h.b16 %v718
  %v1894 = vunpack.c.l.b16 %v719
  %v1895 = vunpack.c.l.b16 %v720
  %v1896 = vunpack.c.h.b16 %v720
  %v1897 = vunpack.c.l.b16 %v721
  %v1898 = vunpack.c.h.b16 %v721
  %v1899 = vunpack.c.l.b16 %v722
  %v1900 = vunpack.c.h.b16 %v722
  %v1901 = vunpack.c.l.b16 %v723
  %v1902 = vunpack.c.l.b16 %v724
  %v1903 = vunpack.c.h.b16 %v724
  %v1904 = vunpack.c.l.b16 %v725
  %v1905 = vunpack.c.h.b16 %v725
  %v1906 = vunpack.c.l.b16 %v726
  %v1907 = vunpack.c.h.b16 %v726
  %v1908 = vunpack.c.l.b16 %v727
  %v1909 = vunpack.c.l.b16 %v728
  %v1910 = vunpack.c.h.b16 %v728
  %v1911 = vunpack.c.l.b16 %v729
  %v1912 = vunpack.c.h.b16 %v729
  %v1913 = vunpack.c.l.b16 %v730
  %v1914 = vunpack.c.h.b16 %v730
  %v1915 = vunpack.c.l.b16 %v731
  %v1916 = vunpack.c.l.b16 %v732
  %v1917 = vunpack.c.h.b16 %v732
  %v1918 = vunpack.c.l.b16 %v733
  %v1919 = vunpack.c.h.b16 %v733
  %v1920 = vunpack.c.l.b16 %v734
  %v1921 = vunpack.c.h.b16 %v734
  %v1922 = vunpack.c.l.b16 %v735
  %v1923 = vunpack.c.l.b16 %v736
  %v1924 = vunpack.c.h.b16 %v736
  %v1925 = vunpack.c.l.b16 %v737
  %v1926 = vunpack.c.h.b16 %v737
  %v1927 = vunpack.c.l.b16 %v738
  %v1928 = vunpack.c.h.b16 %v738
  %v1929 = vunpack.c.l.b16 %v739
  %v1930 = vunpack.c.l.b16 %v740
  %v1931 = vunpack.c.h.b16 %v740
  %v1932 = vunpack.c.l.b16 %v741
  %v1933 = vunpack.c.h.b16 %v741
  %v1934 = vunpack.c.l.b16 %v742
  %v1935 = vunpack.c.h.b16 %v742
  %v1936 = vunpack.c.l.b16 %v743
  %v1937 = vunpack.c.l.b16 %v744
  %v1938 = vunpack.c.h.b16 %v744
  %v1939 = vunpack.c.l.b16 %v745
  %v1940 = vunpack.c.h.b16 %v745
  %v1941 = vunpack.c.l.b16 %v746
  %v1942 = vunpack.c.h.b16 %v746
  %v1943 = vunpack.c.l.b16 %v747
  %v1944 = vunpack.c.l.b16 %v748
  %v1945 = vunpack.c.h.b16 %v748
  %v1946 = vunpack.c.l.b16 %v749
  %v1947 = vunpack.c.h.b16 %v749
  %v1948 = vunpack.c.l.b16 %v750
  %v1949 = vunpack.c.h.b16 %v750
  %v1950 = vunpack.c.l.b16 %v751
  %v1951 = vunpack.c.l.b16 %v752
  %v1952 = vunpack.c.h.b16 %v752
  %v1953 = vunpack.c.l.b16 %v753
  %v1954 = vunpack.c.h.b16 %v753
  %v1955 = vunpack.c.l.b16 %v754
  %v1956 = vunpack.c.h.b16 %v754
  %v1957 = vunpack.c.l.b16 %v755
  %v1958 = vunpack.c.l.b16 %v756
  %v1959 = vunpack.c.h.b16 %v756
  %v1960 = vunpack.c.l.b16 %v757
  %v1961 = vunpack.c.h.b16 %v757
  %v1962 = vunpack.c.l.b16 %v758
  %v1963 = vunpack.c.h.b16 %v758
  %v1964 = vunpack.c.l.b16 %v759
  %v1965 = vunpack.c.l.b16 %v760
  %v1966 = vunpack.c.h.b16 %v760
  %v1967 = vunpack.c.l.b16 %v761
  %v1968 = vunpack.c.h.b16 %v761
  %v1969 = vunpack.c.l.b16 %v762
  %v1970 = vunpack.c.h.b16 %v762
  %v1971 = vunpack.c.l.b16 %v763
  %v1972 = vunpack.c.l.b16 %v764
  %v1973 = vunpack.c.h.b16 %v764
  %v1974 = vunpack.c.l.b16 %v765
  %v1975 = vunpack.c.h.b16 %v765
  %v1976 = vunpack.c.l.b16 %v766
  %v1977 = vunpack.c.h.b16 %v766
  %v1978 = vunpack.c.l.b16 %v767
  %v1979 = vunpack.c.l.b16 %v768
  %v1980 = vunpack.c.h.b16 %v768
  %v1981 = vunpack.c.l.b16 %v769
  %v1982 = vunpack.c.h.b16 %v769
  %v1983 = vunpack.c.l.b16 %v770
  %v1984 = vunpack.c.h.b16 %v770
  %v1985 = vunpack.c.l.b16 %v771
  %v1986 = vunpack.c.l.b16 %v772
  %v1987 = vunpack.c.h.b16 %v772
  %v1988 = vunpack.c.l.b16 %v773
  %v1989 = vunpack.c.h.b16 %v773
  %v1990 = vunpack.c.l.b16 %v774
  %v1991 = vunpack.c.h.b16 %v774
  %v1992 = vunpack.c.l.b16 %v775
  %v1993 = vunpack.c.l.b16 %v776
  %v1994 = vunpack.c.h.b16 %v776
  %v1995 = vunpack.c.l.b16 %v777
  %v1996 = vunpack.c.h.b16 %v777
  %v1997 = vunpack.c.l.b16 %v778
  %v1998 = vunpack.c.h.b16 %v778
  %v1999 = vunpack.c.l.b16 %v779
  %v2000 = vunpack.c.l.b16 %v780
  %v2001 = vunpack.c.h.b16 %v780
  %v2002 = vunpack.c.l.b16 %v781
  %v2003 = vunpack.c.h.b16 %v781
  %v2004 = vunpack.c.l.b16 %v782
  %v2005 = vunpack.c.h.b16 %v782
  %v2006 = vunpack.c.l.b16 %v783
  %v2007 = vunpack.c.l.b16 %v784
  %v2008 = vunpack.c.h.b16 %v784
  %v2009 = vunpack.c.l.b16 %v785
  %v2010 = vunpack.c.h.b16 %v785
  %v2011 = vunpack.c.l.b16 %v786
  %v2012 = vunpack.c.h.b16 %v786
  %v2013 = vunpack.c.l.b16 %v787
  %v2014 = vunpack.c.l.b16 %v788
  %v2015 = vunpack.c.h.b16 %v788
  %v2016 = vunpack.c.l.b16 %v789
  %v2017 = vunpack.c.h.b16 %v789
  %v2018 = vunpack.c.l.b16 %v790
  %v2019 = vunpack.c.h.b16 %v790
  %v2020 = vunpack.c.l.b16 %v791
  %v2021 = vunpack.c.l.b16 %v792
  %v2022 = vunpack.c.h.b16 %v792
  %v2023 = vunpack.c.l.b16 %v793
  %v2024 = vunpack.c.h.b16 %v793
  %v2025 = vunpack.c.l.b16 %v794
  %v2026 = vunpack.c.h.b16 %v794
  %v2027 = vunpack.c.l.b16 %v795
  %v2028 = vpack.c.b16 %v1251, %v1244
  %v2029 = vpack.c.b16 %v1252, %v1245
  %v2030 = vpack.c.b16 %v1253, %v1246
  %v2031 = vpack.c.b16 %v1254, %v1247
  %v2032 = vpack.c.b16 %v1255, %v1248
  %v2033 = vpack.c.b16 %v1256, %v1249
  %v2034 = vpack.c.b16 %v1257, %v1250
  %v2035 = vpack.c.b16 %v1265, %v1258
  %v2036 = vpack.c.b16 %v1266, %v1259
  %v2037 = vpack.c.b16 %v1267, %v1260
  %v2038 = vpack.c.b16 %v1268, %v1261
  %v2039 = vpack.c.b16 %v1269, %v1262
  %v2040 = vpack.c.b16 %v1270, %v1263
  %v2041 = vpack.c.b16 %v1271, %v1264
  %v2042 = vpack.c.b16 %v1279, %v1272
  %v2043 = vpack.c.b16 %v1280, %v1273
  %v2044 = vpack.c.b16 %v1281, %v1274
  %v2045 = vpack.c.b16 %v1282, %v1275
  %v2046 = vpack.c.b16 %v1283, %v1276
  %v2047 = vpack.c.b16 %v1284, %v1277
  %v2048 = vpack.c.b16 %v1285, %v1278
  %v2049 = vpack.c.b16 %v1293, %v1286
  %v2050 = vpack.c.b16 %v1294, %v1287
  %v2051 = vpack.c.b16 %v1295, %v1288
  %v2052 = vpack.c.b16 %v1296, %v1289
  %v2053 = vpack.c.b16 %v1297, %v1290
  %v2054 = vpack.c.b16 %v1298, %v1291
  %v2055 = vpack.c.b16 %v1299, %v1292
  %v2056 = vpack.c.b16 %v1307, %v1300
  %v2057 = vpack.c.b16 %v1308, %v1301
  %v2058 = vpack.c.b16 %v1309, %v1302
  %v2059 = vpack.c.b16 %v1310, %v1303
  %v2060 = vpack.c.b16 %v1311, %v1304
  %v2061 = vpack.c.b16 %v1312, %v1305
  %v2062 = vpack.c.b16 %v1313, %v1306
  %v2063 = vpack.c.b16 %v1321, %v1314
  %v2064 = vpack.c.b16 %v1322, %v1315
  %v2065 = vpack.c.b16 %v1323, %v1316
  %v2066 = vpack.c.b16 %v1324, %v1317
  %v2067 = vpack.c.b16 %v1325, %v1318
  %v2068 = vpack.c.b16 %v1326, %v1319
  %v2069 = vpack.c.b16 %v1327, %v1320
  %v2070 = vpack.c.b16 %v1335, %v1328
  %v2071 = vpack.c.b16 %v1336, %v1329
  %v2072 = vpack.c.b16 %v1337, %v1330
  %v2073 = vpack.c.b16 %v1338, %v1331
  %v2074 = vpack.c.b16 %v1339, %v1332
  %v2075 = vpack.c.b16 %v1340, %v1333
  %v2076 = vpack.c.b16 %v1341, %v1334
  %v2077 = vpack.c.b16 %v1349, %v1342
  %v2078 = vpack.c.b16 %v1350, %v1343
  %v2079 = vpack.c.b16 %v1351, %v1344
  %v2080 = vpack.c.b16 %v1352, %v1345
  %v2081 = vpack.c.b16 %v1353, %v1346
  %v2082 = vpack.c.b16 %v1354, %v1347
  %v2083 = vpack.c.b16 %v1355, %v1348
  %v2084 = vpack.c.b16 %v1363, %v1356
  %v2085 = vpack.c.b16 %v1364, %v1357
  %v2086 = vpack.c.b16 %v1365, %v1358
  %v2087 = vpack.c.b16 %v1366, %v1359
  %v2088 = vpack.c.b16 %v1367, %v1360
  %v2089 = vpack.c.b16 %v1368, %v1361
  %v2090 = vpack.c.b16 %v1369, %v1362
  %v2091 = vpack.c.b16 %v1377, %v1370
  %v2092 = vpack.c.b16 %v1378, %v1371
  %v2093 = vpack.c.b16 %v1379, %v1372
  %v2094 = vpack.c.b16 %v1380, %v1373
  %v2095 = vpack.c.b16 %v1381, %v1374
  %v2096 = vpack.c.b16 %v1382, %v1375
  %v2097 = vpack.c.b16 %v1383, %v1376
  %v2098 = vpack.c.b16 %v1391, %v1384
  %v2099 = vpack.c.b16 %v1392, %v1385
  %v2100 = vpack.c.b16 %v1393, %v1386
  %v2101 = vpack.c.b16 %v1394, %v1387
  %v2102 = vpack.c.b16 %v1395, %v1388
  %v2103 = vpack.c.b16 %v1396, %v1389
  %v2104 = vpack.c.b16 %v1397, %v1390
  %v2105 = vpack.c.b16 %v1405, %v1398
  %v2106 = vpack.c.b16 %v1406, %v1399
  %v2107 = vpack.c.b16 %v1407, %v1400
  %v2108 = vpack.c.b16 %v1408, %v1401
  %v2109 = vpack.c.b16 %v1409, %v1402
  %v2110 = vpack.c.b16 %v1410, %v1403
  %v2111 = vpack.c.b16 %v1411, %v1404
  %v2112 = vpack.c.b16 %v1419, %v1412
  %v2113 = vpack.c.b16 %v1420, %v1413
  %v2114 = vpack.c.b16 %v1421, %v1414
  %v2115 = vpack.c.b16 %v1422, %v1415
  %v2116 = vpack.c.b16 %v1423, %v1416
  %v2117 = vpack.c.b16 %v1424, %v1417
  %v2118 = vpack.c.b16 %v1425, %v1418
  %v2119 = vpack.c.b16 %v1433, %v1426
  %v2120 = vpack.c.b16 %v1434, %v1427
  %v2121 = vpack.c.b16 %v1435, %v1428
  %v2122 = vpack.c.b16 %v1436, %v1429
  %v2123 = vpack.c.b16 %v1437, %v1430
  %v2124 = vpack.c.b16 %v1438, %v1431
  %v2125 = vpack.c.b16 %v1439, %v1432
  %v2126 = vpack.c.b16 %v1447, %v1440
  %v2127 = vpack.c.b16 %v1448, %v1441
  %v2128 = vpack.c.b16 %v1449, %v1442
  %v2129 = vpack.c.b16 %v1450, %v1443
  %v2130 = vpack.c.b16 %v1451, %v1444
  %v2131 = vpack.c.b16 %v1452, %v1445
  %v2132 = vpack.c.b16 %v1453, %v1446
  %v2133 = vpack.c.b16 %v1461, %v1454
  %v2134 = vpack.c.b16 %v1462, %v1455
  %v2135 = vpack.c.b16 %v1463, %v1456
  %v2136 = vpack.c.b16 %v1464, %v1457
  %v2137 = vpack.c.b16 %v1465, %v1458
  %v2138 = vpack.c.b16 %v1466, %v1459
  %v2139 = vpack.c.b16 %v1467, %v1460
  %v2140 = vpack.c.b16 %v1475, %v1468
  %v2141 = vpack.c.b16 %v1476, %v1469
  %v2142 = vpack.c.b16 %v1477, %v1470
  %v2143 = vpack.c.b16 %v1478, %v1471
  %v2144 = vpack.c.b16 %v1479, %v1472
  %v2145 = vpack.c.b16 %v1480, %v1473
  %v2146 = vpack.c.b16 %v1481, %v1474
  %v2147 = vpack.c.b16 %v1489, %v1482
  %v2148 = vpack.c.b16 %v1490, %v1483
  %v2149 = vpack.c.b16 %v1491, %v1484
  %v2150 = vpack.c.b16 %v1492, %v1485
  %v2151 = vpack.c.b16 %v1493, %v1486
  %v2152 = vpack.c.b16 %v1494, %v1487
  %v2153 = vpack.c.b16 %v1495, %v1488
  %v2154 = vpack.c.b16 %v1503, %v1496
  %v2155 = vpack.c.b16 %v1504, %v1497
  %v2156 = vpack.c.b16 %v1505, %v1498
  %v2157 = vpack.c.b16 %v1506, %v1499
  %v2158 = vpack.c.b16 %v1507, %v1500
  %v2159 = vpack.c.b16 %v1508, %v1501
  %v2160 = vpack.c.b16 %v1509, %v1502
  %v2161 = vpack.c.b16 %v1517, %v1510
  %v2162 = vpack.c.b16 %v1518, %v1511
  %v2163 = vpack.c.b16 %v1519, %v1512
  %v2164 = vpack.c.b16 %v1520, %v1513
  %v2165 = vpack.c.b16 %v1521, %v1514
  %v2166 = vpack.c.b16 %v1522, %v1515
  %v2167 = vpack.c.b16 %v1523, %v1516
  %v2168 = vpack.c.b16 %v1531, %v1524
  %v2169 = vpack.c.b16 %v1532, %v1525
  %v2170 = vpack.c.b16 %v1533, %v1526
  %v2171 = vpack.c.b16 %v1534, %v1527
  %v2172 = vpack.c.b16 %v1535, %v1528
  %v2173 = vpack.c.b16 %v1536, %v1529
  %v2174 = vpack.c.b16 %v1537, %v1530
  %v2175 = vpack.c.b16 %v1545, %v1538
  %v2176 = vpack.c.b16 %v1546, %v1539
  %v2177 = vpack.c.b16 %v1547, %v1540
  %v2178 = vpack.c.b16 %v1548, %v1541
  %v2179 = vpack.c.b16 %v1549, %v1542
  %v2180 = vpack.c.b16 %v1550, %v1543
  %v2181 = vpack.c.b16 %v1551, %v1544
  %v2182 = vpack.c.b16 %v1559, %v1552
  %v2183 = vpack.c.b16 %v1560, %v1553
  %v2184 = vpack.c.b16 %v1561, %v1554
  %v2185 = vpack.c.b16 %v1562, %v1555
  %v2186 = vpack.c.b16 %v1563, %v1556
  %v2187 = vpack.c.b16 %v1564, %v1557
  %v2188 = vpack.c.b16 %v1565, %v1558
  %v2189 = vpack.c.b16 %v1573, %v1566
  %v2190 = vpack.c.b16 %v1574, %v1567
  %v2191 = vpack.c.b16 %v1575, %v1568
  %v2192 = vpack.c.b16 %v1576, %v1569
  %v2193 = vpack.c.b16 %v1577, %v1570
  %v2194 = vpack.c.b16 %v1578, %v1571
  %v2195 = vpack.c.b16 %v1579, %v1572
  %v2196 = vpack.c.b16 %v1587, %v1580
  %v2197 = vpack.c.b16 %v1588, %v1581
  %v2198 = vpack.c.b16 %v1589, %v1582
  %v2199 = vpack.c.b16 %v1590, %v1583
  %v2200 = vpack.c.b16 %v1591, %v1584
  %v2201 = vpack.c.b16 %v1592, %v1585
  %v2202 = vpack.c.b16 %v1593, %v1586
  %v2203 = vpack.c.b16 %v1601, %v1594
  %v2204 = vpack.c.b16 %v1602, %v1595
  %v2205 = vpack.c.b16 %v1603, %v1596
  %v2206 = vpack.c.b16 %v1604, %v1597
  %v2207 = vpack.c.b16 %v1605, %v1598
  %v2208 = vpack.c.b16 %v1606, %v1599
  %v2209 = vpack.c.b16 %v1607, %v1600
  %v2210 = vpack.c.b16 %v1615, %v1608
  %v2211 = vpack.c.b16 %v1616, %v1609
  %v2212 = vpack.c.b16 %v1617, %v1610
  %v2213 = vpack.c.b16 %v1618, %v1611
  %v2214 = vpack.c.b16 %v1619, %v1612
  %v2215 = vpack.c.b16 %v1620, %v1613
  %v2216 = vpack.c.b16 %v1621, %v1614
  %v2217 = vpack.c.b16 %v1629, %v1622
  %v2218 = vpack.c.b16 %v1630, %v1623
  %v2219 = vpack.c.b16 %v1631, %v1624
  %v2220 = vpack.c.b16 %v1632, %v1625
  %v2221 = vpack.c.b16 %v1633, %v1626
  %v2222 = vpack.c.b16 %v1634, %v1627
  %v2223 = vpack.c.b16 %v1635, %v1628
  %v2224 = vpack.c.b16 %v1643, %v1636
  %v2225 = vpack.c.b16 %v1644, %v1637
  %v2226 = vpack.c.b16 %v1645, %v1638
  %v2227 = vpack.c.b16 %v1646, %v1639
  %v2228 = vpack.c.b16 %v1647, %v1640
  %v2229 = vpack.c.b16 %v1648, %v1641
  %v2230 = vpack.c.b16 %v1649, %v1642
  %v2231 = vpack.c.b16 %v1657, %v1650
  %v2232 = vpack.c.b16 %v1658, %v1651
  %v2233 = vpack.c.b16 %v1659, %v1652
  %v2234 = vpack.c.b16 %v1660, %v1653
  %v2235 = vpack.c.b16 %v1661, %v1654
  %v2236 = vpack.c.b16 %v1662, %v1655
  %v2237 = vpack.c.b16 %v1663, %v1656
  %v2238 = vpack.c.b16 %v1671, %v1664
  %v2239 = vpack.c.b16 %v1672, %v1665
  %v2240 = vpack.c.b16 %v1673, %v1666
  %v2241 = vpack.c.b16 %v1674, %v1667
  %v2242 = vpack.c.b16 %v1675, %v1668
  %v2243 = vpack.c.b16 %v1676, %v1669
  %v2244 = vpack.c.b16 %v1677, %v1670
  %v2245 = vpack.c.b16 %v1685, %v1678
  %v2246 = vpack.c.b16 %v1686, %v1679
  %v2247 = vpack.c.b16 %v1687, %v1680
  %v2248 = vpack.c.b16 %v1688, %v1681
  %v2249 = vpack.c.b16 %v1689, %v1682
  %v2250 = vpack.c.b16 %v1690, %v1683
  %v2251 = vpack.c.b16 %v1691, %v1684
  %v2252 = vpack.c.b16 %v1699, %v1692
  %v2253 = vpack.c.b16 %v1700, %v1693
  %v2254 = vpack.c.b16 %v1701, %v1694
  %v2255 = vpack.c.b16 %v1702, %v1695
  %v2256 = vpack.c.b16 %v1703, %v1696
  %v2257 = vpack.c.b16 %v1704, %v1697
  %v2258 = vpack.c.b16 %v1705, %v1698
  %v2259 = vpack.c.b16 %v1713, %v1706
  %v2260 = vpack.c.b16 %v1714, %v1707
  %v2261 = vpack.c.b16 %v1715, %v1708
  %v2262 = vpack.c.b16 %v1716, %v1709
  %v2263 = vpack.c.b16 %v1717, %v1710
  %v2264 = vpack.c.b16 %v1718, %v1711
  %v2265 = vpack.c.b16 %v1719, %v1712
  %v2266 = vpack.c.b16 %v1727, %v1720
  %v2267 = vpack.c.b16 %v1728, %v1721
  %v2268 = vpack.c.b16 %v1729, %v1722
  %v2269 = vpack.c.b16 %v1730, %v1723
  %v2270 = vpack.c.b16 %v1731, %v1724
  %v2271 = vpack.c.b16 %v1732, %v1725
  %v2272 = vpack.c.b16 %v1733, %v1726
  %v2273 = vpack.c.b16 %v1741, %v1734
  %v2274 = vpack.c.b16 %v1742, %v1735
  %v2275 = vpack.c.b16 %v1743, %v1736
  %v2276 = vpack.c.b16 %v1744, %v1737
  %v2277 = vpack.c.b16 %v1745, %v1738
  %v2278 = vpack.c.b16 %v1746, %v1739
  %v2279 = vpack.c.b16 %v1747, %v1740
  %v2280 = vpack.c.b16 %v1755, %v1748
  %v2281 = vpack.c.b16 %v1756, %v1749
  %v2282 = vpack.c.b16 %v1757, %v1750
  %v2283 = vpack.c.b16 %v1758, %v1751
  %v2284 = vpack.c.b16 %v1759, %v1752
  %v2285 = vpack.c.b16 %v1760, %v1753
  %v2286 = vpack.c.b16 %v1761, %v1754
  %v2287 = vpack.c.b16 %v1769, %v1762
  %v2288 = vpack.c.b16 %v1770, %v1763
  %v2289 = vpack.c.b16 %v1771, %v1764
  %v2290 = vpack.c.b16 %v1772, %v1765
  %v2291 = vpack.c.b16 %v1773, %v1766
  %v2292 = vpack.c.b16 %v1774, %v1767
  %v2293 = vpack.c.b16 %v1775, %v1768
  %v2294 = vpack.c.b16 %v1783, %v1776
  %v2295 = vpack.c.b16 %v1784, %v1777
  %v2296 = vpack.c.b16 %v1785, %v1778
  %v2297 = vpack.c.b16 %v1786, %v1779
  %v2298 = vpack.c.b16 %v1787, %v1780
  %v2299 = vpack.c.b16 %v1788, %v1781
  %v2300 = vpack.c.b16 %v1789, %v1782
  %v2301 = vpack.c.b16 %v1797, %v1790
  %v2302 = vpack.c.b16 %v1798, %v1791
  %v2303 = vpack.c.b16 %v1799, %v1792
  %v2304 = vpack.c.b16 %v1800, %v1793
  %v2305 = vpack.c.b16 %v1801, %v1794
  %v2306 = vpack.c.b16 %v1802, %v1795
  %v2307 = vpack.c.b16 %v1803, %v1796
  %v2308 = vpack.c.b16 %v1811, %v1804
  %v2309 = vpack.c.b16 %v1812, %v1805
  %v2310 = vpack.c.b16 %v1813, %v1806
  %v2311 = vpack.c.b16 %v1814, %v1807
  %v2312 = vpack.c.b16 %v1815, %v1808
  %v2313 = vpack.c.b16 %v1816, %v1809
  %v2314 = vpack.c.b16 %v1817, %v1810
  %v2315 = vpack.c.b16 %v1825, %v1818
  %v2316 = vpack.c.b16 %v1826, %v1819
  %v2317 = vpack.c.b16 %v1827, %v1820
  %v2318 = vpack.c.b16 %v1828, %v1821
  %v2319 = vpack.c.b16 %v1829, %v1822
  %v2320 = vpack.c.b16 %v1830, %v1823
  %v2321 = vpack.c.b16 %v1831, %v1824
  %v2322 = vpack.c.b16 %v1839, %v1832
  %v2323 = vpack.c.b16 %v1840, %v1833
  %v2324 = vpack.c.b16 %v1841, %v1834
  %v2325 = vpack.c.b16 %v1842, %v1835
  %v2326 = vpack.c.b16 %v1843, %v1836
  %v2327 = vpack.c.b16 %v1844, %v1837
  %v2328 = vpack.c.b16 %v1845, %v1838
  %v2329 = vpack.c.b16 %v1853, %v1846
  %v2330 = vpack.c.b16 %v1854, %v1847
  %v2331 = vpack.c.b16 %v1855, %v1848
  %v2332 = vpack.c.b16 %v1856, %v1849
  %v2333 = vpack.c.b16 %v1857, %v1850
  %v2334 = vpack.c.b16 %v1858, %v1851
  %v2335 = vpack.c.b16 %v1859, %v1852
  %v2336 = vpack.c.b16 %v1867, %v1860
  %v2337 = vpack.c.b16 %v1868, %v1861
  %v2338 = vpack.c.b16 %v1869, %v1862
  %v2339 = vpack.c.b16 %v1870, %v1863
  %v2340 = vpack.c.b16 %v1871, %v1864
  %v2341 = vpack.c.b16 %v1872, %v1865
  %v2342 = vpack.c.b16 %v1873, %v1866
  %v2343 = vpack.c.b16 %v1881, %v1874
  %v2344 = vpack.c.b16 %v1882, %v1875
  %v2345 = vpack.c.b16 %v1883, %v1876
  %v2346 = vpack.c.b16 %v1884, %v1877
  %v2347 = vpack.c.b16 %v1885, %v1878
  %v2348 = vpack.c.b16 %v1886, %v1879
  %v2349 = vpack.c.b16 %v1887, %v1880
  %v2350 = vpack.c.b16 %v1895, %v1888
  %v2351 = vpack.c.b16 %v1896, %v1889
  %v2352 = vpack.c.b16 %v1897, %v1890
  %v2353 = vpack.c.b16 %v1898, %v1891
  %v2354 = vpack.c.b16 %v1899, %v1892
  %v2355 = vpack.c.b16 %v1900, %v1893
  %v2356 = vpack.c.b16 %v1901, %v1894
  %v2357 = vpack.c.b16 %v1909, %v1902
  %v2358 = vpack.c.b16 %v1910, %v1903
  %v2359 = vpack.c.b16 %v1911, %v1904
  %v2360 = vpack.c.b16 %v1912, %v1905
  %v2361 = vpack.c.b16 %v1913, %v1906
  %v2362 = vpack.c.b16 %v1914, %v1907
  %v2363 = vpack.c.b16 %v1915, %v1908
  %v2364 = vpack.c.b16 %v1923, %v1916
  %v2365 = vpack.c.b16 %v1924, %v1917
  %v2366 = vpack.c.b16 %v1925, %v1918
  %v2367 = vpack.c.b16 %v1926, %v1919
  %v2368 = vpack.c.b16 %v1927, %v1920
  %v2369 = vpack.c.b16 %v1928, %v1921
  %v2370 = vpack.c.b16 %v1929, %v1922
  %v2371 = vpack.c.b16 %v1937, %v1930
  %v2372 = vpack.c.b16 %v1938, %v1931
  %v2373 = vpack.c.b16 %v1939, %v1932
  %v2374 = vpack.c.b16 %v1940, %v1933
  %v2375 = vpack.c.b16 %v1941, %v1934
  %v2376 = vpack.c.b16 %v1942, %v1935
  %v2377 = vpack.c.b16 %v1943, %v1936
  %v2378 = vpack.c.b16 %v1951, %v1944
  %v2379 = vpack.c.b16 %v1952, %v1945
  %v2380 = vpack.c.b16 %v1953, %v1946
  %v2381 = vpack.c.b16 %v1954, %v1947
  %v2382 = vpack.c.b16 %v1955, %v1948
  %v2383 = vpack.c.b16 %v1956, %v1949
  %v2384 = vpack.c.b16 %v1957, %v1950
  %v2385 = vpack.c.b16 %v1965, %v1958
  %v2386 = vpack.c.b16 %v1966, %v1959
  %v2387 = vpack.c.b16 %v1967, %v1960
  %v2388 = vpack.c.b16 %v1968, %v1961
  %v2389 = vpack.c.b16 %v1969, %v1962
  %v2390 = vpack.c.b16 %v1970, %v1963
  %v2391 = vpack.c.b16 %v1971, %v1964
  %v2392 = vpack.c.b16 %v1979, %v1972
  %v2393 = vpack.c.b16 %v1980, %v1973
  %v2394 = vpack.c.b16 %v1981, %v1974
  %v2395 = vpack.c.b16 %v1982, %v1975
  %v2396 = vpack.c.b16 %v1983, %v1976
  %v2397 = vpack.c.b16 %v1984, %v1977
  %v2398 = vpack.c.b16 %v1985, %v1978
  %v2399 = vpack.c.b16 %v1993, %v1986
  %v2400 = vpack.c.b16 %v1994, %v1987
  %v2401 = vpack.c.b16 %v1995, %v1988
  %v2402 = vpack.c.b16 %v1996, %v1989
  %v2403 = vpack.c.b16 %v1997, %v1990
  %v2404 = vpack.c.b16 %v1998, %v1991
  %v2405 = vpack.c.b16 %v1999, %v1992
  %v2406 = vpack.c.b16 %v2007, %v2000
  %v2407 = vpack.c.b16 %v2008, %v2001
  %v2408 = vpack.c.b16 %v2009, %v2002
  %v2409 = vpack.c.b16 %v2010, %v2003
  %v2410 = vpack.c.b16 %v2011, %v2004
  %v2411 = vpack.c.b16 %v2012, %v2005
  %v2412 = vpack.c.b16 %v2013, %v2006
  %v2413 = vpack.c.b16 %v2021, %v2014
  %v2414 = vpack.c.b16 %v2022, %v2015
  %v2415 = vpack.c.b16 %v2023, %v2016
  %v2416 = vpack.c.b16 %v2024, %v2017
  %v2417 = vpack.c.b16 %v2025, %v2018
  %v2418 = vpack.c.b16 %v2026, %v2019
  %v2419 = vpack.c.b16 %v2027, %v2020
  %2812 = vmatprep.subr.bf16.mxu0 %v251
  %2813 = vmatpush1.bf16.msra.mxu0 %v250
  %2814 = vmatprep.subr.bf16.mxu0 %v249
  %2815 = vmatpush1.bf16.msra.mxu0 %v248
  %2816 = vmatprep.subr.bf16.mxu0 %v247
  %2817 = vmatpush1.bf16.msra.mxu0 %v246
  %2818 = vmatprep.subr.bf16.mxu0 %v245
  %2819 = vmatpush1.bf16.msra.mxu0 %v244
  %2820 = vmatprep.subr.bf16.mxu0 %v243
  %2821 = vmatpush1.bf16.msra.mxu0 %v242
  %2822 = vmatprep.subr.bf16.mxu0 %v241
  %2823 = vmatpush1.bf16.msra.mxu0 %v240
  %2824 = vmatprep.subr.bf16.mxu0 %v239
  %2825 = vmatpush1.bf16.msra.mxu0 %v238
  %2826 = vmatprep.subr.bf16.mxu0 %v237
  %2827 = vmatpush1.bf16.msra.mxu0 %v236
  %2828 = vmatprep.subr.bf16.mxu0 %v267
  %2829 = vmatpush2.bf16.msra.mxu0 %v266
  %2830 = vmatprep.subr.bf16.mxu0 %v265
  %2831 = vmatpush2.bf16.msra.mxu0 %v264
  %2832 = vmatprep.subr.bf16.mxu0 %v263
  %2833 = vmatpush2.bf16.msra.mxu0 %v262
  %2834 = vmatprep.subr.bf16.mxu0 %v261
  %2835 = vmatpush2.bf16.msra.mxu0 %v260
  %2836 = vmatprep.subr.bf16.mxu0 %v259
  %2837 = vmatpush2.bf16.msra.mxu0 %v258
  %2838 = vmatprep.subr.bf16.mxu0 %v257
  %2839 = vmatpush2.bf16.msra.mxu0 %v256
  %2840 = vmatprep.subr.bf16.mxu0 %v255
  %2841 = vmatpush2.bf16.msra.mxu0 %v254
  %2842 = vmatprep.subr.bf16.mxu0 %v253
  %2843 = vmatpush2.bf16.msra.mxu0 %v252
  %2844 = vmatprep.mubr.bf16.mxu0 %v2029
  %2845 = vmatmul.mubr.bf16.gmra.mxu0 %v2028
  %v2846 = vpop.f32.mrf.mxu0
  %v2847 = vadd.f32 0.0, %v2846
  %v2848 = vpop.f32.mrf.mxu0
  %v2849 = vadd.f32 0.0, %v2848
  %v2850 = vpop.f32.mrf.mxu0
  %v2851 = vadd.f32 0.0, %v2850
  %v2852 = vpop.f32.mrf.mxu0
  %v2853 = vadd.f32 0.0, %v2852
  %2854 = vmatprep.mubr.bf16.mxu0 %v2036
  %2855 = vmatmul.mubr.bf16.gmra.mxu0 %v2035
  %v2856 = vpop.f32.mrf.mxu0
  %v2857 = vadd.f32 0.0, %v2856
  %v2858 = vpop.f32.mrf.mxu0
  %v2859 = vadd.f32 0.0, %v2858
  %v2860 = vpop.f32.mrf.mxu0
  %v2861 = vadd.f32 0.0, %v2860
  %v2862 = vpop.f32.mrf.mxu0
  %v2863 = vadd.f32 0.0, %v2862
  %2864 = vmatprep.mubr.bf16.mxu0 %v2043
  %2865 = vmatmul.mubr.bf16.gmra.mxu0 %v2042
  %v2866 = vpop.f32.mrf.mxu0
  %v2867 = vadd.f32 0.0, %v2866
  %v2868 = vpop.f32.mrf.mxu0
  %v2869 = vadd.f32 0.0, %v2868
  %v2870 = vpop.f32.mrf.mxu0
  %v2871 = vadd.f32 0.0, %v2870
  %v2872 = vpop.f32.mrf.mxu0
  %v2873 = vadd.f32 0.0, %v2872
  %2874 = vmatprep.mubr.bf16.mxu0 %v2050
  %2875 = vmatmul.mubr.bf16.gmra.mxu0 %v2049
  %v2876 = vpop.f32.mrf.mxu0
  %v2877 = vadd.f32 0.0, %v2876
  %v2878 = vpop.f32.mrf.mxu0
  %v2879 = vadd.f32 0.0, %v2878
  %v2880 = vpop.f32.mrf.mxu0
  %v2881 = vadd.f32 0.0, %v2880
  %v2882 = vpop.f32.mrf.mxu0
  %v2883 = vadd.f32 0.0, %v2882
  %2884 = vmatprep.mubr.bf16.mxu0 %v2057
  %2885 = vmatmul.mubr.bf16.gmra.mxu0 %v2056
  %v2886 = vpop.f32.mrf.mxu0
  %v2887 = vadd.f32 0.0, %v2886
  %v2888 = vpop.f32.mrf.mxu0
  %v2889 = vadd.f32 0.0, %v2888
  %v2890 = vpop.f32.mrf.mxu0
  %v2891 = vadd.f32 0.0, %v2890
  %v2892 = vpop.f32.mrf.mxu0
  %v2893 = vadd.f32 0.0, %v2892
  %2894 = vmatprep.mubr.bf16.mxu0 %v2064
  %2895 = vmatmul.mubr.bf16.gmra.mxu0 %v2063
  %v2896 = vpop.f32.mrf.mxu0
  %v2897 = vadd.f32 0.0, %v2896
  %v2898 = vpop.f32.mrf.mxu0
  %v2899 = vadd.f32 0.0, %v2898
  %v2900 = vpop.f32.mrf.mxu0
  %v2901 = vadd.f32 0.0, %v2900
  %v2902 = vpop.f32.mrf.mxu0
  %v2903 = vadd.f32 0.0, %v2902
  %2904 = vmatprep.mubr.bf16.mxu0 %v2071
  %2905 = vmatmul.mubr.bf16.gmra.mxu0 %v2070
  %v2906 = vpop.f32.mrf.mxu0
  %v2907 = vadd.f32 0.0, %v2906
  %v2908 = vpop.f32.mrf.mxu0
  %v2909 = vadd.f32 0.0, %v2908
  %v2910 = vpop.f32.mrf.mxu0
  %v2911 = vadd.f32 0.0, %v2910
  %v2912 = vpop.f32.mrf.mxu0
  %v2913 = vadd.f32 0.0, %v2912
  %2914 = vmatprep.mubr.bf16.mxu0 %v2078
  %2915 = vmatmul.mubr.bf16.gmra.mxu0 %v2077
  %v2916 = vpop.f32.mrf.mxu0
  %v2917 = vadd.f32 0.0, %v2916
  %v2918 = vpop.f32.mrf.mxu0
  %v2919 = vadd.f32 0.0, %v2918
  %v2920 = vpop.f32.mrf.mxu0
  %v2921 = vadd.f32 0.0, %v2920
  %v2922 = vpop.f32.mrf.mxu0
  %v2923 = vadd.f32 0.0, %v2922
  %2924 = vmatprep.mubr.bf16.mxu0 %v2085
  %2925 = vmatmul.mubr.bf16.gmra.mxu0 %v2084
  %v2926 = vpop.f32.mrf.mxu0
  %v2927 = vadd.f32 0.0, %v2926
  %v2928 = vpop.f32.mrf.mxu0
  %v2929 = vadd.f32 0.0, %v2928
  %v2930 = vpop.f32.mrf.mxu0
  %v2931 = vadd.f32 0.0, %v2930
  %v2932 = vpop.f32.mrf.mxu0
  %v2933 = vadd.f32 0.0, %v2932
  %2934 = vmatprep.mubr.bf16.mxu0 %v2092
  %2935 = vmatmul.mubr.bf16.gmra.mxu0 %v2091
  %v2936 = vpop.f32.mrf.mxu0
  %v2937 = vadd.f32 0.0, %v2936
  %v2938 = vpop.f32.mrf.mxu0
  %v2939 = vadd.f32 0.0, %v2938
  %v2940 = vpop.f32.mrf.mxu0
  %v2941 = vadd.f32 0.0, %v2940
  %v2942 = vpop.f32.mrf.mxu0
  %v2943 = vadd.f32 0.0, %v2942
  %2944 = vmatprep.mubr.bf16.mxu0 %v2099
  %2945 = vmatmul.mubr.bf16.gmra.mxu0 %v2098
  %v2946 = vpop.f32.mrf.mxu0
  %v2947 = vadd.f32 0.0, %v2946
  %v2948 = vpop.f32.mrf.mxu0
  %v2949 = vadd.f32 0.0, %v2948
  %v2950 = vpop.f32.mrf.mxu0
  %v2951 = vadd.f32 0.0, %v2950
  %v2952 = vpop.f32.mrf.mxu0
  %v2953 = vadd.f32 0.0, %v2952
  %2954 = vmatprep.mubr.bf16.mxu0 %v2106
  %2955 = vmatmul.mubr.bf16.gmra.mxu0 %v2105
  %v2956 = vpop.f32.mrf.mxu0
  %v2957 = vadd.f32 0.0, %v2956
  %v2958 = vpop.f32.mrf.mxu0
  %v2959 = vadd.f32 0.0, %v2958
  %v2960 = vpop.f32.mrf.mxu0
  %v2961 = vadd.f32 0.0, %v2960
  %v2962 = vpop.f32.mrf.mxu0
  %v2963 = vadd.f32 0.0, %v2962
  %2964 = vmatprep.mubr.bf16.mxu0 %v2113
  %2965 = vmatmul.mubr.bf16.gmra.mxu0 %v2112
  %v2966 = vpop.f32.mrf.mxu0
  %v2967 = vadd.f32 0.0, %v2966
  %v2968 = vpop.f32.mrf.mxu0
  %v2969 = vadd.f32 0.0, %v2968
  %v2970 = vpop.f32.mrf.mxu0
  %v2971 = vadd.f32 0.0, %v2970
  %v2972 = vpop.f32.mrf.mxu0
  %v2973 = vadd.f32 0.0, %v2972
  %2974 = vmatprep.mubr.bf16.mxu0 %v2120
  %2975 = vmatmul.mubr.bf16.gmra.mxu0 %v2119
  %v2976 = vpop.f32.mrf.mxu0
  %v2977 = vadd.f32 0.0, %v2976
  %v2978 = vpop.f32.mrf.mxu0
  %v2979 = vadd.f32 0.0, %v2978
  %v2980 = vpop.f32.mrf.mxu0
  %v2981 = vadd.f32 0.0, %v2980
  %v2982 = vpop.f32.mrf.mxu0
  %v2983 = vadd.f32 0.0, %v2982
  %2984 = vmatprep.mubr.bf16.mxu0 %v2127
  %2985 = vmatmul.mubr.bf16.gmra.mxu0 %v2126
  %v2986 = vpop.f32.mrf.mxu0
  %v2987 = vadd.f32 0.0, %v2986
  %v2988 = vpop.f32.mrf.mxu0
  %v2989 = vadd.f32 0.0, %v2988
  %v2990 = vpop.f32.mrf.mxu0
  %v2991 = vadd.f32 0.0, %v2990
  %v2992 = vpop.f32.mrf.mxu0
  %v2993 = vadd.f32 0.0, %v2992
  %2994 = vmatprep.mubr.bf16.mxu0 %v2134
  %2995 = vmatmul.mubr.bf16.gmra.mxu0 %v2133
  %v2996 = vpop.f32.mrf.mxu0
  %v2997 = vadd.f32 0.0, %v2996
  %v2998 = vpop.f32.mrf.mxu0
  %v2999 = vadd.f32 0.0, %v2998
  %v3000 = vpop.f32.mrf.mxu0
  %v3001 = vadd.f32 0.0, %v3000
  %v3002 = vpop.f32.mrf.mxu0
  %v3003 = vadd.f32 0.0, %v3002
  %3004 = vmatprep.mubr.bf16.mxu0 %v2141
  %3005 = vmatmul.mubr.bf16.gmra.mxu0 %v2140
  %v3006 = vpop.f32.mrf.mxu0
  %v3007 = vadd.f32 0.0, %v3006
  %v3008 = vpop.f32.mrf.mxu0
  %v3009 = vadd.f32 0.0, %v3008
  %v3010 = vpop.f32.mrf.mxu0
  %v3011 = vadd.f32 0.0, %v3010
  %v3012 = vpop.f32.mrf.mxu0
  %v3013 = vadd.f32 0.0, %v3012
  %3014 = vmatprep.mubr.bf16.mxu0 %v2148
  %3015 = vmatmul.mubr.bf16.gmra.mxu0 %v2147
  %v3016 = vpop.f32.mrf.mxu0
  %v3017 = vadd.f32 0.0, %v3016
  %v3018 = vpop.f32.mrf.mxu0
  %v3019 = vadd.f32 0.0, %v3018
  %v3020 = vpop.f32.mrf.mxu0
  %v3021 = vadd.f32 0.0, %v3020
  %v3022 = vpop.f32.mrf.mxu0
  %v3023 = vadd.f32 0.0, %v3022
  %3024 = vmatprep.mubr.bf16.mxu0 %v2155
  %3025 = vmatmul.mubr.bf16.gmra.mxu0 %v2154
  %v3026 = vpop.f32.mrf.mxu0
  %v3027 = vadd.f32 0.0, %v3026
  %v3028 = vpop.f32.mrf.mxu0
  %v3029 = vadd.f32 0.0, %v3028
  %v3030 = vpop.f32.mrf.mxu0
  %v3031 = vadd.f32 0.0, %v3030
  %v3032 = vpop.f32.mrf.mxu0
  %v3033 = vadd.f32 0.0, %v3032
  %3034 = vmatprep.mubr.bf16.mxu0 %v2162
  %3035 = vmatmul.mubr.bf16.gmra.mxu0 %v2161
  %v3036 = vpop.f32.mrf.mxu0
  %v3037 = vadd.f32 0.0, %v3036
  %v3038 = vpop.f32.mrf.mxu0
  %v3039 = vadd.f32 0.0, %v3038
  %v3040 = vpop.f32.mrf.mxu0
  %v3041 = vadd.f32 0.0, %v3040
  %v3042 = vpop.f32.mrf.mxu0
  %v3043 = vadd.f32 0.0, %v3042
  %3044 = vmatprep.mubr.bf16.mxu0 %v2169
  %3045 = vmatmul.mubr.bf16.gmra.mxu0 %v2168
  %v3046 = vpop.f32.mrf.mxu0
  %v3047 = vadd.f32 0.0, %v3046
  %v3048 = vpop.f32.mrf.mxu0
  %v3049 = vadd.f32 0.0, %v3048
  %v3050 = vpop.f32.mrf.mxu0
  %v3051 = vadd.f32 0.0, %v3050
  %v3052 = vpop.f32.mrf.mxu0
  %v3053 = vadd.f32 0.0, %v3052
  %3054 = vmatprep.mubr.bf16.mxu0 %v2176
  %3055 = vmatmul.mubr.bf16.gmra.mxu0 %v2175
  %v3056 = vpop.f32.mrf.mxu0
  %v3057 = vadd.f32 0.0, %v3056
  %v3058 = vpop.f32.mrf.mxu0
  %v3059 = vadd.f32 0.0, %v3058
  %v3060 = vpop.f32.mrf.mxu0
  %v3061 = vadd.f32 0.0, %v3060
  %v3062 = vpop.f32.mrf.mxu0
  %v3063 = vadd.f32 0.0, %v3062
  %3064 = vmatprep.mubr.bf16.mxu0 %v2183
  %3065 = vmatmul.mubr.bf16.gmra.mxu0 %v2182
  %v3066 = vpop.f32.mrf.mxu0
  %v3067 = vadd.f32 0.0, %v3066
  %v3068 = vpop.f32.mrf.mxu0
  %v3069 = vadd.f32 0.0, %v3068
  %v3070 = vpop.f32.mrf.mxu0
  %v3071 = vadd.f32 0.0, %v3070
  %v3072 = vpop.f32.mrf.mxu0
  %v3073 = vadd.f32 0.0, %v3072
  %3074 = vmatprep.mubr.bf16.mxu0 %v2190
  %3075 = vmatmul.mubr.bf16.gmra.mxu0 %v2189
  %v3076 = vpop.f32.mrf.mxu0
  %v3077 = vadd.f32 0.0, %v3076
  %v3078 = vpop.f32.mrf.mxu0
  %v3079 = vadd.f32 0.0, %v3078
  %v3080 = vpop.f32.mrf.mxu0
  %v3081 = vadd.f32 0.0, %v3080
  %v3082 = vpop.f32.mrf.mxu0
  %v3083 = vadd.f32 0.0, %v3082
  %3084 = vmatprep.mubr.bf16.mxu0 %v2197
  %3085 = vmatmul.mubr.bf16.gmra.mxu0 %v2196
  %v3086 = vpop.f32.mrf.mxu0
  %v3087 = vadd.f32 0.0, %v3086
  %v3088 = vpop.f32.mrf.mxu0
  %v3089 = vadd.f32 0.0, %v3088
  %v3090 = vpop.f32.mrf.mxu0
  %v3091 = vadd.f32 0.0, %v3090
  %v3092 = vpop.f32.mrf.mxu0
  %v3093 = vadd.f32 0.0, %v3092
  %3094 = vmatprep.mubr.bf16.mxu0 %v2204
  %3095 = vmatmul.mubr.bf16.gmra.mxu0 %v2203
  %v3096 = vpop.f32.mrf.mxu0
  %v3097 = vadd.f32 0.0, %v3096
  %v3098 = vpop.f32.mrf.mxu0
  %v3099 = vadd.f32 0.0, %v3098
  %v3100 = vpop.f32.mrf.mxu0
  %v3101 = vadd.f32 0.0, %v3100
  %v3102 = vpop.f32.mrf.mxu0
  %v3103 = vadd.f32 0.0, %v3102
  %3104 = vmatprep.mubr.bf16.mxu0 %v2211
  %3105 = vmatmul.mubr.bf16.gmra.mxu0 %v2210
  %v3106 = vpop.f32.mrf.mxu0
  %v3107 = vadd.f32 0.0, %v3106
  %v3108 = vpop.f32.mrf.mxu0
  %v3109 = vadd.f32 0.0, %v3108
  %v3110 = vpop.f32.mrf.mxu0
  %v3111 = vadd.f32 0.0, %v3110
  %v3112 = vpop.f32.mrf.mxu0
  %v3113 = vadd.f32 0.0, %v3112
  %3114 = vmatprep.mubr.bf16.mxu0 %v2218
  %3115 = vmatmul.mubr.bf16.gmra.mxu0 %v2217
  %v3116 = vpop.f32.mrf.mxu0
  %v3117 = vadd.f32 0.0, %v3116
  %v3118 = vpop.f32.mrf.mxu0
  %v3119 = vadd.f32 0.0, %v3118
  %v3120 = vpop.f32.mrf.mxu0
  %v3121 = vadd.f32 0.0, %v3120
  %v3122 = vpop.f32.mrf.mxu0
  %v3123 = vadd.f32 0.0, %v3122
  %3124 = vmatprep.mubr.bf16.mxu0 %v2225
  %3125 = vmatmul.mubr.bf16.gmra.mxu0 %v2224
  %v3126 = vpop.f32.mrf.mxu0
  %v3127 = vadd.f32 0.0, %v3126
  %v3128 = vpop.f32.mrf.mxu0
  %v3129 = vadd.f32 0.0, %v3128
  %v3130 = vpop.f32.mrf.mxu0
  %v3131 = vadd.f32 0.0, %v3130
  %v3132 = vpop.f32.mrf.mxu0
  %v3133 = vadd.f32 0.0, %v3132
  %3134 = vmatprep.mubr.bf16.mxu0 %v2232
  %3135 = vmatmul.mubr.bf16.gmra.mxu0 %v2231
  %v3136 = vpop.f32.mrf.mxu0
  %v3137 = vadd.f32 0.0, %v3136
  %v3138 = vpop.f32.mrf.mxu0
  %v3139 = vadd.f32 0.0, %v3138
  %v3140 = vpop.f32.mrf.mxu0
  %v3141 = vadd.f32 0.0, %v3140
  %v3142 = vpop.f32.mrf.mxu0
  %v3143 = vadd.f32 0.0, %v3142
  %3144 = vmatprep.mubr.bf16.mxu0 %v2239
  %3145 = vmatmul.mubr.bf16.gmra.mxu0 %v2238
  %v3146 = vpop.f32.mrf.mxu0
  %v3147 = vadd.f32 0.0, %v3146
  %v3148 = vpop.f32.mrf.mxu0
  %v3149 = vadd.f32 0.0, %v3148
  %v3150 = vpop.f32.mrf.mxu0
  %v3151 = vadd.f32 0.0, %v3150
  %v3152 = vpop.f32.mrf.mxu0
  %v3153 = vadd.f32 0.0, %v3152
  %3154 = vmatprep.mubr.bf16.mxu0 %v2246
  %3155 = vmatmul.mubr.bf16.gmra.mxu0 %v2245
  %v3156 = vpop.f32.mrf.mxu0
  %v3157 = vadd.f32 0.0, %v3156
  %v3158 = vpop.f32.mrf.mxu0
  %v3159 = vadd.f32 0.0, %v3158
  %v3160 = vpop.f32.mrf.mxu0
  %v3161 = vadd.f32 0.0, %v3160
  %v3162 = vpop.f32.mrf.mxu0
  %v3163 = vadd.f32 0.0, %v3162
  %3164 = vmatprep.mubr.bf16.mxu0 %v2253
  %3165 = vmatmul.mubr.bf16.gmra.mxu0 %v2252
  %v3166 = vpop.f32.mrf.mxu0
  %v3167 = vadd.f32 0.0, %v3166
  %v3168 = vpop.f32.mrf.mxu0
  %v3169 = vadd.f32 0.0, %v3168
  %v3170 = vpop.f32.mrf.mxu0
  %v3171 = vadd.f32 0.0, %v3170
  %v3172 = vpop.f32.mrf.mxu0
  %v3173 = vadd.f32 0.0, %v3172
  %3174 = vmatprep.mubr.bf16.mxu0 %v2260
  %3175 = vmatmul.mubr.bf16.gmra.mxu0 %v2259
  %v3176 = vpop.f32.mrf.mxu0
  %v3177 = vadd.f32 0.0, %v3176
  %v3178 = vpop.f32.mrf.mxu0
  %v3179 = vadd.f32 0.0, %v3178
  %v3180 = vpop.f32.mrf.mxu0
  %v3181 = vadd.f32 0.0, %v3180
  %v3182 = vpop.f32.mrf.mxu0
  %v3183 = vadd.f32 0.0, %v3182
  %3184 = vmatprep.mubr.bf16.mxu0 %v2267
  %3185 = vmatmul.mubr.bf16.gmra.mxu0 %v2266
  %v3186 = vpop.f32.mrf.mxu0
  %v3187 = vadd.f32 0.0, %v3186
  %v3188 = vpop.f32.mrf.mxu0
  %v3189 = vadd.f32 0.0, %v3188
  %v3190 = vpop.f32.mrf.mxu0
  %v3191 = vadd.f32 0.0, %v3190
  %v3192 = vpop.f32.mrf.mxu0
  %v3193 = vadd.f32 0.0, %v3192
  %3194 = vmatprep.mubr.bf16.mxu0 %v2274
  %3195 = vmatmul.mubr.bf16.gmra.mxu0 %v2273
  %v3196 = vpop.f32.mrf.mxu0
  %v3197 = vadd.f32 0.0, %v3196
  %v3198 = vpop.f32.mrf.mxu0
  %v3199 = vadd.f32 0.0, %v3198
  %v3200 = vpop.f32.mrf.mxu0
  %v3201 = vadd.f32 0.0, %v3200
  %v3202 = vpop.f32.mrf.mxu0
  %v3203 = vadd.f32 0.0, %v3202
  %3204 = vmatprep.mubr.bf16.mxu0 %v2281
  %3205 = vmatmul.mubr.bf16.gmra.mxu0 %v2280
  %v3206 = vpop.f32.mrf.mxu0
  %v3207 = vadd.f32 0.0, %v3206
  %v3208 = vpop.f32.mrf.mxu0
  %v3209 = vadd.f32 0.0, %v3208
  %v3210 = vpop.f32.mrf.mxu0
  %v3211 = vadd.f32 0.0, %v3210
  %v3212 = vpop.f32.mrf.mxu0
  %v3213 = vadd.f32 0.0, %v3212
  %3214 = vmatprep.mubr.bf16.mxu0 %v2288
  %3215 = vmatmul.mubr.bf16.gmra.mxu0 %v2287
  %v3216 = vpop.f32.mrf.mxu0
  %v3217 = vadd.f32 0.0, %v3216
  %v3218 = vpop.f32.mrf.mxu0
  %v3219 = vadd.f32 0.0, %v3218
  %v3220 = vpop.f32.mrf.mxu0
  %v3221 = vadd.f32 0.0, %v3220
  %v3222 = vpop.f32.mrf.mxu0
  %v3223 = vadd.f32 0.0, %v3222
  %3224 = vmatprep.mubr.bf16.mxu0 %v2295
  %3225 = vmatmul.mubr.bf16.gmra.mxu0 %v2294
  %v3226 = vpop.f32.mrf.mxu0
  %v3227 = vadd.f32 0.0, %v3226
  %v3228 = vpop.f32.mrf.mxu0
  %v3229 = vadd.f32 0.0, %v3228
  %v3230 = vpop.f32.mrf.mxu0
  %v3231 = vadd.f32 0.0, %v3230
  %v3232 = vpop.f32.mrf.mxu0
  %v3233 = vadd.f32 0.0, %v3232
  %3234 = vmatprep.mubr.bf16.mxu0 %v2302
  %3235 = vmatmul.mubr.bf16.gmra.mxu0 %v2301
  %v3236 = vpop.f32.mrf.mxu0
  %v3237 = vadd.f32 0.0, %v3236
  %v3238 = vpop.f32.mrf.mxu0
  %v3239 = vadd.f32 0.0, %v3238
  %v3240 = vpop.f32.mrf.mxu0
  %v3241 = vadd.f32 0.0, %v3240
  %v3242 = vpop.f32.mrf.mxu0
  %v3243 = vadd.f32 0.0, %v3242
  %3244 = vmatprep.mubr.bf16.mxu0 %v2309
  %3245 = vmatmul.mubr.bf16.gmra.mxu0 %v2308
  %v3246 = vpop.f32.mrf.mxu0
  %v3247 = vadd.f32 0.0, %v3246
  %v3248 = vpop.f32.mrf.mxu0
  %v3249 = vadd.f32 0.0, %v3248
  %v3250 = vpop.f32.mrf.mxu0
  %v3251 = vadd.f32 0.0, %v3250
  %v3252 = vpop.f32.mrf.mxu0
  %v3253 = vadd.f32 0.0, %v3252
  %3254 = vmatprep.mubr.bf16.mxu0 %v2316
  %3255 = vmatmul.mubr.bf16.gmra.mxu0 %v2315
  %v3256 = vpop.f32.mrf.mxu0
  %v3257 = vadd.f32 0.0, %v3256
  %v3258 = vpop.f32.mrf.mxu0
  %v3259 = vadd.f32 0.0, %v3258
  %v3260 = vpop.f32.mrf.mxu0
  %v3261 = vadd.f32 0.0, %v3260
  %v3262 = vpop.f32.mrf.mxu0
  %v3263 = vadd.f32 0.0, %v3262
  %3264 = vmatprep.mubr.bf16.mxu0 %v2323
  %3265 = vmatmul.mubr.bf16.gmra.mxu0 %v2322
  %v3266 = vpop.f32.mrf.mxu0
  %v3267 = vadd.f32 0.0, %v3266
  %v3268 = vpop.f32.mrf.mxu0
  %v3269 = vadd.f32 0.0, %v3268
  %v3270 = vpop.f32.mrf.mxu0
  %v3271 = vadd.f32 0.0, %v3270
  %v3272 = vpop.f32.mrf.mxu0
  %v3273 = vadd.f32 0.0, %v3272
  %3274 = vmatprep.mubr.bf16.mxu0 %v2330
  %3275 = vmatmul.mubr.bf16.gmra.mxu0 %v2329
  %v3276 = vpop.f32.mrf.mxu0
  %v3277 = vadd.f32 0.0, %v3276
  %v3278 = vpop.f32.mrf.mxu0
  %v3279 = vadd.f32 0.0, %v3278
  %v3280 = vpop.f32.mrf.mxu0
  %v3281 = vadd.f32 0.0, %v3280
  %v3282 = vpop.f32.mrf.mxu0
  %v3283 = vadd.f32 0.0, %v3282
  %3284 = vmatprep.mubr.bf16.mxu0 %v2337
  %3285 = vmatmul.mubr.bf16.gmra.mxu0 %v2336
  %v3286 = vpop.f32.mrf.mxu0
  %v3287 = vadd.f32 0.0, %v3286
  %v3288 = vpop.f32.mrf.mxu0
  %v3289 = vadd.f32 0.0, %v3288
  %v3290 = vpop.f32.mrf.mxu0
  %v3291 = vadd.f32 0.0, %v3290
  %v3292 = vpop.f32.mrf.mxu0
  %v3293 = vadd.f32 0.0, %v3292
  %3294 = vmatprep.mubr.bf16.mxu0 %v2344
  %3295 = vmatmul.mubr.bf16.gmra.mxu0 %v2343
  %v3296 = vpop.f32.mrf.mxu0
  %v3297 = vadd.f32 0.0, %v3296
  %v3298 = vpop.f32.mrf.mxu0
  %v3299 = vadd.f32 0.0, %v3298
  %v3300 = vpop.f32.mrf.mxu0
  %v3301 = vadd.f32 0.0, %v3300
  %v3302 = vpop.f32.mrf.mxu0
  %v3303 = vadd.f32 0.0, %v3302
  %3304 = vmatprep.mubr.bf16.mxu0 %v2351
  %3305 = vmatmul.mubr.bf16.gmra.mxu0 %v2350
  %v3306 = vpop.f32.mrf.mxu0
  %v3307 = vadd.f32 0.0, %v3306
  %v3308 = vpop.f32.mrf.mxu0
  %v3309 = vadd.f32 0.0, %v3308
  %v3310 = vpop.f32.mrf.mxu0
  %v3311 = vadd.f32 0.0, %v3310
  %v3312 = vpop.f32.mrf.mxu0
  %v3313 = vadd.f32 0.0, %v3312
  %3314 = vmatprep.mubr.bf16.mxu0 %v2358
  %3315 = vmatmul.mubr.bf16.gmra.mxu0 %v2357
  %v3316 = vpop.f32.mrf.mxu0
  %v3317 = vadd.f32 0.0, %v3316
  %v3318 = vpop.f32.mrf.mxu0
  %v3319 = vadd.f32 0.0, %v3318
  %v3320 = vpop.f32.mrf.mxu0
  %v3321 = vadd.f32 0.0, %v3320
  %v3322 = vpop.f32.mrf.mxu0
  %v3323 = vadd.f32 0.0, %v3322
  %3324 = vmatprep.mubr.bf16.mxu0 %v2365
  %3325 = vmatmul.mubr.bf16.gmra.mxu0 %v2364
  %v3326 = vpop.f32.mrf.mxu0
  %v3327 = vadd.f32 0.0, %v3326
  %v3328 = vpop.f32.mrf.mxu0
  %v3329 = vadd.f32 0.0, %v3328
  %v3330 = vpop.f32.mrf.mxu0
  %v3331 = vadd.f32 0.0, %v3330
  %v3332 = vpop.f32.mrf.mxu0
  %v3333 = vadd.f32 0.0, %v3332
  %3334 = vmatprep.mubr.bf16.mxu0 %v2372
  %3335 = vmatmul.mubr.bf16.gmra.mxu0 %v2371
  %v3336 = vpop.f32.mrf.mxu0
  %v3337 = vadd.f32 0.0, %v3336
  %v3338 = vpop.f32.mrf.mxu0
  %v3339 = vadd.f32 0.0, %v3338
  %v3340 = vpop.f32.mrf.mxu0
  %v3341 = vadd.f32 0.0, %v3340
  %v3342 = vpop.f32.mrf.mxu0
  %v3343 = vadd.f32 0.0, %v3342
  %3344 = vmatprep.mubr.bf16.mxu0 %v2379
  %3345 = vmatmul.mubr.bf16.gmra.mxu0 %v2378
  %v3346 = vpop.f32.mrf.mxu0
  %v3347 = vadd.f32 0.0, %v3346
  %v3348 = vpop.f32.mrf.mxu0
  %v3349 = vadd.f32 0.0, %v3348
  %v3350 = vpop.f32.mrf.mxu0
  %v3351 = vadd.f32 0.0, %v3350
  %v3352 = vpop.f32.mrf.mxu0
  %v3353 = vadd.f32 0.0, %v3352
  %3354 = vmatprep.mubr.bf16.mxu0 %v2386
  %3355 = vmatmul.mubr.bf16.gmra.mxu0 %v2385
  %v3356 = vpop.f32.mrf.mxu0
  %v3357 = vadd.f32 0.0, %v3356
  %v3358 = vpop.f32.mrf.mxu0
  %v3359 = vadd.f32 0.0, %v3358
  %v3360 = vpop.f32.mrf.mxu0
  %v3361 = vadd.f32 0.0, %v3360
  %v3362 = vpop.f32.mrf.mxu0
  %v3363 = vadd.f32 0.0, %v3362
  %3364 = vmatprep.mubr.bf16.mxu0 %v2393
  %3365 = vmatmul.mubr.bf16.gmra.mxu0 %v2392
  %v3366 = vpop.f32.mrf.mxu0
  %v3367 = vadd.f32 0.0, %v3366
  %v3368 = vpop.f32.mrf.mxu0
  %v3369 = vadd.f32 0.0, %v3368
  %v3370 = vpop.f32.mrf.mxu0
  %v3371 = vadd.f32 0.0, %v3370
  %v3372 = vpop.f32.mrf.mxu0
  %v3373 = vadd.f32 0.0, %v3372
  %3374 = vmatprep.mubr.bf16.mxu0 %v2400
  %3375 = vmatmul.mubr.bf16.gmra.mxu0 %v2399
  %v3376 = vpop.f32.mrf.mxu0
  %v3377 = vadd.f32 0.0, %v3376
  %v3378 = vpop.f32.mrf.mxu0
  %v3379 = vadd.f32 0.0, %v3378
  %v3380 = vpop.f32.mrf.mxu0
  %v3381 = vadd.f32 0.0, %v3380
  %v3382 = vpop.f32.mrf.mxu0
  %v3383 = vadd.f32 0.0, %v3382
  %3384 = vmatprep.mubr.bf16.mxu0 %v2407
  %3385 = vmatmul.mubr.bf16.gmra.mxu0 %v2406
  %v3386 = vpop.f32.mrf.mxu0
  %v3387 = vadd.f32 0.0, %v3386
  %v3388 = vpop.f32.mrf.mxu0
  %v3389 = vadd.f32 0.0, %v3388
  %v3390 = vpop.f32.mrf.mxu0
  %v3391 = vadd.f32 0.0, %v3390
  %v3392 = vpop.f32.mrf.mxu0
  %v3393 = vadd.f32 0.0, %v3392
  %3394 = vmatprep.mubr.bf16.mxu0 %v2414
  %3395 = vmatmul.mubr.bf16.gmra.mxu0 %v2413
  %v3396 = vpop.f32.mrf.mxu0
  %v3397 = vadd.f32 0.0, %v3396
  %v3398 = vpop.f32.mrf.mxu0
  %v3399 = vadd.f32 0.0, %v3398
  %v3400 = vpop.f32.mrf.mxu0
  %v3401 = vadd.f32 0.0, %v3400
  %v3402 = vpop.f32.mrf.mxu0
  %v3403 = vadd.f32 0.0, %v3402
  %3404 = vdwg.mxu0
  %3405 = vmatprep.subr.bf16.mxu0 %v283
  %3406 = vmatpush1.bf16.msra.mxu0 %v282
  %3407 = vmatprep.subr.bf16.mxu0 %v281
  %3408 = vmatpush1.bf16.msra.mxu0 %v280
  %3409 = vmatprep.subr.bf16.mxu0 %v279
  %3410 = vmatpush1.bf16.msra.mxu0 %v278
  %3411 = vmatprep.subr.bf16.mxu0 %v277
  %3412 = vmatpush1.bf16.msra.mxu0 %v276
  %3413 = vmatprep.subr.bf16.mxu0 %v275
  %3414 = vmatpush1.bf16.msra.mxu0 %v274
  %3415 = vmatprep.subr.bf16.mxu0 %v273
  %3416 = vmatpush1.bf16.msra.mxu0 %v272
  %3417 = vmatprep.subr.bf16.mxu0 %v271
  %3418 = vmatpush1.bf16.msra.mxu0 %v270
  %3419 = vmatprep.subr.bf16.mxu0 %v269
  %3420 = vmatpush1.bf16.msra.mxu0 %v268
  %3421 = vmatprep.subr.bf16.mxu0 %v299
  %3422 = vmatpush2.bf16.msra.mxu0 %v298
  %3423 = vmatprep.subr.bf16.mxu0 %v297
  %3424 = vmatpush2.bf16.msra.mxu0 %v296
  %3425 = vmatprep.subr.bf16.mxu0 %v295
  %3426 = vmatpush2.bf16.msra.mxu0 %v294
  %3427 = vmatprep.subr.bf16.mxu0 %v293
  %3428 = vmatpush2.bf16.msra.mxu0 %v292
  %3429 = vmatprep.subr.bf16.mxu0 %v291
  %3430 = vmatpush2.bf16.msra.mxu0 %v290
  %3431 = vmatprep.subr.bf16.mxu0 %v289
  %3432 = vmatpush2.bf16.msra.mxu0 %v288
  %3433 = vmatprep.subr.bf16.mxu0 %v287
  %3434 = vmatpush2.bf16.msra.mxu0 %v286
  %3435 = vmatprep.subr.bf16.mxu0 %v285
  %3436 = vmatpush2.bf16.msra.mxu0 %v284
  %3437 = vmatprep.mubr.bf16.mxu0 %v2031
  %3438 = vmatmul.mubr.bf16.gmra.mxu0 %v2030
  %v3439 = vpop.f32.mrf.mxu0
  %v3440 = vadd.f32 %v2847, %v3439
  %v3441 = vpop.f32.mrf.mxu0
  %v3442 = vadd.f32 %v2849, %v3441
  %v3443 = vpop.f32.mrf.mxu0
  %v3444 = vadd.f32 %v2851, %v3443
  %v3445 = vpop.f32.mrf.mxu0
  %v3446 = vadd.f32 %v2853, %v3445
  %3447 = vmatprep.mubr.bf16.mxu0 %v2038
  %3448 = vmatmul.mubr.bf16.gmra.mxu0 %v2037
  %v3449 = vpop.f32.mrf.mxu0
  %v3450 = vadd.f32 %v2857, %v3449
  %v3451 = vpop.f32.mrf.mxu0
  %v3452 = vadd.f32 %v2859, %v3451
  %v3453 = vpop.f32.mrf.mxu0
  %v3454 = vadd.f32 %v2861, %v3453
  %v3455 = vpop.f32.mrf.mxu0
  %v3456 = vadd.f32 %v2863, %v3455
  %3457 = vmatprep.mubr.bf16.mxu0 %v2045
  %3458 = vmatmul.mubr.bf16.gmra.mxu0 %v2044
  %v3459 = vpop.f32.mrf.mxu0
  %v3460 = vadd.f32 %v2867, %v3459
  %v3461 = vpop.f32.mrf.mxu0
  %v3462 = vadd.f32 %v2869, %v3461
  %v3463 = vpop.f32.mrf.mxu0
  %v3464 = vadd.f32 %v2871, %v3463
  %v3465 = vpop.f32.mrf.mxu0
  %v3466 = vadd.f32 %v2873, %v3465
  %3467 = vmatprep.mubr.bf16.mxu0 %v2052
  %3468 = vmatmul.mubr.bf16.gmra.mxu0 %v2051
  %v3469 = vpop.f32.mrf.mxu0
  %v3470 = vadd.f32 %v2877, %v3469
  %v3471 = vpop.f32.mrf.mxu0
  %v3472 = vadd.f32 %v2879, %v3471
  %v3473 = vpop.f32.mrf.mxu0
  %v3474 = vadd.f32 %v2881, %v3473
  %v3475 = vpop.f32.mrf.mxu0
  %v3476 = vadd.f32 %v2883, %v3475
  %3477 = vmatprep.mubr.bf16.mxu0 %v2059
  %3478 = vmatmul.mubr.bf16.gmra.mxu0 %v2058
  %v3479 = vpop.f32.mrf.mxu0
  %v3480 = vadd.f32 %v2887, %v3479
  %v3481 = vpop.f32.mrf.mxu0
  %v3482 = vadd.f32 %v2889, %v3481
  %v3483 = vpop.f32.mrf.mxu0
  %v3484 = vadd.f32 %v2891, %v3483
  %v3485 = vpop.f32.mrf.mxu0
  %v3486 = vadd.f32 %v2893, %v3485
  %3487 = vmatprep.mubr.bf16.mxu0 %v2066
  %3488 = vmatmul.mubr.bf16.gmra.mxu0 %v2065
  %v3489 = vpop.f32.mrf.mxu0
  %v3490 = vadd.f32 %v2897, %v3489
  %v3491 = vpop.f32.mrf.mxu0
  %v3492 = vadd.f32 %v2899, %v3491
  %v3493 = vpop.f32.mrf.mxu0
  %v3494 = vadd.f32 %v2901, %v3493
  %v3495 = vpop.f32.mrf.mxu0
  %v3496 = vadd.f32 %v2903, %v3495
  %3497 = vmatprep.mubr.bf16.mxu0 %v2073
  %3498 = vmatmul.mubr.bf16.gmra.mxu0 %v2072
  %v3499 = vpop.f32.mrf.mxu0
  %v3500 = vadd.f32 %v2907, %v3499
  %v3501 = vpop.f32.mrf.mxu0
  %v3502 = vadd.f32 %v2909, %v3501
  %v3503 = vpop.f32.mrf.mxu0
  %v3504 = vadd.f32 %v2911, %v3503
  %v3505 = vpop.f32.mrf.mxu0
  %v3506 = vadd.f32 %v2913, %v3505
  %3507 = vmatprep.mubr.bf16.mxu0 %v2080
  %3508 = vmatmul.mubr.bf16.gmra.mxu0 %v2079
  %v3509 = vpop.f32.mrf.mxu0
  %v3510 = vadd.f32 %v2917, %v3509
  %v3511 = vpop.f32.mrf.mxu0
  %v3512 = vadd.f32 %v2919, %v3511
  %v3513 = vpop.f32.mrf.mxu0
  %v3514 = vadd.f32 %v2921, %v3513
  %v3515 = vpop.f32.mrf.mxu0
  %v3516 = vadd.f32 %v2923, %v3515
  %3517 = vmatprep.mubr.bf16.mxu0 %v2087
  %3518 = vmatmul.mubr.bf16.gmra.mxu0 %v2086
  %v3519 = vpop.f32.mrf.mxu0
  %v3520 = vadd.f32 %v2927, %v3519
  %v3521 = vpop.f32.mrf.mxu0
  %v3522 = vadd.f32 %v2929, %v3521
  %v3523 = vpop.f32.mrf.mxu0
  %v3524 = vadd.f32 %v2931, %v3523
  %v3525 = vpop.f32.mrf.mxu0
  %v3526 = vadd.f32 %v2933, %v3525
  %3527 = vmatprep.mubr.bf16.mxu0 %v2094
  %3528 = vmatmul.mubr.bf16.gmra.mxu0 %v2093
  %v3529 = vpop.f32.mrf.mxu0
  %v3530 = vadd.f32 %v2937, %v3529
  %v3531 = vpop.f32.mrf.mxu0
  %v3532 = vadd.f32 %v2939, %v3531
  %v3533 = vpop.f32.mrf.mxu0
  %v3534 = vadd.f32 %v2941, %v3533
  %v3535 = vpop.f32.mrf.mxu0
  %v3536 = vadd.f32 %v2943, %v3535
  %3537 = vmatprep.mubr.bf16.mxu0 %v2101
  %3538 = vmatmul.mubr.bf16.gmra.mxu0 %v2100
  %v3539 = vpop.f32.mrf.mxu0
  %v3540 = vadd.f32 %v2947, %v3539
  %v3541 = vpop.f32.mrf.mxu0
  %v3542 = vadd.f32 %v2949, %v3541
  %v3543 = vpop.f32.mrf.mxu0
  %v3544 = vadd.f32 %v2951, %v3543
  %v3545 = vpop.f32.mrf.mxu0
  %v3546 = vadd.f32 %v2953, %v3545
  %3547 = vmatprep.mubr.bf16.mxu0 %v2108
  %3548 = vmatmul.mubr.bf16.gmra.mxu0 %v2107
  %v3549 = vpop.f32.mrf.mxu0
  %v3550 = vadd.f32 %v2957, %v3549
  %v3551 = vpop.f32.mrf.mxu0
  %v3552 = vadd.f32 %v2959, %v3551
  %v3553 = vpop.f32.mrf.mxu0
  %v3554 = vadd.f32 %v2961, %v3553
  %v3555 = vpop.f32.mrf.mxu0
  %v3556 = vadd.f32 %v2963, %v3555
  %3557 = vmatprep.mubr.bf16.mxu0 %v2115
  %3558 = vmatmul.mubr.bf16.gmra.mxu0 %v2114
  %v3559 = vpop.f32.mrf.mxu0
  %v3560 = vadd.f32 %v2967, %v3559
  %v3561 = vpop.f32.mrf.mxu0
  %v3562 = vadd.f32 %v2969, %v3561
  %v3563 = vpop.f32.mrf.mxu0
  %v3564 = vadd.f32 %v2971, %v3563
  %v3565 = vpop.f32.mrf.mxu0
  %v3566 = vadd.f32 %v2973, %v3565
  %3567 = vmatprep.mubr.bf16.mxu0 %v2122
  %3568 = vmatmul.mubr.bf16.gmra.mxu0 %v2121
  %v3569 = vpop.f32.mrf.mxu0
  %v3570 = vadd.f32 %v2977, %v3569
  %v3571 = vpop.f32.mrf.mxu0
  %v3572 = vadd.f32 %v2979, %v3571
  %v3573 = vpop.f32.mrf.mxu0
  %v3574 = vadd.f32 %v2981, %v3573
  %v3575 = vpop.f32.mrf.mxu0
  %v3576 = vadd.f32 %v2983, %v3575
  %3577 = vmatprep.mubr.bf16.mxu0 %v2129
  %3578 = vmatmul.mubr.bf16.gmra.mxu0 %v2128
  %v3579 = vpop.f32.mrf.mxu0
  %v3580 = vadd.f32 %v2987, %v3579
  %v3581 = vpop.f32.mrf.mxu0
  %v3582 = vadd.f32 %v2989, %v3581
  %v3583 = vpop.f32.mrf.mxu0
  %v3584 = vadd.f32 %v2991, %v3583
  %v3585 = vpop.f32.mrf.mxu0
  %v3586 = vadd.f32 %v2993, %v3585
  %3587 = vmatprep.mubr.bf16.mxu0 %v2136
  %3588 = vmatmul.mubr.bf16.gmra.mxu0 %v2135
  %v3589 = vpop.f32.mrf.mxu0
  %v3590 = vadd.f32 %v2997, %v3589
  %v3591 = vpop.f32.mrf.mxu0
  %v3592 = vadd.f32 %v2999, %v3591
  %v3593 = vpop.f32.mrf.mxu0
  %v3594 = vadd.f32 %v3001, %v3593
  %v3595 = vpop.f32.mrf.mxu0
  %v3596 = vadd.f32 %v3003, %v3595
  %3597 = vmatprep.mubr.bf16.mxu0 %v2143
  %3598 = vmatmul.mubr.bf16.gmra.mxu0 %v2142
  %v3599 = vpop.f32.mrf.mxu0
  %v3600 = vadd.f32 %v3007, %v3599
  %v3601 = vpop.f32.mrf.mxu0
  %v3602 = vadd.f32 %v3009, %v3601
  %v3603 = vpop.f32.mrf.mxu0
  %v3604 = vadd.f32 %v3011, %v3603
  %v3605 = vpop.f32.mrf.mxu0
  %v3606 = vadd.f32 %v3013, %v3605
  %3607 = vmatprep.mubr.bf16.mxu0 %v2150
  %3608 = vmatmul.mubr.bf16.gmra.mxu0 %v2149
  %v3609 = vpop.f32.mrf.mxu0
  %v3610 = vadd.f32 %v3017, %v3609
  %v3611 = vpop.f32.mrf.mxu0
  %v3612 = vadd.f32 %v3019, %v3611
  %v3613 = vpop.f32.mrf.mxu0
  %v3614 = vadd.f32 %v3021, %v3613
  %v3615 = vpop.f32.mrf.mxu0
  %v3616 = vadd.f32 %v3023, %v3615
  %3617 = vmatprep.mubr.bf16.mxu0 %v2157
  %3618 = vmatmul.mubr.bf16.gmra.mxu0 %v2156
  %v3619 = vpop.f32.mrf.mxu0
  %v3620 = vadd.f32 %v3027, %v3619
  %v3621 = vpop.f32.mrf.mxu0
  %v3622 = vadd.f32 %v3029, %v3621
  %v3623 = vpop.f32.mrf.mxu0
  %v3624 = vadd.f32 %v3031, %v3623
  %v3625 = vpop.f32.mrf.mxu0
  %v3626 = vadd.f32 %v3033, %v3625
  %3627 = vmatprep.mubr.bf16.mxu0 %v2164
  %3628 = vmatmul.mubr.bf16.gmra.mxu0 %v2163
  %v3629 = vpop.f32.mrf.mxu0
  %v3630 = vadd.f32 %v3037, %v3629
  %v3631 = vpop.f32.mrf.mxu0
  %v3632 = vadd.f32 %v3039, %v3631
  %v3633 = vpop.f32.mrf.mxu0
  %v3634 = vadd.f32 %v3041, %v3633
  %v3635 = vpop.f32.mrf.mxu0
  %v3636 = vadd.f32 %v3043, %v3635
  %3637 = vmatprep.mubr.bf16.mxu0 %v2171
  %3638 = vmatmul.mubr.bf16.gmra.mxu0 %v2170
  %v3639 = vpop.f32.mrf.mxu0
  %v3640 = vadd.f32 %v3047, %v3639
  %v3641 = vpop.f32.mrf.mxu0
  %v3642 = vadd.f32 %v3049, %v3641
  %v3643 = vpop.f32.mrf.mxu0
  %v3644 = vadd.f32 %v3051, %v3643
  %v3645 = vpop.f32.mrf.mxu0
  %v3646 = vadd.f32 %v3053, %v3645
  %3647 = vmatprep.mubr.bf16.mxu0 %v2178
  %3648 = vmatmul.mubr.bf16.gmra.mxu0 %v2177
  %v3649 = vpop.f32.mrf.mxu0
  %v3650 = vadd.f32 %v3057, %v3649
  %v3651 = vpop.f32.mrf.mxu0
  %v3652 = vadd.f32 %v3059, %v3651
  %v3653 = vpop.f32.mrf.mxu0
  %v3654 = vadd.f32 %v3061, %v3653
  %v3655 = vpop.f32.mrf.mxu0
  %v3656 = vadd.f32 %v3063, %v3655
  %3657 = vmatprep.mubr.bf16.mxu0 %v2185
  %3658 = vmatmul.mubr.bf16.gmra.mxu0 %v2184
  %v3659 = vpop.f32.mrf.mxu0
  %v3660 = vadd.f32 %v3067, %v3659
  %v3661 = vpop.f32.mrf.mxu0
  %v3662 = vadd.f32 %v3069, %v3661
  %v3663 = vpop.f32.mrf.mxu0
  %v3664 = vadd.f32 %v3071, %v3663
  %v3665 = vpop.f32.mrf.mxu0
  %v3666 = vadd.f32 %v3073, %v3665
  %3667 = vmatprep.mubr.bf16.mxu0 %v2192
  %3668 = vmatmul.mubr.bf16.gmra.mxu0 %v2191
  %v3669 = vpop.f32.mrf.mxu0
  %v3670 = vadd.f32 %v3077, %v3669
  %v3671 = vpop.f32.mrf.mxu0
  %v3672 = vadd.f32 %v3079, %v3671
  %v3673 = vpop.f32.mrf.mxu0
  %v3674 = vadd.f32 %v3081, %v3673
  %v3675 = vpop.f32.mrf.mxu0
  %v3676 = vadd.f32 %v3083, %v3675
  %3677 = vmatprep.mubr.bf16.mxu0 %v2199
  %3678 = vmatmul.mubr.bf16.gmra.mxu0 %v2198
  %v3679 = vpop.f32.mrf.mxu0
  %v3680 = vadd.f32 %v3087, %v3679
  %v3681 = vpop.f32.mrf.mxu0
  %v3682 = vadd.f32 %v3089, %v3681
  %v3683 = vpop.f32.mrf.mxu0
  %v3684 = vadd.f32 %v3091, %v3683
  %v3685 = vpop.f32.mrf.mxu0
  %v3686 = vadd.f32 %v3093, %v3685
  %3687 = vmatprep.mubr.bf16.mxu0 %v2206
  %3688 = vmatmul.mubr.bf16.gmra.mxu0 %v2205
  %v3689 = vpop.f32.mrf.mxu0
  %v3690 = vadd.f32 %v3097, %v3689
  %v3691 = vpop.f32.mrf.mxu0
  %v3692 = vadd.f32 %v3099, %v3691
  %v3693 = vpop.f32.mrf.mxu0
  %v3694 = vadd.f32 %v3101, %v3693
  %v3695 = vpop.f32.mrf.mxu0
  %v3696 = vadd.f32 %v3103, %v3695
  %3697 = vmatprep.mubr.bf16.mxu0 %v2213
  %3698 = vmatmul.mubr.bf16.gmra.mxu0 %v2212
  %v3699 = vpop.f32.mrf.mxu0
  %v3700 = vadd.f32 %v3107, %v3699
  %v3701 = vpop.f32.mrf.mxu0
  %v3702 = vadd.f32 %v3109, %v3701
  %v3703 = vpop.f32.mrf.mxu0
  %v3704 = vadd.f32 %v3111, %v3703
  %v3705 = vpop.f32.mrf.mxu0
  %v3706 = vadd.f32 %v3113, %v3705
  %3707 = vmatprep.mubr.bf16.mxu0 %v2220
  %3708 = vmatmul.mubr.bf16.gmra.mxu0 %v2219
  %v3709 = vpop.f32.mrf.mxu0
  %v3710 = vadd.f32 %v3117, %v3709
  %v3711 = vpop.f32.mrf.mxu0
  %v3712 = vadd.f32 %v3119, %v3711
  %v3713 = vpop.f32.mrf.mxu0
  %v3714 = vadd.f32 %v3121, %v3713
  %v3715 = vpop.f32.mrf.mxu0
  %v3716 = vadd.f32 %v3123, %v3715
  %3717 = vmatprep.mubr.bf16.mxu0 %v2227
  %3718 = vmatmul.mubr.bf16.gmra.mxu0 %v2226
  %v3719 = vpop.f32.mrf.mxu0
  %v3720 = vadd.f32 %v3127, %v3719
  %v3721 = vpop.f32.mrf.mxu0
  %v3722 = vadd.f32 %v3129, %v3721
  %v3723 = vpop.f32.mrf.mxu0
  %v3724 = vadd.f32 %v3131, %v3723
  %v3725 = vpop.f32.mrf.mxu0
  %v3726 = vadd.f32 %v3133, %v3725
  %3727 = vmatprep.mubr.bf16.mxu0 %v2234
  %3728 = vmatmul.mubr.bf16.gmra.mxu0 %v2233
  %v3729 = vpop.f32.mrf.mxu0
  %v3730 = vadd.f32 %v3137, %v3729
  %v3731 = vpop.f32.mrf.mxu0
  %v3732 = vadd.f32 %v3139, %v3731
  %v3733 = vpop.f32.mrf.mxu0
  %v3734 = vadd.f32 %v3141, %v3733
  %v3735 = vpop.f32.mrf.mxu0
  %v3736 = vadd.f32 %v3143, %v3735
  %3737 = vmatprep.mubr.bf16.mxu0 %v2241
  %3738 = vmatmul.mubr.bf16.gmra.mxu0 %v2240
  %v3739 = vpop.f32.mrf.mxu0
  %v3740 = vadd.f32 %v3147, %v3739
  %v3741 = vpop.f32.mrf.mxu0
  %v3742 = vadd.f32 %v3149, %v3741
  %v3743 = vpop.f32.mrf.mxu0
  %v3744 = vadd.f32 %v3151, %v3743
  %v3745 = vpop.f32.mrf.mxu0
  %v3746 = vadd.f32 %v3153, %v3745
  %3747 = vmatprep.mubr.bf16.mxu0 %v2248
  %3748 = vmatmul.mubr.bf16.gmra.mxu0 %v2247
  %v3749 = vpop.f32.mrf.mxu0
  %v3750 = vadd.f32 %v3157, %v3749
  %v3751 = vpop.f32.mrf.mxu0
  %v3752 = vadd.f32 %v3159, %v3751
  %v3753 = vpop.f32.mrf.mxu0
  %v3754 = vadd.f32 %v3161, %v3753
  %v3755 = vpop.f32.mrf.mxu0
  %v3756 = vadd.f32 %v3163, %v3755
  %3757 = vmatprep.mubr.bf16.mxu0 %v2255
  %3758 = vmatmul.mubr.bf16.gmra.mxu0 %v2254
  %v3759 = vpop.f32.mrf.mxu0
  %v3760 = vadd.f32 %v3167, %v3759
  %v3761 = vpop.f32.mrf.mxu0
  %v3762 = vadd.f32 %v3169, %v3761
  %v3763 = vpop.f32.mrf.mxu0
  %v3764 = vadd.f32 %v3171, %v3763
  %v3765 = vpop.f32.mrf.mxu0
  %v3766 = vadd.f32 %v3173, %v3765
  %3767 = vmatprep.mubr.bf16.mxu0 %v2262
  %3768 = vmatmul.mubr.bf16.gmra.mxu0 %v2261
  %v3769 = vpop.f32.mrf.mxu0
  %v3770 = vadd.f32 %v3177, %v3769
  %v3771 = vpop.f32.mrf.mxu0
  %v3772 = vadd.f32 %v3179, %v3771
  %v3773 = vpop.f32.mrf.mxu0
  %v3774 = vadd.f32 %v3181, %v3773
  %v3775 = vpop.f32.mrf.mxu0
  %v3776 = vadd.f32 %v3183, %v3775
  %3777 = vmatprep.mubr.bf16.mxu0 %v2269
  %3778 = vmatmul.mubr.bf16.gmra.mxu0 %v2268
  %v3779 = vpop.f32.mrf.mxu0
  %v3780 = vadd.f32 %v3187, %v3779
  %v3781 = vpop.f32.mrf.mxu0
  %v3782 = vadd.f32 %v3189, %v3781
  %v3783 = vpop.f32.mrf.mxu0
  %v3784 = vadd.f32 %v3191, %v3783
  %v3785 = vpop.f32.mrf.mxu0
  %v3786 = vadd.f32 %v3193, %v3785
  %3787 = vmatprep.mubr.bf16.mxu0 %v2276
  %3788 = vmatmul.mubr.bf16.gmra.mxu0 %v2275
  %v3789 = vpop.f32.mrf.mxu0
  %v3790 = vadd.f32 %v3197, %v3789
  %v3791 = vpop.f32.mrf.mxu0
  %v3792 = vadd.f32 %v3199, %v3791
  %v3793 = vpop.f32.mrf.mxu0
  %v3794 = vadd.f32 %v3201, %v3793
  %v3795 = vpop.f32.mrf.mxu0
  %v3796 = vadd.f32 %v3203, %v3795
  %3797 = vmatprep.mubr.bf16.mxu0 %v2283
  %3798 = vmatmul.mubr.bf16.gmra.mxu0 %v2282
  %v3799 = vpop.f32.mrf.mxu0
  %v3800 = vadd.f32 %v3207, %v3799
  %v3801 = vpop.f32.mrf.mxu0
  %v3802 = vadd.f32 %v3209, %v3801
  %v3803 = vpop.f32.mrf.mxu0
  %v3804 = vadd.f32 %v3211, %v3803
  %v3805 = vpop.f32.mrf.mxu0
  %v3806 = vadd.f32 %v3213, %v3805
  %3807 = vmatprep.mubr.bf16.mxu0 %v2290
  %3808 = vmatmul.mubr.bf16.gmra.mxu0 %v2289
  %v3809 = vpop.f32.mrf.mxu0
  %v3810 = vadd.f32 %v3217, %v3809
  %v3811 = vpop.f32.mrf.mxu0
  %v3812 = vadd.f32 %v3219, %v3811
  %v3813 = vpop.f32.mrf.mxu0
  %v3814 = vadd.f32 %v3221, %v3813
  %v3815 = vpop.f32.mrf.mxu0
  %v3816 = vadd.f32 %v3223, %v3815
  %3817 = vmatprep.mubr.bf16.mxu0 %v2297
  %3818 = vmatmul.mubr.bf16.gmra.mxu0 %v2296
  %v3819 = vpop.f32.mrf.mxu0
  %v3820 = vadd.f32 %v3227, %v3819
  %v3821 = vpop.f32.mrf.mxu0
  %v3822 = vadd.f32 %v3229, %v3821
  %v3823 = vpop.f32.mrf.mxu0
  %v3824 = vadd.f32 %v3231, %v3823
  %v3825 = vpop.f32.mrf.mxu0
  %v3826 = vadd.f32 %v3233, %v3825
  %3827 = vmatprep.mubr.bf16.mxu0 %v2304
  %3828 = vmatmul.mubr.bf16.gmra.mxu0 %v2303
  %v3829 = vpop.f32.mrf.mxu0
  %v3830 = vadd.f32 %v3237, %v3829
  %v3831 = vpop.f32.mrf.mxu0
  %v3832 = vadd.f32 %v3239, %v3831
  %v3833 = vpop.f32.mrf.mxu0
  %v3834 = vadd.f32 %v3241, %v3833
  %v3835 = vpop.f32.mrf.mxu0
  %v3836 = vadd.f32 %v3243, %v3835
  %3837 = vmatprep.mubr.bf16.mxu0 %v2311
  %3838 = vmatmul.mubr.bf16.gmra.mxu0 %v2310
  %v3839 = vpop.f32.mrf.mxu0
  %v3840 = vadd.f32 %v3247, %v3839
  %v3841 = vpop.f32.mrf.mxu0
  %v3842 = vadd.f32 %v3249, %v3841
  %v3843 = vpop.f32.mrf.mxu0
  %v3844 = vadd.f32 %v3251, %v3843
  %v3845 = vpop.f32.mrf.mxu0
  %v3846 = vadd.f32 %v3253, %v3845
  %3847 = vmatprep.mubr.bf16.mxu0 %v2318
  %3848 = vmatmul.mubr.bf16.gmra.mxu0 %v2317
  %v3849 = vpop.f32.mrf.mxu0
  %v3850 = vadd.f32 %v3257, %v3849
  %v3851 = vpop.f32.mrf.mxu0
  %v3852 = vadd.f32 %v3259, %v3851
  %v3853 = vpop.f32.mrf.mxu0
  %v3854 = vadd.f32 %v3261, %v3853
  %v3855 = vpop.f32.mrf.mxu0
  %v3856 = vadd.f32 %v3263, %v3855
  %3857 = vmatprep.mubr.bf16.mxu0 %v2325
  %3858 = vmatmul.mubr.bf16.gmra.mxu0 %v2324
  %v3859 = vpop.f32.mrf.mxu0
  %v3860 = vadd.f32 %v3267, %v3859
  %v3861 = vpop.f32.mrf.mxu0
  %v3862 = vadd.f32 %v3269, %v3861
  %v3863 = vpop.f32.mrf.mxu0
  %v3864 = vadd.f32 %v3271, %v3863
  %v3865 = vpop.f32.mrf.mxu0
  %v3866 = vadd.f32 %v3273, %v3865
  %3867 = vmatprep.mubr.bf16.mxu0 %v2332
  %3868 = vmatmul.mubr.bf16.gmra.mxu0 %v2331
  %v3869 = vpop.f32.mrf.mxu0
  %v3870 = vadd.f32 %v3277, %v3869
  %v3871 = vpop.f32.mrf.mxu0
  %v3872 = vadd.f32 %v3279, %v3871
  %v3873 = vpop.f32.mrf.mxu0
  %v3874 = vadd.f32 %v3281, %v3873
  %v3875 = vpop.f32.mrf.mxu0
  %v3876 = vadd.f32 %v3283, %v3875
  %3877 = vmatprep.mubr.bf16.mxu0 %v2339
  %3878 = vmatmul.mubr.bf16.gmra.mxu0 %v2338
  %v3879 = vpop.f32.mrf.mxu0
  %v3880 = vadd.f32 %v3287, %v3879
  %v3881 = vpop.f32.mrf.mxu0
  %v3882 = vadd.f32 %v3289, %v3881
  %v3883 = vpop.f32.mrf.mxu0
  %v3884 = vadd.f32 %v3291, %v3883
  %v3885 = vpop.f32.mrf.mxu0
  %v3886 = vadd.f32 %v3293, %v3885
  %3887 = vmatprep.mubr.bf16.mxu0 %v2346
  %3888 = vmatmul.mubr.bf16.gmra.mxu0 %v2345
  %v3889 = vpop.f32.mrf.mxu0
  %v3890 = vadd.f32 %v3297, %v3889
  %v3891 = vpop.f32.mrf.mxu0
  %v3892 = vadd.f32 %v3299, %v3891
  %v3893 = vpop.f32.mrf.mxu0
  %v3894 = vadd.f32 %v3301, %v3893
  %v3895 = vpop.f32.mrf.mxu0
  %v3896 = vadd.f32 %v3303, %v3895
  %3897 = vmatprep.mubr.bf16.mxu0 %v2353
  %3898 = vmatmul.mubr.bf16.gmra.mxu0 %v2352
  %v3899 = vpop.f32.mrf.mxu0
  %v3900 = vadd.f32 %v3307, %v3899
  %v3901 = vpop.f32.mrf.mxu0
  %v3902 = vadd.f32 %v3309, %v3901
  %v3903 = vpop.f32.mrf.mxu0
  %v3904 = vadd.f32 %v3311, %v3903
  %v3905 = vpop.f32.mrf.mxu0
  %v3906 = vadd.f32 %v3313, %v3905
  %3907 = vmatprep.mubr.bf16.mxu0 %v2360
  %3908 = vmatmul.mubr.bf16.gmra.mxu0 %v2359
  %v3909 = vpop.f32.mrf.mxu0
  %v3910 = vadd.f32 %v3317, %v3909
  %v3911 = vpop.f32.mrf.mxu0
  %v3912 = vadd.f32 %v3319, %v3911
  %v3913 = vpop.f32.mrf.mxu0
  %v3914 = vadd.f32 %v3321, %v3913
  %v3915 = vpop.f32.mrf.mxu0
  %v3916 = vadd.f32 %v3323, %v3915
  %3917 = vmatprep.mubr.bf16.mxu0 %v2367
  %3918 = vmatmul.mubr.bf16.gmra.mxu0 %v2366
  %v3919 = vpop.f32.mrf.mxu0
  %v3920 = vadd.f32 %v3327, %v3919
  %v3921 = vpop.f32.mrf.mxu0
  %v3922 = vadd.f32 %v3329, %v3921
  %v3923 = vpop.f32.mrf.mxu0
  %v3924 = vadd.f32 %v3331, %v3923
  %v3925 = vpop.f32.mrf.mxu0
  %v3926 = vadd.f32 %v3333, %v3925
  %3927 = vmatprep.mubr.bf16.mxu0 %v2374
  %3928 = vmatmul.mubr.bf16.gmra.mxu0 %v2373
  %v3929 = vpop.f32.mrf.mxu0
  %v3930 = vadd.f32 %v3337, %v3929
  %v3931 = vpop.f32.mrf.mxu0
  %v3932 = vadd.f32 %v3339, %v3931
  %v3933 = vpop.f32.mrf.mxu0
  %v3934 = vadd.f32 %v3341, %v3933
  %v3935 = vpop.f32.mrf.mxu0
  %v3936 = vadd.f32 %v3343, %v3935
  %3937 = vmatprep.mubr.bf16.mxu0 %v2381
  %3938 = vmatmul.mubr.bf16.gmra.mxu0 %v2380
  %v3939 = vpop.f32.mrf.mxu0
  %v3940 = vadd.f32 %v3347, %v3939
  %v3941 = vpop.f32.mrf.mxu0
  %v3942 = vadd.f32 %v3349, %v3941
  %v3943 = vpop.f32.mrf.mxu0
  %v3944 = vadd.f32 %v3351, %v3943
  %v3945 = vpop.f32.mrf.mxu0
  %v3946 = vadd.f32 %v3353, %v3945
  %3947 = vmatprep.mubr.bf16.mxu0 %v2388
  %3948 = vmatmul.mubr.bf16.gmra.mxu0 %v2387
  %v3949 = vpop.f32.mrf.mxu0
  %v3950 = vadd.f32 %v3357, %v3949
  %v3951 = vpop.f32.mrf.mxu0
  %v3952 = vadd.f32 %v3359, %v3951
  %v3953 = vpop.f32.mrf.mxu0
  %v3954 = vadd.f32 %v3361, %v3953
  %v3955 = vpop.f32.mrf.mxu0
  %v3956 = vadd.f32 %v3363, %v3955
  %3957 = vmatprep.mubr.bf16.mxu0 %v2395
  %3958 = vmatmul.mubr.bf16.gmra.mxu0 %v2394
  %v3959 = vpop.f32.mrf.mxu0
  %v3960 = vadd.f32 %v3367, %v3959
  %v3961 = vpop.f32.mrf.mxu0
  %v3962 = vadd.f32 %v3369, %v3961
  %v3963 = vpop.f32.mrf.mxu0
  %v3964 = vadd.f32 %v3371, %v3963
  %v3965 = vpop.f32.mrf.mxu0
  %v3966 = vadd.f32 %v3373, %v3965
  %3967 = vmatprep.mubr.bf16.mxu0 %v2402
  %3968 = vmatmul.mubr.bf16.gmra.mxu0 %v2401
  %v3969 = vpop.f32.mrf.mxu0
  %v3970 = vadd.f32 %v3377, %v3969
  %v3971 = vpop.f32.mrf.mxu0
  %v3972 = vadd.f32 %v3379, %v3971
  %v3973 = vpop.f32.mrf.mxu0
  %v3974 = vadd.f32 %v3381, %v3973
  %v3975 = vpop.f32.mrf.mxu0
  %v3976 = vadd.f32 %v3383, %v3975
  %3977 = vmatprep.mubr.bf16.mxu0 %v2409
  %3978 = vmatmul.mubr.bf16.gmra.mxu0 %v2408
  %v3979 = vpop.f32.mrf.mxu0
  %v3980 = vadd.f32 %v3387, %v3979
  %v3981 = vpop.f32.mrf.mxu0
  %v3982 = vadd.f32 %v3389, %v3981
  %v3983 = vpop.f32.mrf.mxu0
  %v3984 = vadd.f32 %v3391, %v3983
  %v3985 = vpop.f32.mrf.mxu0
  %v3986 = vadd.f32 %v3393, %v3985
  %3987 = vmatprep.mubr.bf16.mxu0 %v2416
  %3988 = vmatmul.mubr.bf16.gmra.mxu0 %v2415
  %v3989 = vpop.f32.mrf.mxu0
  %v3990 = vadd.f32 %v3397, %v3989
  %v3991 = vpop.f32.mrf.mxu0
  %v3992 = vadd.f32 %v3399, %v3991
  %v3993 = vpop.f32.mrf.mxu0
  %v3994 = vadd.f32 %v3401, %v3993
  %v3995 = vpop.f32.mrf.mxu0
  %v3996 = vadd.f32 %v3403, %v3995
  %3997 = vdwg.mxu0
  %3998 = vmatprep.subr.bf16.mxu0 %v315
  %3999 = vmatpush1.bf16.msra.mxu0 %v314
  %4000 = vmatprep.subr.bf16.mxu0 %v313
  %4001 = vmatpush1.bf16.msra.mxu0 %v312
  %4002 = vmatprep.subr.bf16.mxu0 %v311
  %4003 = vmatpush1.bf16.msra.mxu0 %v310
  %4004 = vmatprep.subr.bf16.mxu0 %v309
  %4005 = vmatpush1.bf16.msra.mxu0 %v308
  %4006 = vmatprep.subr.bf16.mxu0 %v307
  %4007 = vmatpush1.bf16.msra.mxu0 %v306
  %4008 = vmatprep.subr.bf16.mxu0 %v305
  %4009 = vmatpush1.bf16.msra.mxu0 %v304
  %4010 = vmatprep.subr.bf16.mxu0 %v303
  %4011 = vmatpush1.bf16.msra.mxu0 %v302
  %4012 = vmatprep.subr.bf16.mxu0 %v301
  %4013 = vmatpush1.bf16.msra.mxu0 %v300
  %4014 = vmatprep.subr.bf16.mxu0 %v331
  %4015 = vmatpush2.bf16.msra.mxu0 %v330
  %4016 = vmatprep.subr.bf16.mxu0 %v329
  %4017 = vmatpush2.bf16.msra.mxu0 %v328
  %4018 = vmatprep.subr.bf16.mxu0 %v327
  %4019 = vmatpush2.bf16.msra.mxu0 %v326
  %4020 = vmatprep.subr.bf16.mxu0 %v325
  %4021 = vmatpush2.bf16.msra.mxu0 %v324
  %4022 = vmatprep.subr.bf16.mxu0 %v323
  %4023 = vmatpush2.bf16.msra.mxu0 %v322
  %4024 = vmatprep.subr.bf16.mxu0 %v321
  %4025 = vmatpush2.bf16.msra.mxu0 %v320
  %4026 = vmatprep.subr.bf16.mxu0 %v319
  %4027 = vmatpush2.bf16.msra.mxu0 %v318
  %4028 = vmatprep.subr.bf16.mxu0 %v317
  %4029 = vmatpush2.bf16.msra.mxu0 %v316
  %4030 = vmatprep.mubr.bf16.mxu0 %v2033
  %4031 = vmatmul.mubr.bf16.gmra.mxu0 %v2032
  %v4032 = vpop.f32.mrf.mxu0
  %v4033 = vadd.f32 %v3440, %v4032
  %v4034 = vpop.f32.mrf.mxu0
  %v4035 = vadd.f32 %v3442, %v4034
  %v4036 = vpop.f32.mrf.mxu0
  %v4037 = vadd.f32 %v3444, %v4036
  %v4038 = vpop.f32.mrf.mxu0
  %v4039 = vadd.f32 %v3446, %v4038
  %4040 = vmatprep.mubr.bf16.mxu0 %v2040
  %4041 = vmatmul.mubr.bf16.gmra.mxu0 %v2039
  %v4042 = vpop.f32.mrf.mxu0
  %v4043 = vadd.f32 %v3450, %v4042
  %v4044 = vpop.f32.mrf.mxu0
  %v4045 = vadd.f32 %v3452, %v4044
  %v4046 = vpop.f32.mrf.mxu0
  %v4047 = vadd.f32 %v3454, %v4046
  %v4048 = vpop.f32.mrf.mxu0
  %v4049 = vadd.f32 %v3456, %v4048
  %4050 = vmatprep.mubr.bf16.mxu0 %v2047
  %4051 = vmatmul.mubr.bf16.gmra.mxu0 %v2046
  %v4052 = vpop.f32.mrf.mxu0
  %v4053 = vadd.f32 %v3460, %v4052
  %v4054 = vpop.f32.mrf.mxu0
  %v4055 = vadd.f32 %v3462, %v4054
  %v4056 = vpop.f32.mrf.mxu0
  %v4057 = vadd.f32 %v3464, %v4056
  %v4058 = vpop.f32.mrf.mxu0
  %v4059 = vadd.f32 %v3466, %v4058
  %4060 = vmatprep.mubr.bf16.mxu0 %v2054
  %4061 = vmatmul.mubr.bf16.gmra.mxu0 %v2053
  %v4062 = vpop.f32.mrf.mxu0
  %v4063 = vadd.f32 %v3470, %v4062
  %v4064 = vpop.f32.mrf.mxu0
  %v4065 = vadd.f32 %v3472, %v4064
  %v4066 = vpop.f32.mrf.mxu0
  %v4067 = vadd.f32 %v3474, %v4066
  %v4068 = vpop.f32.mrf.mxu0
  %v4069 = vadd.f32 %v3476, %v4068
  %4070 = vmatprep.mubr.bf16.mxu0 %v2061
  %4071 = vmatmul.mubr.bf16.gmra.mxu0 %v2060
  %v4072 = vpop.f32.mrf.mxu0
  %v4073 = vadd.f32 %v3480, %v4072
  %v4074 = vpop.f32.mrf.mxu0
  %v4075 = vadd.f32 %v3482, %v4074
  %v4076 = vpop.f32.mrf.mxu0
  %v4077 = vadd.f32 %v3484, %v4076
  %v4078 = vpop.f32.mrf.mxu0
  %v4079 = vadd.f32 %v3486, %v4078
  %4080 = vmatprep.mubr.bf16.mxu0 %v2068
  %4081 = vmatmul.mubr.bf16.gmra.mxu0 %v2067
  %v4082 = vpop.f32.mrf.mxu0
  %v4083 = vadd.f32 %v3490, %v4082
  %v4084 = vpop.f32.mrf.mxu0
  %v4085 = vadd.f32 %v3492, %v4084
  %v4086 = vpop.f32.mrf.mxu0
  %v4087 = vadd.f32 %v3494, %v4086
  %v4088 = vpop.f32.mrf.mxu0
  %v4089 = vadd.f32 %v3496, %v4088
  %4090 = vmatprep.mubr.bf16.mxu0 %v2075
  %4091 = vmatmul.mubr.bf16.gmra.mxu0 %v2074
  %v4092 = vpop.f32.mrf.mxu0
  %v4093 = vadd.f32 %v3500, %v4092
  %v4094 = vpop.f32.mrf.mxu0
  %v4095 = vadd.f32 %v3502, %v4094
  %v4096 = vpop.f32.mrf.mxu0
  %v4097 = vadd.f32 %v3504, %v4096
  %v4098 = vpop.f32.mrf.mxu0
  %v4099 = vadd.f32 %v3506, %v4098
  %4100 = vmatprep.mubr.bf16.mxu0 %v2082
  %4101 = vmatmul.mubr.bf16.gmra.mxu0 %v2081
  %v4102 = vpop.f32.mrf.mxu0
  %v4103 = vadd.f32 %v3510, %v4102
  %v4104 = vpop.f32.mrf.mxu0
  %v4105 = vadd.f32 %v3512, %v4104
  %v4106 = vpop.f32.mrf.mxu0
  %v4107 = vadd.f32 %v3514, %v4106
  %v4108 = vpop.f32.mrf.mxu0
  %v4109 = vadd.f32 %v3516, %v4108
  %4110 = vmatprep.mubr.bf16.mxu0 %v2089
  %4111 = vmatmul.mubr.bf16.gmra.mxu0 %v2088
  %v4112 = vpop.f32.mrf.mxu0
  %v4113 = vadd.f32 %v3520, %v4112
  %v4114 = vpop.f32.mrf.mxu0
  %v4115 = vadd.f32 %v3522, %v4114
  %v4116 = vpop.f32.mrf.mxu0
  %v4117 = vadd.f32 %v3524, %v4116
  %v4118 = vpop.f32.mrf.mxu0
  %v4119 = vadd.f32 %v3526, %v4118
  %4120 = vmatprep.mubr.bf16.mxu0 %v2096
  %4121 = vmatmul.mubr.bf16.gmra.mxu0 %v2095
  %v4122 = vpop.f32.mrf.mxu0
  %v4123 = vadd.f32 %v3530, %v4122
  %v4124 = vpop.f32.mrf.mxu0
  %v4125 = vadd.f32 %v3532, %v4124
  %v4126 = vpop.f32.mrf.mxu0
  %v4127 = vadd.f32 %v3534, %v4126
  %v4128 = vpop.f32.mrf.mxu0
  %v4129 = vadd.f32 %v3536, %v4128
  %4130 = vmatprep.mubr.bf16.mxu0 %v2103
  %4131 = vmatmul.mubr.bf16.gmra.mxu0 %v2102
  %v4132 = vpop.f32.mrf.mxu0
  %v4133 = vadd.f32 %v3540, %v4132
  %v4134 = vpop.f32.mrf.mxu0
  %v4135 = vadd.f32 %v3542, %v4134
  %v4136 = vpop.f32.mrf.mxu0
  %v4137 = vadd.f32 %v3544, %v4136
  %v4138 = vpop.f32.mrf.mxu0
  %v4139 = vadd.f32 %v3546, %v4138
  %4140 = vmatprep.mubr.bf16.mxu0 %v2110
  %4141 = vmatmul.mubr.bf16.gmra.mxu0 %v2109
  %v4142 = vpop.f32.mrf.mxu0
  %v4143 = vadd.f32 %v3550, %v4142
  %v4144 = vpop.f32.mrf.mxu0
  %v4145 = vadd.f32 %v3552, %v4144
  %v4146 = vpop.f32.mrf.mxu0
  %v4147 = vadd.f32 %v3554, %v4146
  %v4148 = vpop.f32.mrf.mxu0
  %v4149 = vadd.f32 %v3556, %v4148
  %4150 = vmatprep.mubr.bf16.mxu0 %v2117
  %4151 = vmatmul.mubr.bf16.gmra.mxu0 %v2116
  %v4152 = vpop.f32.mrf.mxu0
  %v4153 = vadd.f32 %v3560, %v4152
  %v4154 = vpop.f32.mrf.mxu0
  %v4155 = vadd.f32 %v3562, %v4154
  %v4156 = vpop.f32.mrf.mxu0
  %v4157 = vadd.f32 %v3564, %v4156
  %v4158 = vpop.f32.mrf.mxu0
  %v4159 = vadd.f32 %v3566, %v4158
  %4160 = vmatprep.mubr.bf16.mxu0 %v2124
  %4161 = vmatmul.mubr.bf16.gmra.mxu0 %v2123
  %v4162 = vpop.f32.mrf.mxu0
  %v4163 = vadd.f32 %v3570, %v4162
  %v4164 = vpop.f32.mrf.mxu0
  %v4165 = vadd.f32 %v3572, %v4164
  %v4166 = vpop.f32.mrf.mxu0
  %v4167 = vadd.f32 %v3574, %v4166
  %v4168 = vpop.f32.mrf.mxu0
  %v4169 = vadd.f32 %v3576, %v4168
  %4170 = vmatprep.mubr.bf16.mxu0 %v2131
  %4171 = vmatmul.mubr.bf16.gmra.mxu0 %v2130
  %v4172 = vpop.f32.mrf.mxu0
  %v4173 = vadd.f32 %v3580, %v4172
  %v4174 = vpop.f32.mrf.mxu0
  %v4175 = vadd.f32 %v3582, %v4174
  %v4176 = vpop.f32.mrf.mxu0
  %v4177 = vadd.f32 %v3584, %v4176
  %v4178 = vpop.f32.mrf.mxu0
  %v4179 = vadd.f32 %v3586, %v4178
  %4180 = vmatprep.mubr.bf16.mxu0 %v2138
  %4181 = vmatmul.mubr.bf16.gmra.mxu0 %v2137
  %v4182 = vpop.f32.mrf.mxu0
  %v4183 = vadd.f32 %v3590, %v4182
  %v4184 = vpop.f32.mrf.mxu0
  %v4185 = vadd.f32 %v3592, %v4184
  %v4186 = vpop.f32.mrf.mxu0
  %v4187 = vadd.f32 %v3594, %v4186
  %v4188 = vpop.f32.mrf.mxu0
  %v4189 = vadd.f32 %v3596, %v4188
  %4190 = vmatprep.mubr.bf16.mxu0 %v2145
  %4191 = vmatmul.mubr.bf16.gmra.mxu0 %v2144
  %v4192 = vpop.f32.mrf.mxu0
  %v4193 = vadd.f32 %v3600, %v4192
  %v4194 = vpop.f32.mrf.mxu0
  %v4195 = vadd.f32 %v3602, %v4194
  %v4196 = vpop.f32.mrf.mxu0
  %v4197 = vadd.f32 %v3604, %v4196
  %v4198 = vpop.f32.mrf.mxu0
  %v4199 = vadd.f32 %v3606, %v4198
  %4200 = vmatprep.mubr.bf16.mxu0 %v2152
  %4201 = vmatmul.mubr.bf16.gmra.mxu0 %v2151
  %v4202 = vpop.f32.mrf.mxu0
  %v4203 = vadd.f32 %v3610, %v4202
  %v4204 = vpop.f32.mrf.mxu0
  %v4205 = vadd.f32 %v3612, %v4204
  %v4206 = vpop.f32.mrf.mxu0
  %v4207 = vadd.f32 %v3614, %v4206
  %v4208 = vpop.f32.mrf.mxu0
  %v4209 = vadd.f32 %v3616, %v4208
  %4210 = vmatprep.mubr.bf16.mxu0 %v2159
  %4211 = vmatmul.mubr.bf16.gmra.mxu0 %v2158
  %v4212 = vpop.f32.mrf.mxu0
  %v4213 = vadd.f32 %v3620, %v4212
  %v4214 = vpop.f32.mrf.mxu0
  %v4215 = vadd.f32 %v3622, %v4214
  %v4216 = vpop.f32.mrf.mxu0
  %v4217 = vadd.f32 %v3624, %v4216
  %v4218 = vpop.f32.mrf.mxu0
  %v4219 = vadd.f32 %v3626, %v4218
  %4220 = vmatprep.mubr.bf16.mxu0 %v2166
  %4221 = vmatmul.mubr.bf16.gmra.mxu0 %v2165
  %v4222 = vpop.f32.mrf.mxu0
  %v4223 = vadd.f32 %v3630, %v4222
  %v4224 = vpop.f32.mrf.mxu0
  %v4225 = vadd.f32 %v3632, %v4224
  %v4226 = vpop.f32.mrf.mxu0
  %v4227 = vadd.f32 %v3634, %v4226
  %v4228 = vpop.f32.mrf.mxu0
  %v4229 = vadd.f32 %v3636, %v4228
  %4230 = vmatprep.mubr.bf16.mxu0 %v2173
  %4231 = vmatmul.mubr.bf16.gmra.mxu0 %v2172
  %v4232 = vpop.f32.mrf.mxu0
  %v4233 = vadd.f32 %v3640, %v4232
  %v4234 = vpop.f32.mrf.mxu0
  %v4235 = vadd.f32 %v3642, %v4234
  %v4236 = vpop.f32.mrf.mxu0
  %v4237 = vadd.f32 %v3644, %v4236
  %v4238 = vpop.f32.mrf.mxu0
  %v4239 = vadd.f32 %v3646, %v4238
  %4240 = vmatprep.mubr.bf16.mxu0 %v2180
  %4241 = vmatmul.mubr.bf16.gmra.mxu0 %v2179
  %v4242 = vpop.f32.mrf.mxu0
  %v4243 = vadd.f32 %v3650, %v4242
  %v4244 = vpop.f32.mrf.mxu0
  %v4245 = vadd.f32 %v3652, %v4244
  %v4246 = vpop.f32.mrf.mxu0
  %v4247 = vadd.f32 %v3654, %v4246
  %v4248 = vpop.f32.mrf.mxu0
  %v4249 = vadd.f32 %v3656, %v4248
  %4250 = vmatprep.mubr.bf16.mxu0 %v2187
  %4251 = vmatmul.mubr.bf16.gmra.mxu0 %v2186
  %v4252 = vpop.f32.mrf.mxu0
  %v4253 = vadd.f32 %v3660, %v4252
  %v4254 = vpop.f32.mrf.mxu0
  %v4255 = vadd.f32 %v3662, %v4254
  %v4256 = vpop.f32.mrf.mxu0
  %v4257 = vadd.f32 %v3664, %v4256
  %v4258 = vpop.f32.mrf.mxu0
  %v4259 = vadd.f32 %v3666, %v4258
  %4260 = vmatprep.mubr.bf16.mxu0 %v2194
  %4261 = vmatmul.mubr.bf16.gmra.mxu0 %v2193
  %v4262 = vpop.f32.mrf.mxu0
  %v4263 = vadd.f32 %v3670, %v4262
  %v4264 = vpop.f32.mrf.mxu0
  %v4265 = vadd.f32 %v3672, %v4264
  %v4266 = vpop.f32.mrf.mxu0
  %v4267 = vadd.f32 %v3674, %v4266
  %v4268 = vpop.f32.mrf.mxu0
  %v4269 = vadd.f32 %v3676, %v4268
  %4270 = vmatprep.mubr.bf16.mxu0 %v2201
  %4271 = vmatmul.mubr.bf16.gmra.mxu0 %v2200
  %v4272 = vpop.f32.mrf.mxu0
  %v4273 = vadd.f32 %v3680, %v4272
  %v4274 = vpop.f32.mrf.mxu0
  %v4275 = vadd.f32 %v3682, %v4274
  %v4276 = vpop.f32.mrf.mxu0
  %v4277 = vadd.f32 %v3684, %v4276
  %v4278 = vpop.f32.mrf.mxu0
  %v4279 = vadd.f32 %v3686, %v4278
  %4280 = vmatprep.mubr.bf16.mxu0 %v2208
  %4281 = vmatmul.mubr.bf16.gmra.mxu0 %v2207
  %v4282 = vpop.f32.mrf.mxu0
  %v4283 = vadd.f32 %v3690, %v4282
  %v4284 = vpop.f32.mrf.mxu0
  %v4285 = vadd.f32 %v3692, %v4284
  %v4286 = vpop.f32.mrf.mxu0
  %v4287 = vadd.f32 %v3694, %v4286
  %v4288 = vpop.f32.mrf.mxu0
  %v4289 = vadd.f32 %v3696, %v4288
  %4290 = vmatprep.mubr.bf16.mxu0 %v2215
  %4291 = vmatmul.mubr.bf16.gmra.mxu0 %v2214
  %v4292 = vpop.f32.mrf.mxu0
  %v4293 = vadd.f32 %v3700, %v4292
  %v4294 = vpop.f32.mrf.mxu0
  %v4295 = vadd.f32 %v3702, %v4294
  %v4296 = vpop.f32.mrf.mxu0
  %v4297 = vadd.f32 %v3704, %v4296
  %v4298 = vpop.f32.mrf.mxu0
  %v4299 = vadd.f32 %v3706, %v4298
  %4300 = vmatprep.mubr.bf16.mxu0 %v2222
  %4301 = vmatmul.mubr.bf16.gmra.mxu0 %v2221
  %v4302 = vpop.f32.mrf.mxu0
  %v4303 = vadd.f32 %v3710, %v4302
  %v4304 = vpop.f32.mrf.mxu0
  %v4305 = vadd.f32 %v3712, %v4304
  %v4306 = vpop.f32.mrf.mxu0
  %v4307 = vadd.f32 %v3714, %v4306
  %v4308 = vpop.f32.mrf.mxu0
  %v4309 = vadd.f32 %v3716, %v4308
  %4310 = vmatprep.mubr.bf16.mxu0 %v2229
  %4311 = vmatmul.mubr.bf16.gmra.mxu0 %v2228
  %v4312 = vpop.f32.mrf.mxu0
  %v4313 = vadd.f32 %v3720, %v4312
  %v4314 = vpop.f32.mrf.mxu0
  %v4315 = vadd.f32 %v3722, %v4314
  %v4316 = vpop.f32.mrf.mxu0
  %v4317 = vadd.f32 %v3724, %v4316
  %v4318 = vpop.f32.mrf.mxu0
  %v4319 = vadd.f32 %v3726, %v4318
  %4320 = vmatprep.mubr.bf16.mxu0 %v2236
  %4321 = vmatmul.mubr.bf16.gmra.mxu0 %v2235
  %v4322 = vpop.f32.mrf.mxu0
  %v4323 = vadd.f32 %v3730, %v4322
  %v4324 = vpop.f32.mrf.mxu0
  %v4325 = vadd.f32 %v3732, %v4324
  %v4326 = vpop.f32.mrf.mxu0
  %v4327 = vadd.f32 %v3734, %v4326
  %v4328 = vpop.f32.mrf.mxu0
  %v4329 = vadd.f32 %v3736, %v4328
  %4330 = vmatprep.mubr.bf16.mxu0 %v2243
  %4331 = vmatmul.mubr.bf16.gmra.mxu0 %v2242
  %v4332 = vpop.f32.mrf.mxu0
  %v4333 = vadd.f32 %v3740, %v4332
  %v4334 = vpop.f32.mrf.mxu0
  %v4335 = vadd.f32 %v3742, %v4334
  %v4336 = vpop.f32.mrf.mxu0
  %v4337 = vadd.f32 %v3744, %v4336
  %v4338 = vpop.f32.mrf.mxu0
  %v4339 = vadd.f32 %v3746, %v4338
  %4340 = vmatprep.mubr.bf16.mxu0 %v2250
  %4341 = vmatmul.mubr.bf16.gmra.mxu0 %v2249
  %v4342 = vpop.f32.mrf.mxu0
  %v4343 = vadd.f32 %v3750, %v4342
  %v4344 = vpop.f32.mrf.mxu0
  %v4345 = vadd.f32 %v3752, %v4344
  %v4346 = vpop.f32.mrf.mxu0
  %v4347 = vadd.f32 %v3754, %v4346
  %v4348 = vpop.f32.mrf.mxu0
  %v4349 = vadd.f32 %v3756, %v4348
  %4350 = vmatprep.mubr.bf16.mxu0 %v2257
  %4351 = vmatmul.mubr.bf16.gmra.mxu0 %v2256
  %v4352 = vpop.f32.mrf.mxu0
  %v4353 = vadd.f32 %v3760, %v4352
  %v4354 = vpop.f32.mrf.mxu0
  %v4355 = vadd.f32 %v3762, %v4354
  %v4356 = vpop.f32.mrf.mxu0
  %v4357 = vadd.f32 %v3764, %v4356
  %v4358 = vpop.f32.mrf.mxu0
  %v4359 = vadd.f32 %v3766, %v4358
  %4360 = vmatprep.mubr.bf16.mxu0 %v2264
  %4361 = vmatmul.mubr.bf16.gmra.mxu0 %v2263
  %v4362 = vpop.f32.mrf.mxu0
  %v4363 = vadd.f32 %v3770, %v4362
  %v4364 = vpop.f32.mrf.mxu0
  %v4365 = vadd.f32 %v3772, %v4364
  %v4366 = vpop.f32.mrf.mxu0
  %v4367 = vadd.f32 %v3774, %v4366
  %v4368 = vpop.f32.mrf.mxu0
  %v4369 = vadd.f32 %v3776, %v4368
  %4370 = vmatprep.mubr.bf16.mxu0 %v2271
  %4371 = vmatmul.mubr.bf16.gmra.mxu0 %v2270
  %v4372 = vpop.f32.mrf.mxu0
  %v4373 = vadd.f32 %v3780, %v4372
  %v4374 = vpop.f32.mrf.mxu0
  %v4375 = vadd.f32 %v3782, %v4374
  %v4376 = vpop.f32.mrf.mxu0
  %v4377 = vadd.f32 %v3784, %v4376
  %v4378 = vpop.f32.mrf.mxu0
  %v4379 = vadd.f32 %v3786, %v4378
  %4380 = vmatprep.mubr.bf16.mxu0 %v2278
  %4381 = vmatmul.mubr.bf16.gmra.mxu0 %v2277
  %v4382 = vpop.f32.mrf.mxu0
  %v4383 = vadd.f32 %v3790, %v4382
  %v4384 = vpop.f32.mrf.mxu0
  %v4385 = vadd.f32 %v3792, %v4384
  %v4386 = vpop.f32.mrf.mxu0
  %v4387 = vadd.f32 %v3794, %v4386
  %v4388 = vpop.f32.mrf.mxu0
  %v4389 = vadd.f32 %v3796, %v4388
  %4390 = vmatprep.mubr.bf16.mxu0 %v2285
  %4391 = vmatmul.mubr.bf16.gmra.mxu0 %v2284
  %v4392 = vpop.f32.mrf.mxu0
  %v4393 = vadd.f32 %v3800, %v4392
  %v4394 = vpop.f32.mrf.mxu0
  %v4395 = vadd.f32 %v3802, %v4394
  %v4396 = vpop.f32.mrf.mxu0
  %v4397 = vadd.f32 %v3804, %v4396
  %v4398 = vpop.f32.mrf.mxu0
  %v4399 = vadd.f32 %v3806, %v4398
  %4400 = vmatprep.mubr.bf16.mxu0 %v2292
  %4401 = vmatmul.mubr.bf16.gmra.mxu0 %v2291
  %v4402 = vpop.f32.mrf.mxu0
  %v4403 = vadd.f32 %v3810, %v4402
  %v4404 = vpop.f32.mrf.mxu0
  %v4405 = vadd.f32 %v3812, %v4404
  %v4406 = vpop.f32.mrf.mxu0
  %v4407 = vadd.f32 %v3814, %v4406
  %v4408 = vpop.f32.mrf.mxu0
  %v4409 = vadd.f32 %v3816, %v4408
  %4410 = vmatprep.mubr.bf16.mxu0 %v2299
  %4411 = vmatmul.mubr.bf16.gmra.mxu0 %v2298
  %v4412 = vpop.f32.mrf.mxu0
  %v4413 = vadd.f32 %v3820, %v4412
  %v4414 = vpop.f32.mrf.mxu0
  %v4415 = vadd.f32 %v3822, %v4414
  %v4416 = vpop.f32.mrf.mxu0
  %v4417 = vadd.f32 %v3824, %v4416
  %v4418 = vpop.f32.mrf.mxu0
  %v4419 = vadd.f32 %v3826, %v4418
  %4420 = vmatprep.mubr.bf16.mxu0 %v2306
  %4421 = vmatmul.mubr.bf16.gmra.mxu0 %v2305
  %v4422 = vpop.f32.mrf.mxu0
  %v4423 = vadd.f32 %v3830, %v4422
  %v4424 = vpop.f32.mrf.mxu0
  %v4425 = vadd.f32 %v3832, %v4424
  %v4426 = vpop.f32.mrf.mxu0
  %v4427 = vadd.f32 %v3834, %v4426
  %v4428 = vpop.f32.mrf.mxu0
  %v4429 = vadd.f32 %v3836, %v4428
  %4430 = vmatprep.mubr.bf16.mxu0 %v2313
  %4431 = vmatmul.mubr.bf16.gmra.mxu0 %v2312
  %v4432 = vpop.f32.mrf.mxu0
  %v4433 = vadd.f32 %v3840, %v4432
  %v4434 = vpop.f32.mrf.mxu0
  %v4435 = vadd.f32 %v3842, %v4434
  %v4436 = vpop.f32.mrf.mxu0
  %v4437 = vadd.f32 %v3844, %v4436
  %v4438 = vpop.f32.mrf.mxu0
  %v4439 = vadd.f32 %v3846, %v4438
  %4440 = vmatprep.mubr.bf16.mxu0 %v2320
  %4441 = vmatmul.mubr.bf16.gmra.mxu0 %v2319
  %v4442 = vpop.f32.mrf.mxu0
  %v4443 = vadd.f32 %v3850, %v4442
  %v4444 = vpop.f32.mrf.mxu0
  %v4445 = vadd.f32 %v3852, %v4444
  %v4446 = vpop.f32.mrf.mxu0
  %v4447 = vadd.f32 %v3854, %v4446
  %v4448 = vpop.f32.mrf.mxu0
  %v4449 = vadd.f32 %v3856, %v4448
  %4450 = vmatprep.mubr.bf16.mxu0 %v2327
  %4451 = vmatmul.mubr.bf16.gmra.mxu0 %v2326
  %v4452 = vpop.f32.mrf.mxu0
  %v4453 = vadd.f32 %v3860, %v4452
  %v4454 = vpop.f32.mrf.mxu0
  %v4455 = vadd.f32 %v3862, %v4454
  %v4456 = vpop.f32.mrf.mxu0
  %v4457 = vadd.f32 %v3864, %v4456
  %v4458 = vpop.f32.mrf.mxu0
  %v4459 = vadd.f32 %v3866, %v4458
  %4460 = vmatprep.mubr.bf16.mxu0 %v2334
  %4461 = vmatmul.mubr.bf16.gmra.mxu0 %v2333
  %v4462 = vpop.f32.mrf.mxu0
  %v4463 = vadd.f32 %v3870, %v4462
  %v4464 = vpop.f32.mrf.mxu0
  %v4465 = vadd.f32 %v3872, %v4464
  %v4466 = vpop.f32.mrf.mxu0
  %v4467 = vadd.f32 %v3874, %v4466
  %v4468 = vpop.f32.mrf.mxu0
  %v4469 = vadd.f32 %v3876, %v4468
  %4470 = vmatprep.mubr.bf16.mxu0 %v2341
  %4471 = vmatmul.mubr.bf16.gmra.mxu0 %v2340
  %v4472 = vpop.f32.mrf.mxu0
  %v4473 = vadd.f32 %v3880, %v4472
  %v4474 = vpop.f32.mrf.mxu0
  %v4475 = vadd.f32 %v3882, %v4474
  %v4476 = vpop.f32.mrf.mxu0
  %v4477 = vadd.f32 %v3884, %v4476
  %v4478 = vpop.f32.mrf.mxu0
  %v4479 = vadd.f32 %v3886, %v4478
  %4480 = vmatprep.mubr.bf16.mxu0 %v2348
  %4481 = vmatmul.mubr.bf16.gmra.mxu0 %v2347
  %v4482 = vpop.f32.mrf.mxu0
  %v4483 = vadd.f32 %v3890, %v4482
  %v4484 = vpop.f32.mrf.mxu0
  %v4485 = vadd.f32 %v3892, %v4484
  %v4486 = vpop.f32.mrf.mxu0
  %v4487 = vadd.f32 %v3894, %v4486
  %v4488 = vpop.f32.mrf.mxu0
  %v4489 = vadd.f32 %v3896, %v4488
  %4490 = vmatprep.mubr.bf16.mxu0 %v2355
  %4491 = vmatmul.mubr.bf16.gmra.mxu0 %v2354
  %v4492 = vpop.f32.mrf.mxu0
  %v4493 = vadd.f32 %v3900, %v4492
  %v4494 = vpop.f32.mrf.mxu0
  %v4495 = vadd.f32 %v3902, %v4494
  %v4496 = vpop.f32.mrf.mxu0
  %v4497 = vadd.f32 %v3904, %v4496
  %v4498 = vpop.f32.mrf.mxu0
  %v4499 = vadd.f32 %v3906, %v4498
  %4500 = vmatprep.mubr.bf16.mxu0 %v2362
  %4501 = vmatmul.mubr.bf16.gmra.mxu0 %v2361
  %v4502 = vpop.f32.mrf.mxu0
  %v4503 = vadd.f32 %v3910, %v4502
  %v4504 = vpop.f32.mrf.mxu0
  %v4505 = vadd.f32 %v3912, %v4504
  %v4506 = vpop.f32.mrf.mxu0
  %v4507 = vadd.f32 %v3914, %v4506
  %v4508 = vpop.f32.mrf.mxu0
  %v4509 = vadd.f32 %v3916, %v4508
  %4510 = vmatprep.mubr.bf16.mxu0 %v2369
  %4511 = vmatmul.mubr.bf16.gmra.mxu0 %v2368
  %v4512 = vpop.f32.mrf.mxu0
  %v4513 = vadd.f32 %v3920, %v4512
  %v4514 = vpop.f32.mrf.mxu0
  %v4515 = vadd.f32 %v3922, %v4514
  %v4516 = vpop.f32.mrf.mxu0
  %v4517 = vadd.f32 %v3924, %v4516
  %v4518 = vpop.f32.mrf.mxu0
  %v4519 = vadd.f32 %v3926, %v4518
  %4520 = vmatprep.mubr.bf16.mxu0 %v2376
  %4521 = vmatmul.mubr.bf16.gmra.mxu0 %v2375
  %v4522 = vpop.f32.mrf.mxu0
  %v4523 = vadd.f32 %v3930, %v4522
  %v4524 = vpop.f32.mrf.mxu0
  %v4525 = vadd.f32 %v3932, %v4524
  %v4526 = vpop.f32.mrf.mxu0
  %v4527 = vadd.f32 %v3934, %v4526
  %v4528 = vpop.f32.mrf.mxu0
  %v4529 = vadd.f32 %v3936, %v4528
  %4530 = vmatprep.mubr.bf16.mxu0 %v2383
  %4531 = vmatmul.mubr.bf16.gmra.mxu0 %v2382
  %v4532 = vpop.f32.mrf.mxu0
  %v4533 = vadd.f32 %v3940, %v4532
  %v4534 = vpop.f32.mrf.mxu0
  %v4535 = vadd.f32 %v3942, %v4534
  %v4536 = vpop.f32.mrf.mxu0
  %v4537 = vadd.f32 %v3944, %v4536
  %v4538 = vpop.f32.mrf.mxu0
  %v4539 = vadd.f32 %v3946, %v4538
  %4540 = vmatprep.mubr.bf16.mxu0 %v2390
  %4541 = vmatmul.mubr.bf16.gmra.mxu0 %v2389
  %v4542 = vpop.f32.mrf.mxu0
  %v4543 = vadd.f32 %v3950, %v4542
  %v4544 = vpop.f32.mrf.mxu0
  %v4545 = vadd.f32 %v3952, %v4544
  %v4546 = vpop.f32.mrf.mxu0
  %v4547 = vadd.f32 %v3954, %v4546
  %v4548 = vpop.f32.mrf.mxu0
  %v4549 = vadd.f32 %v3956, %v4548
  %4550 = vmatprep.mubr.bf16.mxu0 %v2397
  %4551 = vmatmul.mubr.bf16.gmra.mxu0 %v2396
  %v4552 = vpop.f32.mrf.mxu0
  %v4553 = vadd.f32 %v3960, %v4552
  %v4554 = vpop.f32.mrf.mxu0
  %v4555 = vadd.f32 %v3962, %v4554
  %v4556 = vpop.f32.mrf.mxu0
  %v4557 = vadd.f32 %v3964, %v4556
  %v4558 = vpop.f32.mrf.mxu0
  %v4559 = vadd.f32 %v3966, %v4558
  %4560 = vmatprep.mubr.bf16.mxu0 %v2404
  %4561 = vmatmul.mubr.bf16.gmra.mxu0 %v2403
  %v4562 = vpop.f32.mrf.mxu0
  %v4563 = vadd.f32 %v3970, %v4562
  %v4564 = vpop.f32.mrf.mxu0
  %v4565 = vadd.f32 %v3972, %v4564
  %v4566 = vpop.f32.mrf.mxu0
  %v4567 = vadd.f32 %v3974, %v4566
  %v4568 = vpop.f32.mrf.mxu0
  %v4569 = vadd.f32 %v3976, %v4568
  %4570 = vmatprep.mubr.bf16.mxu0 %v2411
  %4571 = vmatmul.mubr.bf16.gmra.mxu0 %v2410
  %v4572 = vpop.f32.mrf.mxu0
  %v4573 = vadd.f32 %v3980, %v4572
  %v4574 = vpop.f32.mrf.mxu0
  %v4575 = vadd.f32 %v3982, %v4574
  %v4576 = vpop.f32.mrf.mxu0
  %v4577 = vadd.f32 %v3984, %v4576
  %v4578 = vpop.f32.mrf.mxu0
  %v4579 = vadd.f32 %v3986, %v4578
  %4580 = vmatprep.mubr.bf16.mxu0 %v2418
  %4581 = vmatmul.mubr.bf16.gmra.mxu0 %v2417
  %v4582 = vpop.f32.mrf.mxu0
  %v4583 = vadd.f32 %v3990, %v4582
  %v4584 = vpop.f32.mrf.mxu0
  %v4585 = vadd.f32 %v3992, %v4584
  %v4586 = vpop.f32.mrf.mxu0
  %v4587 = vadd.f32 %v3994, %v4586
  %v4588 = vpop.f32.mrf.mxu0
  %v4589 = vadd.f32 %v3996, %v4588
  %4590 = vdwg.mxu0
  %4591 = vmatprep.subr.bf16.mxu0 %v347
  %4592 = vmatpush1.bf16.msra.mxu0 %v346
  %4593 = vmatprep.subr.bf16.mxu0 %v345
  %4594 = vmatpush1.bf16.msra.mxu0 %v344
  %4595 = vmatprep.subr.bf16.mxu0 %v343
  %4596 = vmatpush1.bf16.msra.mxu0 %v342
  %4597 = vmatprep.subr.bf16.mxu0 %v341
  %4598 = vmatpush1.bf16.msra.mxu0 %v340
  %4599 = vmatprep.subr.bf16.mxu0 %v339
  %4600 = vmatpush1.bf16.msra.mxu0 %v338
  %4601 = vmatprep.subr.bf16.mxu0 %v337
  %4602 = vmatpush1.bf16.msra.mxu0 %v336
  %4603 = vmatprep.subr.bf16.mxu0 %v335
  %4604 = vmatpush1.bf16.msra.mxu0 %v334
  %4605 = vmatprep.subr.bf16.mxu0 %v333
  %4606 = vmatpush1.bf16.msra.mxu0 %v332
  %4607 = vmatprep.subr.bf16.mxu0 0
  %4608 = vmatpush2.bf16.msra.mxu0 0
  %4609 = vmatprep.subr.bf16.mxu0 0
  %4610 = vmatpush2.bf16.msra.mxu0 0
  %4611 = vmatprep.subr.bf16.mxu0 0
  %4612 = vmatpush2.bf16.msra.mxu0 0
  %4613 = vmatprep.subr.bf16.mxu0 0
  %4614 = vmatpush2.bf16.msra.mxu0 0
  %4615 = vmatprep.subr.bf16.mxu0 0
  %4616 = vmatpush2.bf16.msra.mxu0 0
  %4617 = vmatprep.subr.bf16.mxu0 0
  %4618 = vmatpush2.bf16.msra.mxu0 0
  %4619 = vmatprep.subr.bf16.mxu0 0
  %4620 = vmatpush2.bf16.msra.mxu0 0
  %4621 = vmatprep.subr.bf16.mxu0 0
  %4622 = vmatpush2.bf16.msra.mxu0 0
  %4623 = vmatprep.mubr.bf16.mxu0 0
  %4624 = vmatmul.mubr.bf16.gmra.mxu0 %v2034
  %v4625 = vpop.f32.mrf.mxu0
  %v4626 = vadd.f32 %v4033, %v4625
  %v4627 = vpop.f32.mrf.mxu0
  %v4628 = vadd.f32 %v4035, %v4627
  %v4629 = vpop.f32.mrf.mxu0
  %v4630 = vadd.f32 %v4037, %v4629
  %v4631 = vpop.f32.mrf.mxu0
  %v4632 = vadd.f32 %v4039, %v4631
  %4633 = vmatprep.mubr.bf16.mxu0 0
  %4634 = vmatmul.mubr.bf16.gmra.mxu0 %v2041
  %v4635 = vpop.f32.mrf.mxu0
  %v4636 = vadd.f32 %v4043, %v4635
  %v4637 = vpop.f32.mrf.mxu0
  %v4638 = vadd.f32 %v4045, %v4637
  %v4639 = vpop.f32.mrf.mxu0
  %v4640 = vadd.f32 %v4047, %v4639
  %v4641 = vpop.f32.mrf.mxu0
  %v4642 = vadd.f32 %v4049, %v4641
  %4643 = vmatprep.mubr.bf16.mxu0 0
  %4644 = vmatmul.mubr.bf16.gmra.mxu0 %v2048
  %v4645 = vpop.f32.mrf.mxu0
  %v4646 = vadd.f32 %v4053, %v4645
  %v4647 = vpop.f32.mrf.mxu0
  %v4648 = vadd.f32 %v4055, %v4647
  %v4649 = vpop.f32.mrf.mxu0
  %v4650 = vadd.f32 %v4057, %v4649
  %v4651 = vpop.f32.mrf.mxu0
  %v4652 = vadd.f32 %v4059, %v4651
  %4653 = vmatprep.mubr.bf16.mxu0 0
  %4654 = vmatmul.mubr.bf16.gmra.mxu0 %v2055
  %v4655 = vpop.f32.mrf.mxu0
  %v4656 = vadd.f32 %v4063, %v4655
  %v4657 = vpop.f32.mrf.mxu0
  %v4658 = vadd.f32 %v4065, %v4657
  %v4659 = vpop.f32.mrf.mxu0
  %v4660 = vadd.f32 %v4067, %v4659
  %v4661 = vpop.f32.mrf.mxu0
  %v4662 = vadd.f32 %v4069, %v4661
  %4663 = vmatprep.mubr.bf16.mxu0 0
  %4664 = vmatmul.mubr.bf16.gmra.mxu0 %v2062
  %v4665 = vpop.f32.mrf.mxu0
  %v4666 = vadd.f32 %v4073, %v4665
  %v4667 = vpop.f32.mrf.mxu0
  %v4668 = vadd.f32 %v4075, %v4667
  %v4669 = vpop.f32.mrf.mxu0
  %v4670 = vadd.f32 %v4077, %v4669
  %v4671 = vpop.f32.mrf.mxu0
  %v4672 = vadd.f32 %v4079, %v4671
  %4673 = vmatprep.mubr.bf16.mxu0 0
  %4674 = vmatmul.mubr.bf16.gmra.mxu0 %v2069
  %v4675 = vpop.f32.mrf.mxu0
  %v4676 = vadd.f32 %v4083, %v4675
  %v4677 = vpop.f32.mrf.mxu0
  %v4678 = vadd.f32 %v4085, %v4677
  %v4679 = vpop.f32.mrf.mxu0
  %v4680 = vadd.f32 %v4087, %v4679
  %v4681 = vpop.f32.mrf.mxu0
  %v4682 = vadd.f32 %v4089, %v4681
  %4683 = vmatprep.mubr.bf16.mxu0 0
  %4684 = vmatmul.mubr.bf16.gmra.mxu0 %v2076
  %v4685 = vpop.f32.mrf.mxu0
  %v4686 = vadd.f32 %v4093, %v4685
  %v4687 = vpop.f32.mrf.mxu0
  %v4688 = vadd.f32 %v4095, %v4687
  %v4689 = vpop.f32.mrf.mxu0
  %v4690 = vadd.f32 %v4097, %v4689
  %v4691 = vpop.f32.mrf.mxu0
  %v4692 = vadd.f32 %v4099, %v4691
  %4693 = vmatprep.mubr.bf16.mxu0 0
  %4694 = vmatmul.mubr.bf16.gmra.mxu0 %v2083
  %v4695 = vpop.f32.mrf.mxu0
  %v4696 = vadd.f32 %v4103, %v4695
  %v4697 = vpop.f32.mrf.mxu0
  %v4698 = vadd.f32 %v4105, %v4697
  %v4699 = vpop.f32.mrf.mxu0
  %v4700 = vadd.f32 %v4107, %v4699
  %v4701 = vpop.f32.mrf.mxu0
  %v4702 = vadd.f32 %v4109, %v4701
  %4703 = vmatprep.mubr.bf16.mxu0 0
  %4704 = vmatmul.mubr.bf16.gmra.mxu0 %v2090
  %v4705 = vpop.f32.mrf.mxu0
  %v4706 = vadd.f32 %v4113, %v4705
  %v4707 = vpop.f32.mrf.mxu0
  %v4708 = vadd.f32 %v4115, %v4707
  %v4709 = vpop.f32.mrf.mxu0
  %v4710 = vadd.f32 %v4117, %v4709
  %v4711 = vpop.f32.mrf.mxu0
  %v4712 = vadd.f32 %v4119, %v4711
  %4713 = vmatprep.mubr.bf16.mxu0 0
  %4714 = vmatmul.mubr.bf16.gmra.mxu0 %v2097
  %v4715 = vpop.f32.mrf.mxu0
  %v4716 = vadd.f32 %v4123, %v4715
  %v4717 = vpop.f32.mrf.mxu0
  %v4718 = vadd.f32 %v4125, %v4717
  %v4719 = vpop.f32.mrf.mxu0
  %v4720 = vadd.f32 %v4127, %v4719
  %v4721 = vpop.f32.mrf.mxu0
  %v4722 = vadd.f32 %v4129, %v4721
  %4723 = vmatprep.mubr.bf16.mxu0 0
  %4724 = vmatmul.mubr.bf16.gmra.mxu0 %v2104
  %v4725 = vpop.f32.mrf.mxu0
  %v4726 = vadd.f32 %v4133, %v4725
  %v4727 = vpop.f32.mrf.mxu0
  %v4728 = vadd.f32 %v4135, %v4727
  %v4729 = vpop.f32.mrf.mxu0
  %v4730 = vadd.f32 %v4137, %v4729
  %v4731 = vpop.f32.mrf.mxu0
  %v4732 = vadd.f32 %v4139, %v4731
  %4733 = vmatprep.mubr.bf16.mxu0 0
  %4734 = vmatmul.mubr.bf16.gmra.mxu0 %v2111
  %v4735 = vpop.f32.mrf.mxu0
  %v4736 = vadd.f32 %v4143, %v4735
  %v4737 = vpop.f32.mrf.mxu0
  %v4738 = vadd.f32 %v4145, %v4737
  %v4739 = vpop.f32.mrf.mxu0
  %v4740 = vadd.f32 %v4147, %v4739
  %v4741 = vpop.f32.mrf.mxu0
  %v4742 = vadd.f32 %v4149, %v4741
  %4743 = vmatprep.mubr.bf16.mxu0 0
  %4744 = vmatmul.mubr.bf16.gmra.mxu0 %v2118
  %v4745 = vpop.f32.mrf.mxu0
  %v4746 = vadd.f32 %v4153, %v4745
  %v4747 = vpop.f32.mrf.mxu0
  %v4748 = vadd.f32 %v4155, %v4747
  %v4749 = vpop.f32.mrf.mxu0
  %v4750 = vadd.f32 %v4157, %v4749
  %v4751 = vpop.f32.mrf.mxu0
  %v4752 = vadd.f32 %v4159, %v4751
  %4753 = vmatprep.mubr.bf16.mxu0 0
  %4754 = vmatmul.mubr.bf16.gmra.mxu0 %v2125
  %v4755 = vpop.f32.mrf.mxu0
  %v4756 = vadd.f32 %v4163, %v4755
  %v4757 = vpop.f32.mrf.mxu0
  %v4758 = vadd.f32 %v4165, %v4757
  %v4759 = vpop.f32.mrf.mxu0
  %v4760 = vadd.f32 %v4167, %v4759
  %v4761 = vpop.f32.mrf.mxu0
  %v4762 = vadd.f32 %v4169, %v4761
  %4763 = vmatprep.mubr.bf16.mxu0 0
  %4764 = vmatmul.mubr.bf16.gmra.mxu0 %v2132
  %v4765 = vpop.f32.mrf.mxu0
  %v4766 = vadd.f32 %v4173, %v4765
  %v4767 = vpop.f32.mrf.mxu0
  %v4768 = vadd.f32 %v4175, %v4767
  %v4769 = vpop.f32.mrf.mxu0
  %v4770 = vadd.f32 %v4177, %v4769
  %v4771 = vpop.f32.mrf.mxu0
  %v4772 = vadd.f32 %v4179, %v4771
  %4773 = vmatprep.mubr.bf16.mxu0 0
  %4774 = vmatmul.mubr.bf16.gmra.mxu0 %v2139
  %v4775 = vpop.f32.mrf.mxu0
  %v4776 = vadd.f32 %v4183, %v4775
  %v4777 = vpop.f32.mrf.mxu0
  %v4778 = vadd.f32 %v4185, %v4777
  %v4779 = vpop.f32.mrf.mxu0
  %v4780 = vadd.f32 %v4187, %v4779
  %v4781 = vpop.f32.mrf.mxu0
  %v4782 = vadd.f32 %v4189, %v4781
  %4783 = vmatprep.mubr.bf16.mxu0 0
  %4784 = vmatmul.mubr.bf16.gmra.mxu0 %v2146
  %v4785 = vpop.f32.mrf.mxu0
  %v4786 = vadd.f32 %v4193, %v4785
  %v4787 = vpop.f32.mrf.mxu0
  %v4788 = vadd.f32 %v4195, %v4787
  %v4789 = vpop.f32.mrf.mxu0
  %v4790 = vadd.f32 %v4197, %v4789
  %v4791 = vpop.f32.mrf.mxu0
  %v4792 = vadd.f32 %v4199, %v4791
  %4793 = vmatprep.mubr.bf16.mxu0 0
  %4794 = vmatmul.mubr.bf16.gmra.mxu0 %v2153
  %v4795 = vpop.f32.mrf.mxu0
  %v4796 = vadd.f32 %v4203, %v4795
  %v4797 = vpop.f32.mrf.mxu0
  %v4798 = vadd.f32 %v4205, %v4797
  %v4799 = vpop.f32.mrf.mxu0
  %v4800 = vadd.f32 %v4207, %v4799
  %v4801 = vpop.f32.mrf.mxu0
  %v4802 = vadd.f32 %v4209, %v4801
  %4803 = vmatprep.mubr.bf16.mxu0 0
  %4804 = vmatmul.mubr.bf16.gmra.mxu0 %v2160
  %v4805 = vpop.f32.mrf.mxu0
  %v4806 = vadd.f32 %v4213, %v4805
  %v4807 = vpop.f32.mrf.mxu0
  %v4808 = vadd.f32 %v4215, %v4807
  %v4809 = vpop.f32.mrf.mxu0
  %v4810 = vadd.f32 %v4217, %v4809
  %v4811 = vpop.f32.mrf.mxu0
  %v4812 = vadd.f32 %v4219, %v4811
  %4813 = vmatprep.mubr.bf16.mxu0 0
  %4814 = vmatmul.mubr.bf16.gmra.mxu0 %v2167
  %v4815 = vpop.f32.mrf.mxu0
  %v4816 = vadd.f32 %v4223, %v4815
  %v4817 = vpop.f32.mrf.mxu0
  %v4818 = vadd.f32 %v4225, %v4817
  %v4819 = vpop.f32.mrf.mxu0
  %v4820 = vadd.f32 %v4227, %v4819
  %v4821 = vpop.f32.mrf.mxu0
  %v4822 = vadd.f32 %v4229, %v4821
  %4823 = vmatprep.mubr.bf16.mxu0 0
  %4824 = vmatmul.mubr.bf16.gmra.mxu0 %v2174
  %v4825 = vpop.f32.mrf.mxu0
  %v4826 = vadd.f32 %v4233, %v4825
  %v4827 = vpop.f32.mrf.mxu0
  %v4828 = vadd.f32 %v4235, %v4827
  %v4829 = vpop.f32.mrf.mxu0
  %v4830 = vadd.f32 %v4237, %v4829
  %v4831 = vpop.f32.mrf.mxu0
  %v4832 = vadd.f32 %v4239, %v4831
  %4833 = vmatprep.mubr.bf16.mxu0 0
  %4834 = vmatmul.mubr.bf16.gmra.mxu0 %v2181
  %v4835 = vpop.f32.mrf.mxu0
  %v4836 = vadd.f32 %v4243, %v4835
  %v4837 = vpop.f32.mrf.mxu0
  %v4838 = vadd.f32 %v4245, %v4837
  %v4839 = vpop.f32.mrf.mxu0
  %v4840 = vadd.f32 %v4247, %v4839
  %v4841 = vpop.f32.mrf.mxu0
  %v4842 = vadd.f32 %v4249, %v4841
  %4843 = vmatprep.mubr.bf16.mxu0 0
  %4844 = vmatmul.mubr.bf16.gmra.mxu0 %v2188
  %v4845 = vpop.f32.mrf.mxu0
  %v4846 = vadd.f32 %v4253, %v4845
  %v4847 = vpop.f32.mrf.mxu0
  %v4848 = vadd.f32 %v4255, %v4847
  %v4849 = vpop.f32.mrf.mxu0
  %v4850 = vadd.f32 %v4257, %v4849
  %v4851 = vpop.f32.mrf.mxu0
  %v4852 = vadd.f32 %v4259, %v4851
  %4853 = vmatprep.mubr.bf16.mxu0 0
  %4854 = vmatmul.mubr.bf16.gmra.mxu0 %v2195
  %v4855 = vpop.f32.mrf.mxu0
  %v4856 = vadd.f32 %v4263, %v4855
  %v4857 = vpop.f32.mrf.mxu0
  %v4858 = vadd.f32 %v4265, %v4857
  %v4859 = vpop.f32.mrf.mxu0
  %v4860 = vadd.f32 %v4267, %v4859
  %v4861 = vpop.f32.mrf.mxu0
  %v4862 = vadd.f32 %v4269, %v4861
  %4863 = vmatprep.mubr.bf16.mxu0 0
  %4864 = vmatmul.mubr.bf16.gmra.mxu0 %v2202
  %v4865 = vpop.f32.mrf.mxu0
  %v4866 = vadd.f32 %v4273, %v4865
  %v4867 = vpop.f32.mrf.mxu0
  %v4868 = vadd.f32 %v4275, %v4867
  %v4869 = vpop.f32.mrf.mxu0
  %v4870 = vadd.f32 %v4277, %v4869
  %v4871 = vpop.f32.mrf.mxu0
  %v4872 = vadd.f32 %v4279, %v4871
  %4873 = vmatprep.mubr.bf16.mxu0 0
  %4874 = vmatmul.mubr.bf16.gmra.mxu0 %v2209
  %v4875 = vpop.f32.mrf.mxu0
  %v4876 = vadd.f32 %v4283, %v4875
  %v4877 = vpop.f32.mrf.mxu0
  %v4878 = vadd.f32 %v4285, %v4877
  %v4879 = vpop.f32.mrf.mxu0
  %v4880 = vadd.f32 %v4287, %v4879
  %v4881 = vpop.f32.mrf.mxu0
  %v4882 = vadd.f32 %v4289, %v4881
  %4883 = vmatprep.mubr.bf16.mxu0 0
  %4884 = vmatmul.mubr.bf16.gmra.mxu0 %v2216
  %v4885 = vpop.f32.mrf.mxu0
  %v4886 = vadd.f32 %v4293, %v4885
  %v4887 = vpop.f32.mrf.mxu0
  %v4888 = vadd.f32 %v4295, %v4887
  %v4889 = vpop.f32.mrf.mxu0
  %v4890 = vadd.f32 %v4297, %v4889
  %v4891 = vpop.f32.mrf.mxu0
  %v4892 = vadd.f32 %v4299, %v4891
  %4893 = vmatprep.mubr.bf16.mxu0 0
  %4894 = vmatmul.mubr.bf16.gmra.mxu0 %v2223
  %v4895 = vpop.f32.mrf.mxu0
  %v4896 = vadd.f32 %v4303, %v4895
  %v4897 = vpop.f32.mrf.mxu0
  %v4898 = vadd.f32 %v4305, %v4897
  %v4899 = vpop.f32.mrf.mxu0
  %v4900 = vadd.f32 %v4307, %v4899
  %v4901 = vpop.f32.mrf.mxu0
  %v4902 = vadd.f32 %v4309, %v4901
  %4903 = vmatprep.mubr.bf16.mxu0 0
  %4904 = vmatmul.mubr.bf16.gmra.mxu0 %v2230
  %v4905 = vpop.f32.mrf.mxu0
  %v4906 = vadd.f32 %v4313, %v4905
  %v4907 = vpop.f32.mrf.mxu0
  %v4908 = vadd.f32 %v4315, %v4907
  %v4909 = vpop.f32.mrf.mxu0
  %v4910 = vadd.f32 %v4317, %v4909
  %v4911 = vpop.f32.mrf.mxu0
  %v4912 = vadd.f32 %v4319, %v4911
  %4913 = vmatprep.mubr.bf16.mxu0 0
  %4914 = vmatmul.mubr.bf16.gmra.mxu0 %v2237
  %v4915 = vpop.f32.mrf.mxu0
  %v4916 = vadd.f32 %v4323, %v4915
  %v4917 = vpop.f32.mrf.mxu0
  %v4918 = vadd.f32 %v4325, %v4917
  %v4919 = vpop.f32.mrf.mxu0
  %v4920 = vadd.f32 %v4327, %v4919
  %v4921 = vpop.f32.mrf.mxu0
  %v4922 = vadd.f32 %v4329, %v4921
  %4923 = vmatprep.mubr.bf16.mxu0 0
  %4924 = vmatmul.mubr.bf16.gmra.mxu0 %v2244
  %v4925 = vpop.f32.mrf.mxu0
  %v4926 = vadd.f32 %v4333, %v4925
  %v4927 = vpop.f32.mrf.mxu0
  %v4928 = vadd.f32 %v4335, %v4927
  %v4929 = vpop.f32.mrf.mxu0
  %v4930 = vadd.f32 %v4337, %v4929
  %v4931 = vpop.f32.mrf.mxu0
  %v4932 = vadd.f32 %v4339, %v4931
  %4933 = vmatprep.mubr.bf16.mxu0 0
  %4934 = vmatmul.mubr.bf16.gmra.mxu0 %v2251
  %v4935 = vpop.f32.mrf.mxu0
  %v4936 = vadd.f32 %v4343, %v4935
  %v4937 = vpop.f32.mrf.mxu0
  %v4938 = vadd.f32 %v4345, %v4937
  %v4939 = vpop.f32.mrf.mxu0
  %v4940 = vadd.f32 %v4347, %v4939
  %v4941 = vpop.f32.mrf.mxu0
  %v4942 = vadd.f32 %v4349, %v4941
  %4943 = vmatprep.mubr.bf16.mxu0 0
  %4944 = vmatmul.mubr.bf16.gmra.mxu0 %v2258
  %v4945 = vpop.f32.mrf.mxu0
  %v4946 = vadd.f32 %v4353, %v4945
  %v4947 = vpop.f32.mrf.mxu0
  %v4948 = vadd.f32 %v4355, %v4947
  %v4949 = vpop.f32.mrf.mxu0
  %v4950 = vadd.f32 %v4357, %v4949
  %v4951 = vpop.f32.mrf.mxu0
  %v4952 = vadd.f32 %v4359, %v4951
  %4953 = vmatprep.mubr.bf16.mxu0 0
  %4954 = vmatmul.mubr.bf16.gmra.mxu0 %v2265
  %v4955 = vpop.f32.mrf.mxu0
  %v4956 = vadd.f32 %v4363, %v4955
  %v4957 = vpop.f32.mrf.mxu0
  %v4958 = vadd.f32 %v4365, %v4957
  %v4959 = vpop.f32.mrf.mxu0
  %v4960 = vadd.f32 %v4367, %v4959
  %v4961 = vpop.f32.mrf.mxu0
  %v4962 = vadd.f32 %v4369, %v4961
  %4963 = vmatprep.mubr.bf16.mxu0 0
  %4964 = vmatmul.mubr.bf16.gmra.mxu0 %v2272
  %v4965 = vpop.f32.mrf.mxu0
  %v4966 = vadd.f32 %v4373, %v4965
  %v4967 = vpop.f32.mrf.mxu0
  %v4968 = vadd.f32 %v4375, %v4967
  %v4969 = vpop.f32.mrf.mxu0
  %v4970 = vadd.f32 %v4377, %v4969
  %v4971 = vpop.f32.mrf.mxu0
  %v4972 = vadd.f32 %v4379, %v4971
  %4973 = vmatprep.mubr.bf16.mxu0 0
  %4974 = vmatmul.mubr.bf16.gmra.mxu0 %v2279
  %v4975 = vpop.f32.mrf.mxu0
  %v4976 = vadd.f32 %v4383, %v4975
  %v4977 = vpop.f32.mrf.mxu0
  %v4978 = vadd.f32 %v4385, %v4977
  %v4979 = vpop.f32.mrf.mxu0
  %v4980 = vadd.f32 %v4387, %v4979
  %v4981 = vpop.f32.mrf.mxu0
  %v4982 = vadd.f32 %v4389, %v4981
  %4983 = vmatprep.mubr.bf16.mxu0 0
  %4984 = vmatmul.mubr.bf16.gmra.mxu0 %v2286
  %v4985 = vpop.f32.mrf.mxu0
  %v4986 = vadd.f32 %v4393, %v4985
  %v4987 = vpop.f32.mrf.mxu0
  %v4988 = vadd.f32 %v4395, %v4987
  %v4989 = vpop.f32.mrf.mxu0
  %v4990 = vadd.f32 %v4397, %v4989
  %v4991 = vpop.f32.mrf.mxu0
  %v4992 = vadd.f32 %v4399, %v4991
  %4993 = vmatprep.mubr.bf16.mxu0 0
  %4994 = vmatmul.mubr.bf16.gmra.mxu0 %v2293
  %v4995 = vpop.f32.mrf.mxu0
  %v4996 = vadd.f32 %v4403, %v4995
  %v4997 = vpop.f32.mrf.mxu0
  %v4998 = vadd.f32 %v4405, %v4997
  %v4999 = vpop.f32.mrf.mxu0
  %v5000 = vadd.f32 %v4407, %v4999
  %v5001 = vpop.f32.mrf.mxu0
  %v5002 = vadd.f32 %v4409, %v5001
  %5003 = vmatprep.mubr.bf16.mxu0 0
  %5004 = vmatmul.mubr.bf16.gmra.mxu0 %v2300
  %v5005 = vpop.f32.mrf.mxu0
  %v5006 = vadd.f32 %v4413, %v5005
  %v5007 = vpop.f32.mrf.mxu0
  %v5008 = vadd.f32 %v4415, %v5007
  %v5009 = vpop.f32.mrf.mxu0
  %v5010 = vadd.f32 %v4417, %v5009
  %v5011 = vpop.f32.mrf.mxu0
  %v5012 = vadd.f32 %v4419, %v5011
  %5013 = vmatprep.mubr.bf16.mxu0 0
  %5014 = vmatmul.mubr.bf16.gmra.mxu0 %v2307
  %v5015 = vpop.f32.mrf.mxu0
  %v5016 = vadd.f32 %v4423, %v5015
  %v5017 = vpop.f32.mrf.mxu0
  %v5018 = vadd.f32 %v4425, %v5017
  %v5019 = vpop.f32.mrf.mxu0
  %v5020 = vadd.f32 %v4427, %v5019
  %v5021 = vpop.f32.mrf.mxu0
  %v5022 = vadd.f32 %v4429, %v5021
  %5023 = vmatprep.mubr.bf16.mxu0 0
  %5024 = vmatmul.mubr.bf16.gmra.mxu0 %v2314
  %v5025 = vpop.f32.mrf.mxu0
  %v5026 = vadd.f32 %v4433, %v5025
  %v5027 = vpop.f32.mrf.mxu0
  %v5028 = vadd.f32 %v4435, %v5027
  %v5029 = vpop.f32.mrf.mxu0
  %v5030 = vadd.f32 %v4437, %v5029
  %v5031 = vpop.f32.mrf.mxu0
  %v5032 = vadd.f32 %v4439, %v5031
  %5033 = vmatprep.mubr.bf16.mxu0 0
  %5034 = vmatmul.mubr.bf16.gmra.mxu0 %v2321
  %v5035 = vpop.f32.mrf.mxu0
  %v5036 = vadd.f32 %v4443, %v5035
  %v5037 = vpop.f32.mrf.mxu0
  %v5038 = vadd.f32 %v4445, %v5037
  %v5039 = vpop.f32.mrf.mxu0
  %v5040 = vadd.f32 %v4447, %v5039
  %v5041 = vpop.f32.mrf.mxu0
  %v5042 = vadd.f32 %v4449, %v5041
  %5043 = vmatprep.mubr.bf16.mxu0 0
  %5044 = vmatmul.mubr.bf16.gmra.mxu0 %v2328
  %v5045 = vpop.f32.mrf.mxu0
  %v5046 = vadd.f32 %v4453, %v5045
  %v5047 = vpop.f32.mrf.mxu0
  %v5048 = vadd.f32 %v4455, %v5047
  %v5049 = vpop.f32.mrf.mxu0
  %v5050 = vadd.f32 %v4457, %v5049
  %v5051 = vpop.f32.mrf.mxu0
  %v5052 = vadd.f32 %v4459, %v5051
  %5053 = vmatprep.mubr.bf16.mxu0 0
  %5054 = vmatmul.mubr.bf16.gmra.mxu0 %v2335
  %v5055 = vpop.f32.mrf.mxu0
  %v5056 = vadd.f32 %v4463, %v5055
  %v5057 = vpop.f32.mrf.mxu0
  %v5058 = vadd.f32 %v4465, %v5057
  %v5059 = vpop.f32.mrf.mxu0
  %v5060 = vadd.f32 %v4467, %v5059
  %v5061 = vpop.f32.mrf.mxu0
  %v5062 = vadd.f32 %v4469, %v5061
  %5063 = vmatprep.mubr.bf16.mxu0 0
  %5064 = vmatmul.mubr.bf16.gmra.mxu0 %v2342
  %v5065 = vpop.f32.mrf.mxu0
  %v5066 = vadd.f32 %v4473, %v5065
  %v5067 = vpop.f32.mrf.mxu0
  %v5068 = vadd.f32 %v4475, %v5067
  %v5069 = vpop.f32.mrf.mxu0
  %v5070 = vadd.f32 %v4477, %v5069
  %v5071 = vpop.f32.mrf.mxu0
  %v5072 = vadd.f32 %v4479, %v5071
  %5073 = vmatprep.mubr.bf16.mxu0 0
  %5074 = vmatmul.mubr.bf16.gmra.mxu0 %v2349
  %v5075 = vpop.f32.mrf.mxu0
  %v5076 = vadd.f32 %v4483, %v5075
  %v5077 = vpop.f32.mrf.mxu0
  %v5078 = vadd.f32 %v4485, %v5077
  %v5079 = vpop.f32.mrf.mxu0
  %v5080 = vadd.f32 %v4487, %v5079
  %v5081 = vpop.f32.mrf.mxu0
  %v5082 = vadd.f32 %v4489, %v5081
  %5083 = vmatprep.mubr.bf16.mxu0 0
  %5084 = vmatmul.mubr.bf16.gmra.mxu0 %v2356
  %v5085 = vpop.f32.mrf.mxu0
  %v5086 = vadd.f32 %v4493, %v5085
  %v5087 = vpop.f32.mrf.mxu0
  %v5088 = vadd.f32 %v4495, %v5087
  %v5089 = vpop.f32.mrf.mxu0
  %v5090 = vadd.f32 %v4497, %v5089
  %v5091 = vpop.f32.mrf.mxu0
  %v5092 = vadd.f32 %v4499, %v5091
  %5093 = vmatprep.mubr.bf16.mxu0 0
  %5094 = vmatmul.mubr.bf16.gmra.mxu0 %v2363
  %v5095 = vpop.f32.mrf.mxu0
  %v5096 = vadd.f32 %v4503, %v5095
  %v5097 = vpop.f32.mrf.mxu0
  %v5098 = vadd.f32 %v4505, %v5097
  %v5099 = vpop.f32.mrf.mxu0
  %v5100 = vadd.f32 %v4507, %v5099
  %v5101 = vpop.f32.mrf.mxu0
  %v5102 = vadd.f32 %v4509, %v5101
  %5103 = vmatprep.mubr.bf16.mxu0 0
  %5104 = vmatmul.mubr.bf16.gmra.mxu0 %v2370
  %v5105 = vpop.f32.mrf.mxu0
  %v5106 = vadd.f32 %v4513, %v5105
  %v5107 = vpop.f32.mrf.mxu0
  %v5108 = vadd.f32 %v4515, %v5107
  %v5109 = vpop.f32.mrf.mxu0
  %v5110 = vadd.f32 %v4517, %v5109
  %v5111 = vpop.f32.mrf.mxu0
  %v5112 = vadd.f32 %v4519, %v5111
  %5113 = vmatprep.mubr.bf16.mxu0 0
  %5114 = vmatmul.mubr.bf16.gmra.mxu0 %v2377
  %v5115 = vpop.f32.mrf.mxu0
  %v5116 = vadd.f32 %v4523, %v5115
  %v5117 = vpop.f32.mrf.mxu0
  %v5118 = vadd.f32 %v4525, %v5117
  %v5119 = vpop.f32.mrf.mxu0
  %v5120 = vadd.f32 %v4527, %v5119
  %v5121 = vpop.f32.mrf.mxu0
  %v5122 = vadd.f32 %v4529, %v5121
  %5123 = vmatprep.mubr.bf16.mxu0 0
  %5124 = vmatmul.mubr.bf16.gmra.mxu0 %v2384
  %v5125 = vpop.f32.mrf.mxu0
  %v5126 = vadd.f32 %v4533, %v5125
  %v5127 = vpop.f32.mrf.mxu0
  %v5128 = vadd.f32 %v4535, %v5127
  %v5129 = vpop.f32.mrf.mxu0
  %v5130 = vadd.f32 %v4537, %v5129
  %v5131 = vpop.f32.mrf.mxu0
  %v5132 = vadd.f32 %v4539, %v5131
  %5133 = vmatprep.mubr.bf16.mxu0 0
  %5134 = vmatmul.mubr.bf16.gmra.mxu0 %v2391
  %v5135 = vpop.f32.mrf.mxu0
  %v5136 = vadd.f32 %v4543, %v5135
  %v5137 = vpop.f32.mrf.mxu0
  %v5138 = vadd.f32 %v4545, %v5137
  %v5139 = vpop.f32.mrf.mxu0
  %v5140 = vadd.f32 %v4547, %v5139
  %v5141 = vpop.f32.mrf.mxu0
  %v5142 = vadd.f32 %v4549, %v5141
  %5143 = vmatprep.mubr.bf16.mxu0 0
  %5144 = vmatmul.mubr.bf16.gmra.mxu0 %v2398
  %v5145 = vpop.f32.mrf.mxu0
  %v5146 = vadd.f32 %v4553, %v5145
  %v5147 = vpop.f32.mrf.mxu0
  %v5148 = vadd.f32 %v4555, %v5147
  %v5149 = vpop.f32.mrf.mxu0
  %v5150 = vadd.f32 %v4557, %v5149
  %v5151 = vpop.f32.mrf.mxu0
  %v5152 = vadd.f32 %v4559, %v5151
  %5153 = vmatprep.mubr.bf16.mxu0 0
  %5154 = vmatmul.mubr.bf16.gmra.mxu0 %v2405
  %v5155 = vpop.f32.mrf.mxu0
  %v5156 = vadd.f32 %v4563, %v5155
  %v5157 = vpop.f32.mrf.mxu0
  %v5158 = vadd.f32 %v4565, %v5157
  %v5159 = vpop.f32.mrf.mxu0
  %v5160 = vadd.f32 %v4567, %v5159
  %v5161 = vpop.f32.mrf.mxu0
  %v5162 = vadd.f32 %v4569, %v5161
  %5163 = vmatprep.mubr.bf16.mxu0 0
  %5164 = vmatmul.mubr.bf16.gmra.mxu0 %v2412
  %v5165 = vpop.f32.mrf.mxu0
  %v5166 = vadd.f32 %v4573, %v5165
  %v5167 = vpop.f32.mrf.mxu0
  %v5168 = vadd.f32 %v4575, %v5167
  %v5169 = vpop.f32.mrf.mxu0
  %v5170 = vadd.f32 %v4577, %v5169
  %v5171 = vpop.f32.mrf.mxu0
  %v5172 = vadd.f32 %v4579, %v5171
  %5173 = vmatprep.mubr.bf16.mxu0 0
  %5174 = vmatmul.mubr.bf16.gmra.mxu0 %v2419
  %v5175 = vpop.f32.mrf.mxu0
  %v5176 = vadd.f32 %v4583, %v5175
  %v5177 = vpop.f32.mrf.mxu0
  %v5178 = vadd.f32 %v4585, %v5177
  %v5179 = vpop.f32.mrf.mxu0
  %v5180 = vadd.f32 %v4587, %v5179
  %v5181 = vpop.f32.mrf.mxu0
  %v5182 = vadd.f32 %v4589, %v5181
  %5183 = vdwg.mxu0
  %5184 = vst [vmem:[%s2] sm:$0xff] %v4626
  %vm5185 = vcmask 556032
  %5186 = vst.msk [vmem:[%s2 + $0x8] sm:$0xff] %vm5185, %v4628
  %5187 = vst [vmem:[%s2 + $0x10] sm:$0xff] %v4630
  %5188 = vst.msk [vmem:[%s2 + $0x18] sm:$0xff] %vm5185, %v4632
  %5189 = vst [vmem:[%s2 + $0x20] sm:$0xff] %v4636
  %5190 = vst.msk [vmem:[%s2 + $0x28] sm:$0xff] %vm5185, %v4638
  %5191 = vst [vmem:[%s2 + $0x30] sm:$0xff] %v4640
  %5192 = vst.msk [vmem:[%s2 + $0x38] sm:$0xff] %vm5185, %v4642
  %5193 = vst [vmem:[%s2 + $0x40] sm:$0xff] %v4646
  %5194 = vst.msk [vmem:[%s2 + $0x48] sm:$0xff] %vm5185, %v4648
  %5195 = vst [vmem:[%s2 + $0x50] sm:$0xff] %v4650
  %5196 = vst.msk [vmem:[%s2 + $0x58] sm:$0xff] %vm5185, %v4652
  %5197 = vst [vmem:[%s2 + $0x60] sm:$0xff] %v4656
  %5198 = vst.msk [vmem:[%s2 + $0x68] sm:$0xff] %vm5185, %v4658
  %5199 = vst [vmem:[%s2 + $0x70] sm:$0xff] %v4660
  %5200 = vst.msk [vmem:[%s2 + $0x78] sm:$0xff] %vm5185, %v4662
  %5201 = vst [vmem:[%s2 + $0x80] sm:$0xff] %v4666
  %5202 = vst.msk [vmem:[%s2 + $0x88] sm:$0xff] %vm5185, %v4668
  %5203 = vst [vmem:[%s2 + $0x90] sm:$0xff] %v4670
  %5204 = vst.msk [vmem:[%s2 + $0x98] sm:$0xff] %vm5185, %v4672
  %5205 = vst [vmem:[%s2 + $0xa0] sm:$0xff] %v4676
  %5206 = vst.msk [vmem:[%s2 + $0xa8] sm:$0xff] %vm5185, %v4678
  %5207 = vst [vmem:[%s2 + $0xb0] sm:$0xff] %v4680
  %5208 = vst.msk [vmem:[%s2 + $0xb8] sm:$0xff] %vm5185, %v4682
  %5209 = vst [vmem:[%s2 + $0xc0] sm:$0xff] %v4686
  %5210 = vst.msk [vmem:[%s2 + $0xc8] sm:$0xff] %vm5185, %v4688
  %5211 = vst [vmem:[%s2 + $0xd0] sm:$0xff] %v4690
  %5212 = vst.msk [vmem:[%s2 + $0xd8] sm:$0xff] %vm5185, %v4692
  %5213 = vst [vmem:[%s2 + $0xe0] sm:$0xff] %v4696
  %5214 = vst.msk [vmem:[%s2 + $0xe8] sm:$0xff] %vm5185, %v4698
  %5215 = vst [vmem:[%s2 + $0xf0] sm:$0xff] %v4700
  %5216 = vst.msk [vmem:[%s2 + $0xf8] sm:$0xff] %vm5185, %v4702
  %5217 = vst [vmem:[%s2 + $0x100] sm:$0xff] %v4706
  %5218 = vst.msk [vmem:[%s2 + $0x108] sm:$0xff] %vm5185, %v4708
  %5219 = vst [vmem:[%s2 + $0x110] sm:$0xff] %v4710
  %5220 = vst.msk [vmem:[%s2 + $0x118] sm:$0xff] %vm5185, %v4712
  %5221 = vst [vmem:[%s2 + $0x120] sm:$0xff] %v4716
  %5222 = vst.msk [vmem:[%s2 + $0x128] sm:$0xff] %vm5185, %v4718
  %5223 = vst [vmem:[%s2 + $0x130] sm:$0xff] %v4720
  %5224 = vst.msk [vmem:[%s2 + $0x138] sm:$0xff] %vm5185, %v4722
  %5225 = vst [vmem:[%s2 + $0x140] sm:$0xff] %v4726
  %5226 = vst.msk [vmem:[%s2 + $0x148] sm:$0xff] %vm5185, %v4728
  %5227 = vst [vmem:[%s2 + $0x150] sm:$0xff] %v4730
  %5228 = vst.msk [vmem:[%s2 + $0x158] sm:$0xff] %vm5185, %v4732
  %5229 = vst [vmem:[%s2 + $0x160] sm:$0xff] %v4736
  %5230 = vst.msk [vmem:[%s2 + $0x168] sm:$0xff] %vm5185, %v4738
  %5231 = vst [vmem:[%s2 + $0x170] sm:$0xff] %v4740
  %5232 = vst.msk [vmem:[%s2 + $0x178] sm:$0xff] %vm5185, %v4742
  %5233 = vst [vmem:[%s2 + $0x180] sm:$0xff] %v4746
  %5234 = vst.msk [vmem:[%s2 + $0x188] sm:$0xff] %vm5185, %v4748
  %5235 = vst [vmem:[%s2 + $0x190] sm:$0xff] %v4750
  %5236 = vst.msk [vmem:[%s2 + $0x198] sm:$0xff] %vm5185, %v4752
  %5237 = vst [vmem:[%s2 + $0x1a0] sm:$0xff] %v4756
  %5238 = vst.msk [vmem:[%s2 + $0x1a8] sm:$0xff] %vm5185, %v4758
  %5239 = vst [vmem:[%s2 + $0x1b0] sm:$0xff] %v4760
  %5240 = vst.msk [vmem:[%s2 + $0x1b8] sm:$0xff] %vm5185, %v4762
  %5241 = vst [vmem:[%s2 + $0x1c0] sm:$0xff] %v4766
  %5242 = vst.msk [vmem:[%s2 + $0x1c8] sm:$0xff] %vm5185, %v4768
  %5243 = vst [vmem:[%s2 + $0x1d0] sm:$0xff] %v4770
  %5244 = vst.msk [vmem:[%s2 + $0x1d8] sm:$0xff] %vm5185, %v4772
  %5245 = vst [vmem:[%s2 + $0x1e0] sm:$0xff] %v4776
  %5246 = vst.msk [vmem:[%s2 + $0x1e8] sm:$0xff] %vm5185, %v4778
  %5247 = vst [vmem:[%s2 + $0x1f0] sm:$0xff] %v4780
  %5248 = vst.msk [vmem:[%s2 + $0x1f8] sm:$0xff] %vm5185, %v4782
  %5249 = vst [vmem:[%s2 + $0x200] sm:$0xff] %v4786
  %5250 = vst.msk [vmem:[%s2 + $0x208] sm:$0xff] %vm5185, %v4788
  %5251 = vst [vmem:[%s2 + $0x210] sm:$0xff] %v4790
  %5252 = vst.msk [vmem:[%s2 + $0x218] sm:$0xff] %vm5185, %v4792
  %5253 = vst [vmem:[%s2 + $0x220] sm:$0xff] %v4796
  %5254 = vst.msk [vmem:[%s2 + $0x228] sm:$0xff] %vm5185, %v4798
  %5255 = vst [vmem:[%s2 + $0x230] sm:$0xff] %v4800
  %5256 = vst.msk [vmem:[%s2 + $0x238] sm:$0xff] %vm5185, %v4802
  %5257 = vst [vmem:[%s2 + $0x240] sm:$0xff] %v4806
  %5258 = vst.msk [vmem:[%s2 + $0x248] sm:$0xff] %vm5185, %v4808
  %5259 = vst [vmem:[%s2 + $0x250] sm:$0xff] %v4810
  %5260 = vst.msk [vmem:[%s2 + $0x258] sm:$0xff] %vm5185, %v4812
  %5261 = vst [vmem:[%s2 + $0x260] sm:$0xff] %v4816
  %5262 = vst.msk [vmem:[%s2 + $0x268] sm:$0xff] %vm5185, %v4818
  %5263 = vst [vmem:[%s2 + $0x270] sm:$0xff] %v4820
  %5264 = vst.msk [vmem:[%s2 + $0x278] sm:$0xff] %vm5185, %v4822
  %5265 = vst [vmem:[%s2 + $0x280] sm:$0xff] %v4826
  %5266 = vst.msk [vmem:[%s2 + $0x288] sm:$0xff] %vm5185, %v4828
  %5267 = vst [vmem:[%s2 + $0x290] sm:$0xff] %v4830
  %5268 = vst.msk [vmem:[%s2 + $0x298] sm:$0xff] %vm5185, %v4832
  %5269 = vst [vmem:[%s2 + $0x2a0] sm:$0xff] %v4836
  %5270 = vst.msk [vmem:[%s2 + $0x2a8] sm:$0xff] %vm5185, %v4838
  %5271 = vst [vmem:[%s2 + $0x2b0] sm:$0xff] %v4840
  %5272 = vst.msk [vmem:[%s2 + $0x2b8] sm:$0xff] %vm5185, %v4842
  %5273 = vst [vmem:[%s2 + $0x2c0] sm:$0xff] %v4846
  %5274 = vst.msk [vmem:[%s2 + $0x2c8] sm:$0xff] %vm5185, %v4848
  %5275 = vst [vmem:[%s2 + $0x2d0] sm:$0xff] %v4850
  %5276 = vst.msk [vmem:[%s2 + $0x2d8] sm:$0xff] %vm5185, %v4852
  %5277 = vst [vmem:[%s2 + $0x2e0] sm:$0xff] %v4856
  %5278 = vst.msk [vmem:[%s2 + $0x2e8] sm:$0xff] %vm5185, %v4858
  %5279 = vst [vmem:[%s2 + $0x2f0] sm:$0xff] %v4860
  %5280 = vst.msk [vmem:[%s2 + $0x2f8] sm:$0xff] %vm5185, %v4862
  %5281 = vst [vmem:[%s2 + $0x300] sm:$0xff] %v4866
  %5282 = vst.msk [vmem:[%s2 + $0x308] sm:$0xff] %vm5185, %v4868
  %5283 = vst [vmem:[%s2 + $0x310] sm:$0xff] %v4870
  %5284 = vst.msk [vmem:[%s2 + $0x318] sm:$0xff] %vm5185, %v4872
  %5285 = vst [vmem:[%s2 + $0x320] sm:$0xff] %v4876
  %5286 = vst.msk [vmem:[%s2 + $0x328] sm:$0xff] %vm5185, %v4878
  %5287 = vst [vmem:[%s2 + $0x330] sm:$0xff] %v4880
  %5288 = vst.msk [vmem:[%s2 + $0x338] sm:$0xff] %vm5185, %v4882
  %5289 = vst [vmem:[%s2 + $0x340] sm:$0xff] %v4886
  %5290 = vst.msk [vmem:[%s2 + $0x348] sm:$0xff] %vm5185, %v4888
  %5291 = vst [vmem:[%s2 + $0x350] sm:$0xff] %v4890
  %5292 = vst.msk [vmem:[%s2 + $0x358] sm:$0xff] %vm5185, %v4892
  %5293 = vst [vmem:[%s2 + $0x360] sm:$0xff] %v4896
  %5294 = vst.msk [vmem:[%s2 + $0x368] sm:$0xff] %vm5185, %v4898
  %5295 = vst [vmem:[%s2 + $0x370] sm:$0xff] %v4900
  %5296 = vst.msk [vmem:[%s2 + $0x378] sm:$0xff] %vm5185, %v4902
  %5297 = vst [vmem:[%s2 + $0x380] sm:$0xff] %v4906
  %5298 = vst.msk [vmem:[%s2 + $0x388] sm:$0xff] %vm5185, %v4908
  %5299 = vst [vmem:[%s2 + $0x390] sm:$0xff] %v4910
  %5300 = vst.msk [vmem:[%s2 + $0x398] sm:$0xff] %vm5185, %v4912
  %5301 = vst [vmem:[%s2 + $0x3a0] sm:$0xff] %v4916
  %5302 = vst.msk [vmem:[%s2 + $0x3a8] sm:$0xff] %vm5185, %v4918
  %5303 = vst [vmem:[%s2 + $0x3b0] sm:$0xff] %v4920
  %5304 = vst.msk [vmem:[%s2 + $0x3b8] sm:$0xff] %vm5185, %v4922
  %5305 = vst [vmem:[%s2 + $0x3c0] sm:$0xff] %v4926
  %5306 = vst.msk [vmem:[%s2 + $0x3c8] sm:$0xff] %vm5185, %v4928
  %5307 = vst [vmem:[%s2 + $0x3d0] sm:$0xff] %v4930
  %5308 = vst.msk [vmem:[%s2 + $0x3d8] sm:$0xff] %vm5185, %v4932
  %5309 = vst [vmem:[%s2 + $0x3e0] sm:$0xff] %v4936
  %5310 = vst.msk [vmem:[%s2 + $0x3e8] sm:$0xff] %vm5185, %v4938
  %5311 = vst [vmem:[%s2 + $0x3f0] sm:$0xff] %v4940
  %5312 = vst.msk [vmem:[%s2 + $0x3f8] sm:$0xff] %vm5185, %v4942
  %5313 = vst [vmem:[%s2 + $0x400] sm:$0xff] %v4946
  %5314 = vst.msk [vmem:[%s2 + $0x408] sm:$0xff] %vm5185, %v4948
  %5315 = vst [vmem:[%s2 + $0x410] sm:$0xff] %v4950
  %5316 = vst.msk [vmem:[%s2 + $0x418] sm:$0xff] %vm5185, %v4952
  %5317 = vst [vmem:[%s2 + $0x420] sm:$0xff] %v4956
  %5318 = vst.msk [vmem:[%s2 + $0x428] sm:$0xff] %vm5185, %v4958
  %5319 = vst [vmem:[%s2 + $0x430] sm:$0xff] %v4960
  %5320 = vst.msk [vmem:[%s2 + $0x438] sm:$0xff] %vm5185, %v4962
  %5321 = vst [vmem:[%s2 + $0x440] sm:$0xff] %v4966
  %5322 = vst.msk [vmem:[%s2 + $0x448] sm:$0xff] %vm5185, %v4968
  %5323 = vst [vmem:[%s2 + $0x450] sm:$0xff] %v4970
  %5324 = vst.msk [vmem:[%s2 + $0x458] sm:$0xff] %vm5185, %v4972
  %5325 = vst [vmem:[%s2 + $0x460] sm:$0xff] %v4976
  %5326 = vst.msk [vmem:[%s2 + $0x468] sm:$0xff] %vm5185, %v4978
  %5327 = vst [vmem:[%s2 + $0x470] sm:$0xff] %v4980
  %5328 = vst.msk [vmem:[%s2 + $0x478] sm:$0xff] %vm5185, %v4982
  %5329 = vst [vmem:[%s2 + $0x480] sm:$0xff] %v4986
  %5330 = vst.msk [vmem:[%s2 + $0x488] sm:$0xff] %vm5185, %v4988
  %5331 = vst [vmem:[%s2 + $0x490] sm:$0xff] %v4990
  %5332 = vst.msk [vmem:[%s2 + $0x498] sm:$0xff] %vm5185, %v4992
  %5333 = vst [vmem:[%s2 + $0x4a0] sm:$0xff] %v4996
  %5334 = vst.msk [vmem:[%s2 + $0x4a8] sm:$0xff] %vm5185, %v4998
  %5335 = vst [vmem:[%s2 + $0x4b0] sm:$0xff] %v5000
  %5336 = vst.msk [vmem:[%s2 + $0x4b8] sm:$0xff] %vm5185, %v5002
  %5337 = vst [vmem:[%s2 + $0x4c0] sm:$0xff] %v5006
  %5338 = vst.msk [vmem:[%s2 + $0x4c8] sm:$0xff] %vm5185, %v5008
  %5339 = vst [vmem:[%s2 + $0x4d0] sm:$0xff] %v5010
  %5340 = vst.msk [vmem:[%s2 + $0x4d8] sm:$0xff] %vm5185, %v5012
  %5341 = vst [vmem:[%s2 + $0x4e0] sm:$0xff] %v5016
  %5342 = vst.msk [vmem:[%s2 + $0x4e8] sm:$0xff] %vm5185, %v5018
  %5343 = vst [vmem:[%s2 + $0x4f0] sm:$0xff] %v5020
  %5344 = vst.msk [vmem:[%s2 + $0x4f8] sm:$0xff] %vm5185, %v5022
  %5345 = vst [vmem:[%s2 + $0x500] sm:$0xff] %v5026
  %5346 = vst.msk [vmem:[%s2 + $0x508] sm:$0xff] %vm5185, %v5028
  %5347 = vst [vmem:[%s2 + $0x510] sm:$0xff] %v5030
  %5348 = vst.msk [vmem:[%s2 + $0x518] sm:$0xff] %vm5185, %v5032
  %5349 = vst [vmem:[%s2 + $0x520] sm:$0xff] %v5036
  %5350 = vst.msk [vmem:[%s2 + $0x528] sm:$0xff] %vm5185, %v5038
  %5351 = vst [vmem:[%s2 + $0x530] sm:$0xff] %v5040
  %5352 = vst.msk [vmem:[%s2 + $0x538] sm:$0xff] %vm5185, %v5042
  %5353 = vst [vmem:[%s2 + $0x540] sm:$0xff] %v5046
  %5354 = vst.msk [vmem:[%s2 + $0x548] sm:$0xff] %vm5185, %v5048
  %5355 = vst [vmem:[%s2 + $0x550] sm:$0xff] %v5050
  %5356 = vst.msk [vmem:[%s2 + $0x558] sm:$0xff] %vm5185, %v5052
  %5357 = vst [vmem:[%s2 + $0x560] sm:$0xff] %v5056
  %5358 = vst.msk [vmem:[%s2 + $0x568] sm:$0xff] %vm5185, %v5058
  %5359 = vst [vmem:[%s2 + $0x570] sm:$0xff] %v5060
  %5360 = vst.msk [vmem:[%s2 + $0x578] sm:$0xff] %vm5185, %v5062
  %5361 = vst [vmem:[%s2 + $0x580] sm:$0xff] %v5066
  %5362 = vst.msk [vmem:[%s2 + $0x588] sm:$0xff] %vm5185, %v5068
  %5363 = vst [vmem:[%s2 + $0x590] sm:$0xff] %v5070
  %5364 = vst.msk [vmem:[%s2 + $0x598] sm:$0xff] %vm5185, %v5072
  %5365 = vst [vmem:[%s2 + $0x5a0] sm:$0xff] %v5076
  %5366 = vst.msk [vmem:[%s2 + $0x5a8] sm:$0xff] %vm5185, %v5078
  %5367 = vst [vmem:[%s2 + $0x5b0] sm:$0xff] %v5080
  %5368 = vst.msk [vmem:[%s2 + $0x5b8] sm:$0xff] %vm5185, %v5082
  %5369 = vst [vmem:[%s2 + $0x5c0] sm:$0xff] %v5086
  %5370 = vst.msk [vmem:[%s2 + $0x5c8] sm:$0xff] %vm5185, %v5088
  %5371 = vst [vmem:[%s2 + $0x5d0] sm:$0xff] %v5090
  %5372 = vst.msk [vmem:[%s2 + $0x5d8] sm:$0xff] %vm5185, %v5092
  %5373 = vst [vmem:[%s2 + $0x5e0] sm:$0xff] %v5096
  %5374 = vst.msk [vmem:[%s2 + $0x5e8] sm:$0xff] %vm5185, %v5098
  %5375 = vst [vmem:[%s2 + $0x5f0] sm:$0xff] %v5100
  %5376 = vst.msk [vmem:[%s2 + $0x5f8] sm:$0xff] %vm5185, %v5102
  %5377 = vst [vmem:[%s2 + $0x600] sm:$0xff] %v5106
  %5378 = vst.msk [vmem:[%s2 + $0x608] sm:$0xff] %vm5185, %v5108
  %5379 = vst [vmem:[%s2 + $0x610] sm:$0xff] %v5110
  %5380 = vst.msk [vmem:[%s2 + $0x618] sm:$0xff] %vm5185, %v5112
  %5381 = vst [vmem:[%s2 + $0x620] sm:$0xff] %v5116
  %5382 = vst.msk [vmem:[%s2 + $0x628] sm:$0xff] %vm5185, %v5118
  %5383 = vst [vmem:[%s2 + $0x630] sm:$0xff] %v5120
  %5384 = vst.msk [vmem:[%s2 + $0x638] sm:$0xff] %vm5185, %v5122
  %5385 = vst [vmem:[%s2 + $0x640] sm:$0xff] %v5126
  %5386 = vst.msk [vmem:[%s2 + $0x648] sm:$0xff] %vm5185, %v5128
  %5387 = vst [vmem:[%s2 + $0x650] sm:$0xff] %v5130
  %5388 = vst.msk [vmem:[%s2 + $0x658] sm:$0xff] %vm5185, %v5132
  %5389 = vst [vmem:[%s2 + $0x660] sm:$0xff] %v5136
  %5390 = vst.msk [vmem:[%s2 + $0x668] sm:$0xff] %vm5185, %v5138
  %5391 = vst [vmem:[%s2 + $0x670] sm:$0xff] %v5140
  %5392 = vst.msk [vmem:[%s2 + $0x678] sm:$0xff] %vm5185, %v5142
  %5393 = vst [vmem:[%s2 + $0x680] sm:$0xff] %v5146
  %5394 = vst.msk [vmem:[%s2 + $0x688] sm:$0xff] %vm5185, %v5148
  %5395 = vst [vmem:[%s2 + $0x690] sm:$0xff] %v5150
  %5396 = vst.msk [vmem:[%s2 + $0x698] sm:$0xff] %vm5185, %v5152
  %5397 = vst [vmem:[%s2 + $0x6a0] sm:$0xff] %v5156
  %5398 = vst.msk [vmem:[%s2 + $0x6a8] sm:$0xff] %vm5185, %v5158
  %5399 = vst [vmem:[%s2 + $0x6b0] sm:$0xff] %v5160
  %5400 = vst.msk [vmem:[%s2 + $0x6b8] sm:$0xff] %vm5185, %v5162
  %5401 = vst [vmem:[%s2 + $0x6c0] sm:$0xff] %v5166
  %5402 = vst.msk [vmem:[%s2 + $0x6c8] sm:$0xff] %vm5185, %v5168
  %5403 = vst [vmem:[%s2 + $0x6d0] sm:$0xff] %v5170
  %5404 = vst.msk [vmem:[%s2 + $0x6d8] sm:$0xff] %vm5185, %v5172
  %5405 = vst [vmem:[%s2 + $0x6e0] sm:$0xff] %v5176
  %5406 = vst.msk [vmem:[%s2 + $0x6e8] sm:$0xff] %vm5185, %v5178
  %5407 = vst [vmem:[%s2 + $0x6f0] sm:$0xff] %v5180
  %5408 = vst.msk [vmem:[%s2 + $0x6f8] sm:$0xff] %vm5185, %v5182
  // Predicated region
  $region10: #{tpu_custom_call.1} parent=0 // pred_check
    _
  $region11: #{tpu_custom_call.1} parent=0 // pred_check_branch
    %5410 = sbr.rel (0) target = $region13
  $region12: #{tpu_custom_call.1} parent=0 // pred_region
    _
  $region13: #{tpu_custom_call.1} parent=0 // pred_fallthru
    _
  // Predicated region
  $region14: #{tpu_custom_call.1} parent=0 // pred_check
    _
  $region15: #{tpu_custom_call.1} parent=0 // pred_check_branch
    %5412 = sbr.rel (0) target = $region17
  $region16: #{tpu_custom_call.1} parent=0 // pred_region
    _
  $region17: #{tpu_custom_call.1} parent=0 // pred_fallthru
    _

</llo_original>
